<compile_context>
chip_gen: v5e
topology: v5e:2x2
jax: 0.10.0
libtpu: 0.0.40
codegen_flags: <defaults>
</compile_context>

<pallas_src>
import functools

import numpy as np
import jax
import jax.numpy as jnp
from jax import lax
from jax.experimental import pallas as pl
from jax.experimental.pallas import tpu as pltpu

_MIB = 1 << 20


def _pick_tile(n, preferred, aligns):
    """Largest divisor of n that is <= preferred and a multiple of one of
    `aligns` (tried in order). Falls back to n (full extent is always legal)."""
    for align in aligns:
        t = min(preferred, n)
        while t > 0:
            if n % t == 0 and t % align == 0:
                return t
            t -= 1
    return n


def _vmem_limit(estimate_bytes):
    # Generous headroom over the tile estimate, clamped so the limit is legal
    # on every generation (v7x has 64 MiB of physical VMEM per TensorCore).
    return int(min(max(2 * estimate_bytes + 8 * _MIB, 32 * _MIB), 64 * _MIB))


def _invariant_spec(block_shape, index_map):
    """BlockSpec for a grid-invariant operand, single-buffered when possible."""
    buffered_cls = getattr(pl, "Buffered", None)
    if buffered_cls is not None:
        try:
            return pl.BlockSpec(block_shape, index_map,
                                pipeline_mode=buffered_cls(1))
        except TypeError:
            pass
    return pl.BlockSpec(block_shape, index_map)


# ----------------------------------------------------------------------------
# Epilogue: out = z - lse, tiled, input aliased to output.
# ----------------------------------------------------------------------------
def _lse_sub_kernel(z_ref, lse_ref, out_ref):
    out_ref[...] = z_ref[...] - lse_ref[...]


def _apply_lse(z2, lse2):
    R, V = z2.shape
    tr = _pick_tile(R, 1024, (16, 8))
    tv = _pick_tile(V, 4096, (256, 128))
    est = 2 * 2 * tr * tv * 4 + 2 * tr * 4
    return pl.pallas_call(
        _lse_sub_kernel,
        grid=(R // tr, V // tv),
        in_specs=[
            pl.BlockSpec((tr, tv), lambda r, v: (r, v)),
            pl.BlockSpec((tr, 1), lambda r, v: (r, 0)),
        ],
        out_specs=pl.BlockSpec((tr, tv), lambda r, v: (r, v)),
        out_shape=jax.ShapeDtypeStruct((R, V), z2.dtype),
        input_output_aliases={0: 0},
        compiler_params=pltpu.CompilerParams(
            dimension_semantics=("parallel", "parallel"),
            vmem_limit_bytes=_vmem_limit(est)),
    )(z2, lse2)


# ----------------------------------------------------------------------------
# copy = False path: pass 1 emits raw logits z plus per-row lse.
# ----------------------------------------------------------------------------
def _voc_gen_kernel(hid_ref, w_ref, b_ref, z_ref, lse_ref, m_scr, l_scr):
    vt = pl.program_id(1)
    nv = pl.num_programs(1)

    @pl.when(vt == 0)
    def _():
        m_scr[...] = jnp.full(m_scr.shape, -jnp.inf, m_scr.dtype)
        l_scr[...] = jnp.zeros(l_scr.shape, l_scr.dtype)

    # (TR, H) bf16 @ (H, TV) bf16 -> f32 accumulation on the MXU.
    z = jnp.dot(hid_ref[...], w_ref[...],
                preferred_element_type=jnp.float32) + b_ref[...]

    # online log-softmax state update
    # TODO(synk): on v6e/v7x the exp-sum could run in bf16 if EUP becomes the
    #             binding slot; kept f32 for accuracy / v5e compatibility.
    m_old = m_scr[...]
    m_new = jnp.maximum(m_old, jnp.max(z, axis=-1, keepdims=True))
    l_scr[...] = (l_scr[...] * jnp.exp(m_old - m_new)
                  + jnp.sum(jnp.exp(z - m_new), axis=-1, keepdims=True))
    m_scr[...] = m_new

    z_ref[...] = z                        # lane-dense (TR, TV) tile writeback

    @pl.when(vt == nv - 1)
    def _():
        lse_ref[...] = m_scr[...] + jnp.log(l_scr[...])


# ----------------------------------------------------------------------------
# copy = True path (full copy mechanism), grid = (B, D_tiles, V_tiles)
# ----------------------------------------------------------------------------
def _copy_gen_kernel(
    scalars_ref,        # SMEM (2,) f32: [score_bias, sigm_bias]
    hid_ref,            # (TD, H) bf16
    top_ref,            # (S, H)  bf16
    src_ls_ref,         # (1, S)  i32  (lane-major, for the score mask)
    src_sl_ref,         # (S, 1)  i32  (sublane-major, for the one-hot)
    gen_w_ref,          # (H, TV) bf16   (V-tiled, streamed)
    gen_b_ref,          # (1, TV) f32
    w_score_hid_ref,    # (1, H)  f32
    w_score_top_ref,    # (1, H)  f32
    w_ff_hid_ref,       # (H, H)  bf16
    w_ff_ctx_ref,       # (H, H)  bf16
    b_ff_ref,           # (1, H)  f32
    w_sigm_ref,         # (1, H)  f32
    z_ref,              # (TD, TV) f32  un-normalized blend (per-tile writeback)
    lse_ref,            # (TD, 1)  f32  log-sum-exp (written at last V tile)
    gate_ref,           # (TD, 1)  f32  copy gate (resident across the V axis)
    score_scr,          # (TD, S)  bf16 scratch
    m_scr,              # (TD, 1)  f32  scratch (online softmax max)
    l_scr,              # (TD, 1)  f32  scratch (online softmax sum)
):
    vt = pl.program_id(2)
    nv = pl.num_programs(2)
    tv = gen_w_ref.shape[1]
    s = top_ref.shape[0]

    hid = hid_ref[...]                                   # (TD, H) bf16

    # ---- V-independent work: once per row block --------------------------
    @pl.when(vt == 0)
    def _():
        score_b = scalars_ref[0]
        sigm_b = scalars_ref[1]
        hid_f = hid.astype(jnp.float32)
        top = top_ref[...]                                # (S, H) bf16
        top_f = top.astype(jnp.float32)

        # score[d, s] = w_hid . hid[d] + w_top . top[s] + b
        # rank-1 hid projection on the VPU (mul + cross-lane reduce)
        h_part = jnp.sum(hid_f * w_score_hid_ref[...], axis=-1,
                         keepdims=True)                   # (TD, 1)
        # tiny (1,H)x(S,H) projection; runs once per row block (cold path)
        t_part = lax.dot_general(
            w_score_top_ref[...], top_f,
            (((1,), (1,)), ((), ())),
            preferred_element_type=jnp.float32)           # (1, S)
        score = h_part + t_part + score_b                 # (TD, S)
        # masked_fill_(mask_src, -1e-08): mirrors the torch code exactly
        # (-1e-8 is essentially zero; padded positions are NOT strongly
        #  masked — faithful to the original module).
        score = jnp.where(src_ls_ref[...] == 0, jnp.float32(-1e-8), score)
        score_bf = score.astype(jnp.bfloat16)
        score_scr[...] = score_bf                         # bf16 cache

        # src_context = score @ top_vec ; fuse = copy_ff([hid ; ctx])
        src_ctx = jnp.dot(score_bf, top,
                          preferred_element_type=jnp.float32)      # (TD, H)
        fuse = (jnp.dot(hid, w_ff_hid_ref[...],
                        preferred_element_type=jnp.float32)
                + jnp.dot(src_ctx.astype(jnp.bfloat16), w_ff_ctx_ref[...],
                          preferred_element_type=jnp.float32)
                + b_ff_ref[...])                                   # (TD, H)
        # copy gate: rank-1 projection on the VPU, sigmoid on the EUP
        gate_logit = jnp.sum(fuse * w_sigm_ref[...], axis=-1,
                             keepdims=True) + sigm_b               # (TD, 1)
        gate_ref[...] = jax.nn.sigmoid(gate_logit)

        # online log-softmax state
        m_scr[...] = jnp.full(m_scr.shape, -jnp.inf, m_scr.dtype)
        l_scr[...] = jnp.zeros(l_scr.shape, l_scr.dtype)

    # ---- per-vocab-tile work ---------------------------------------------
    # gen_dis tile: the big MXU matmul, streamed weight tile.
    gen_tile = jnp.dot(hid, gen_w_ref[...],
                       preferred_element_type=jnp.float32) + gen_b_ref[...]

    # copy_dis tile via lane-dense (S, TV) one-hot and the MXU.
    # TODO(synk): torch scatter_ picks an arbitrary winner for duplicate src
    #             ids; the one-hot matmul SUMS them (identical for unique ids).
    iota = lax.broadcasted_iota(jnp.int32, (s, tv), 1) + vt * tv   # (S, TV)
    onehot = (iota == src_sl_ref[...]).astype(jnp.bfloat16)        # (S, TV)
    copy_tile = jnp.dot(score_scr[...], onehot,
                        preferred_element_type=jnp.float32)        # (TD, TV)

    gate = gate_ref[...]                                           # (TD, 1)
    # (1-g)*gen + g*copy  ==  gen + g*(copy - gen)  (one fewer VPU multiply)
    z = gen_tile + gate * (copy_tile - gen_tile)                   # (TD, TV)

    # online log-softmax state update
    m_old = m_scr[...]
    m_new = jnp.maximum(m_old, jnp.max(z, axis=-1, keepdims=True))
    l_scr[...] = (l_scr[...] * jnp.exp(m_old - m_new)
                  + jnp.sum(jnp.exp(z - m_new), axis=-1, keepdims=True))
    m_scr[...] = m_new

    z_ref[...] = z                        # lane-dense (TD, TV) tile writeback

    # ---- finalize at the last vocab tile ----------------------------------
    @pl.when(vt == nv - 1)
    def _():
        lse_ref[...] = m_scr[...] + jnp.log(l_scr[...])


# ----------------------------------------------------------------------------
# Wrappers
# ----------------------------------------------------------------------------
def generator_forward(params, hid_vec, src, top_vec, *, copy_mode,
                      single_buffer_invariants=True):
    B, D, H = hid_vec.shape
    S = src.shape[1]
    f32 = jnp.float32
    bf16 = jnp.bfloat16

    # TODO(synk): output could be emitted in bf16 to halve the B*D*V HBM
    #             writeback if downstream tolerates it; kept f32 here.

    if not copy_mode:
        V = params["voc_w"].shape[1]
        R = B * D                                   # flatten B*D rows
        tr = _pick_tile(R, 1024, (16, 8))
        if R // tr < 2 and tr >= 16 and tr % 2 == 0:
            tr //= 2                                # >= 2 parallel blocks (v7x)
        tv = _pick_tile(V, 2048, (256, 128))
        est = (2 * tr * H * 2 + 2 * H * tv * 2 + 2 * tv * 4
               + 2 * tr * tv * 4 + 16 * tr * 4)
        hid2 = hid_vec.reshape(R, H).astype(bf16)
        z2, lse2 = pl.pallas_call(
            _voc_gen_kernel,
            grid=(R // tr, V // tv),
            in_specs=[
                pl.BlockSpec((tr, H), lambda r, v: (r, 0)),
                pl.BlockSpec((H, tv), lambda r, v: (0, v)),
                pl.BlockSpec((1, tv), lambda r, v: (0, v)),
            ],
            out_specs=[
                pl.BlockSpec((tr, tv), lambda r, v: (r, v)),
                pl.BlockSpec((tr, 1), lambda r, v: (r, 0)),
            ],
            out_shape=[
                jax.ShapeDtypeStruct((R, V), f32),
                jax.ShapeDtypeStruct((R, 1), f32),
            ],
            scratch_shapes=[pltpu.VMEM((tr, 1), f32),
                            pltpu.VMEM((tr, 1), f32)],
            compiler_params=pltpu.CompilerParams(
                dimension_semantics=("parallel", "arbitrary"),
                vmem_limit_bytes=_vmem_limit(est)),
        )(hid2, params["voc_w"].astype(bf16), params["voc_b"].astype(f32))
        out2 = _apply_lse(z2, lse2)
        return out2.reshape(B, D, V), None

    V = params["gen_w"].shape[1]
    td = _pick_tile(D, 512, (16, 8))
    if B * (D // td) < 2 and td >= 16 and td % 2 == 0:
        td //= 2                                    # >= 2 parallel blocks (v7x)
    tv = _pick_tile(V, 2048, (256, 128))

    inv_spec = _invariant_spec if single_buffer_invariants else pl.BlockSpec

    est = (2 * td * H * 2 + 2 * S * H * 2 + 2 * H * tv * 2 + 2 * tv * 4
           + 2 * 2 * H * H * 2 + 8 * H * 4 + 2 * td * tv * 4
           + td * S * 2 + 16 * td * 4 + 2 * 2 * 8 * 128 * 4)

    scalars = jnp.stack([params["score_b"], params["sigm_b"]]).astype(f32)
    src_i = src.astype(jnp.int32)
    src_ls = src_i.reshape(B, 1, S)      # lane-major (for the score mask)
    src_sl = src_i.reshape(B, S, 1)      # sublane-major (for the one-hot)

    z, lse, gate = pl.pallas_call(
        _copy_gen_kernel,
        grid=(B, D // td, V // tv),
        in_specs=[
            pl.BlockSpec(memory_space=pltpu.MemorySpace.SMEM),       # scalars
            pl.BlockSpec((None, td, H), lambda b, d, v: (b, d, 0)),  # hid
            pl.BlockSpec((None, S, H), lambda b, d, v: (b, 0, 0)),   # top
            pl.BlockSpec((None, 1, S), lambda b, d, v: (b, 0, 0)),   # src (1,S)
            pl.BlockSpec((None, S, 1), lambda b, d, v: (b, 0, 0)),   # src (S,1)
            pl.BlockSpec((H, tv), lambda b, d, v: (0, v)),           # gen_w
            pl.BlockSpec((1, tv), lambda b, d, v: (0, v)),           # gen_b
            inv_spec((1, H), lambda b, d, v: (0, 0)),                # w_score_hid
            inv_spec((1, H), lambda b, d, v: (0, 0)),                # w_score_top
            inv_spec((H, H), lambda b, d, v: (0, 0)),                # w_ff_hid
            inv_spec((H, H), lambda b, d, v: (0, 0)),                # w_ff_ctx
            inv_spec((1, H), lambda b, d, v: (0, 0)),                # b_ff
            inv_spec((1, H), lambda b, d, v: (0, 0)),                # w_sigm
        ],
        out_specs=[
            pl.BlockSpec((None, td, tv), lambda b, d, v: (b, d, v)),  # z
            pl.BlockSpec((None, td, 1), lambda b, d, v: (b, d, 0)),   # lse
            pl.BlockSpec((None, td, 1), lambda b, d, v: (b, d, 0)),   # gate
        ],
        out_shape=[
            jax.ShapeDtypeStruct((B, D, V), f32),
            jax.ShapeDtypeStruct((B, D, 1), f32),
            jax.ShapeDtypeStruct((B, D, 1), f32),
        ],
        scratch_shapes=[
            pltpu.VMEM((td, S), bf16),    # score (bf16 cache)
            pltpu.VMEM((td, 1), f32),     # online softmax max
            pltpu.VMEM((td, 1), f32),     # online softmax sum
        ],
        compiler_params=pltpu.CompilerParams(
            dimension_semantics=("parallel", "parallel", "arbitrary"),
            vmem_limit_bytes=_vmem_limit(est)),
    )(
        scalars,
        hid_vec.astype(bf16),
        top_vec.astype(bf16),
        src_ls, src_sl,
        params["gen_w"].astype(bf16),
        params["gen_b"].astype(f32),
        params["w_score_hid"].reshape(1, H).astype(f32),
        params["w_score_top"].reshape(1, H).astype(f32),
        params["w_ff_hid"].astype(bf16),
        params["w_ff_ctx"].astype(bf16),
        params["b_ff"].astype(f32),
        params["w_sigm"].reshape(1, H).astype(f32),
    )

    out = _apply_lse(z.reshape(B * D, V), lse.reshape(B * D, 1))
    return out.reshape(B, D, V), gate


def reference_forward(params, hid_vec, src, top_vec, *, copy_mode):
    """Pure-JAX (f32) mirror of the torch forward, for verification."""
    if not copy_mode:
        logits = hid_vec @ params["voc_w"] + params["voc_b"][0]
        return jax.nn.log_softmax(logits, axis=-1), None

    V = params["gen_w"].shape[1]
    mask_src = src == 0                                              # (B, S)
    gen_dis = hid_vec @ params["gen_w"] + params["gen_b"][0]         # (B, D, V)
    score = hid_vec @ params["w_score_hid"]                          # (B, D, 1)
    score = score + jnp.swapaxes(top_vec @ params["w_score_top"].T, 1, 2)
    score = score + params["score_b"]
    score = jnp.where(mask_src[:, None, :], jnp.float32(-1e-8), score)
    onehot = jax.nn.one_hot(src, V, dtype=jnp.float32)               # (B, S, V)
    copy_dis = jnp.einsum("bds,bsv->bdv", score, onehot)
    src_context = jnp.einsum("bds,bsh->bdh", score, top_vec)
    fuse = (hid_vec @ params["w_ff_hid"] + src_context @ params["w_ff_ctx"]
            + params["b_ff"][0])
    gate = jax.nn.sigmoid(fuse @ params["w_sigm"] + params["sigm_b"])
    out = (1.0 - gate) * gen_dis + gate * copy_dis
    return jax.nn.log_softmax(out, axis=-1), gate


def init_params(key, vocab_size, hidden):
    ks = jax.random.split(key, 12)
    s = 0.05
    f = jnp.float32
    return {
        # voc_gen (copy=False path)
        "voc_w": jax.random.normal(ks[0], (hidden, vocab_size), f) * s,
        "voc_b": jax.random.normal(ks[1], (1, vocab_size), f) * s,
        # gen_linear
        "gen_w": jax.random.normal(ks[2], (hidden, vocab_size), f) * s,
        "gen_b": jax.random.normal(ks[3], (1, vocab_size), f) * s,
        # linear_score : Linear(2H, 1) split into hid / top halves
        "w_score_hid": jax.random.normal(ks[4], (hidden, 1), f) * s,
        "w_score_top": jax.random.normal(ks[5], (1, hidden), f) * s,
        "score_b": (jax.random.normal(ks[6], (), f) * s),
        # copy_ff : Linear(2H, H) split into hid / context halves
        "w_ff_hid": jax.random.normal(ks[7], (hidden, hidden), f) * s,
        "w_ff_ctx": jax.random.normal(ks[8], (hidden, hidden), f) * s,
        "b_ff": jax.random.normal(ks[9], (1, hidden), f) * s,
        # sigm_ff : Linear(H, 1)
        "w_sigm": jax.random.normal(ks[10], (hidden, 1), f) * s,
        "sigm_b": (jax.random.normal(ks[11], (), f) * s),
    }


if __name__ == "__main__":
    B, D, S, H, V = 2, 8, 8, 32, 128   # batch, dec len, src len, hidden, vocab

    key = jax.random.PRNGKey(0)
    k_param, k_hid, k_top, k_src = jax.random.split(key, 4)

    params = init_params(k_param, V, H)
    hid_vec = jax.random.normal(k_hid, (B, D, H), jnp.float32)
    top_vec = jax.random.normal(k_top, (B, S, H), jnp.float32)

    # source token ids: unique per row (torch scatter_ tie-breaking is
    # undefined for duplicates); last position set to 0 (pad) to exercise
    # the mask_src path.
    src_rows = []
    for b in range(B):
        perm = jax.random.permutation(
            jax.random.fold_in(k_src, b), jnp.arange(1, V, dtype=jnp.int32)
        )[:S]
        perm = perm.at[-1].set(0)
        src_rows.append(perm)
    src = jnp.stack(src_rows)  # (B, S) int32

    fwd = jax.jit(generator_forward,
                  static_argnames=("copy_mode", "single_buffer_invariants"))

    def run(copy_mode):
        try:
            res = fwd(params, hid_vec, src, top_vec, copy_mode=copy_mode,
                      single_buffer_invariants=True)
            return jax.block_until_ready(res)
        except Exception:
            # Fallback if single-buffered (pl.Buffered(1)) specs are not
            # supported by this jax/libtpu build.
            res = fwd(params, hid_vec, src, top_vec, copy_mode=copy_mode,
                      single_buffer_invariants=False)
            return jax.block_until_ready(res)

    # copy = True path
    out_c, gate_c = run(True)
    ref_c, ref_gate = reference_forward(params, hid_vec, src, top_vec,
                                        copy_mode=True)
    np.testing.assert_allclose(np.asarray(out_c), np.asarray(ref_c),
                               rtol=2e-2, atol=2e-2)
    np.testing.assert_allclose(np.asarray(gate_c), np.asarray(ref_gate),
                               rtol=2e-2, atol=2e-2)

    # copy = False path
    out_nc, gate_nc = run(False)
    assert gate_nc is None
    ref_nc, _ = reference_forward(params, hid_vec, src, top_vec,
                                  copy_mode=False)
    np.testing.assert_allclose(np.asarray(out_nc), np.asarray(ref_nc),
                               rtol=2e-2, atol=2e-2)

    print("KERNEL_OK")
</pallas_src>

<mosaic_0001>
module attributes {stable_mosaic.version = 11 : i64} {
  func.func @_lse_sub_kernel(%arg0: i32, %arg1: i32, %arg2: memref<16x128xf32, #tpu.memory_space<vmem>>, %arg3: memref<16x1xf32, #tpu.memory_space<vmem>>, %arg4: memref<16x128xf32, #tpu.memory_space<vmem>>) attributes {dimension_semantics = [#tpu.dimension_semantics<parallel>, #tpu.dimension_semantics<parallel>], iteration_bounds = array<i64: 1, 1>, scalar_prefetch = 0 : i64, scratch_operands = 0 : i64, tpu.core_type = #tpu.core_type<tc>, window_params = [{transform_indices = @transform_0, window_bounds = array<i64: 16, 128>}, {transform_indices = @transform_1, window_bounds = array<i64: 16, 1>}, {transform_indices = @transform_2, window_bounds = array<i64: 16, 128>}]} {
    %c0 = arith.constant 0 : index
    %c0_0 = arith.constant 0 : index
    %0 = vector.load %arg2[%c0, %c0_0] : memref<16x128xf32, #tpu.memory_space<vmem>>, vector<16x128xf32>
    %c0_1 = arith.constant 0 : index
    %c0_2 = arith.constant 0 : index
    %1 = vector.load %arg3[%c0_1, %c0_2] : memref<16x1xf32, #tpu.memory_space<vmem>>, vector<16x1xf32>
    %2 = vector.broadcast %1 : vector<16x1xf32> to vector<16x128xf32>
    %3 = arith.subf %0, %2 : vector<16x128xf32>
    %c0_3 = arith.constant 0 : index
    %c0_4 = arith.constant 0 : index
    %4 = vector.load %arg4[%c0_3, %c0_4] : memref<16x128xf32, #tpu.memory_space<vmem>>, vector<16x128xf32>
    tpu.vector_store %arg4[%c0_3, %c0_4], %3 {strides = array<i32>} : memref<16x128xf32, #tpu.memory_space<vmem>>, vector<16x128xf32>,
    return
  }
  func.func @transform_0(%arg0: i32, %arg1: i32) -> (i32, i32) {
    %c0_i32 = arith.constant 0 : i32
    return %arg0, %arg1 : i32, i32
  }
  func.func @transform_1(%arg0: i32, %arg1: i32) -> (i32, i32) {
    %c0_i32 = arith.constant 0 : i32
    %c0_i32_0 = arith.constant 0 : i32
    return %arg0, %c0_i32 : i32, i32
  }
  func.func @transform_2(%arg0: i32, %arg1: i32) -> (i32, i32) {
    %c0_i32 = arith.constant 0 : i32
    return %arg0, %arg1 : i32, i32
  }
}

module attributes {stable_mosaic.version = 11 : i64} {
  func.func @_copy_gen_kernel(%arg0: i32, %arg1: i32, %arg2: i32, %arg3: memref<2xf32, #tpu.memory_space<smem>>, %arg4: memref<1x8x32xbf16, #tpu.memory_space<vmem>>, %arg5: memref<1x8x32xbf16, #tpu.memory_space<vmem>>, %arg6: memref<1x1x8xi32, #tpu.memory_space<vmem>>, %arg7: memref<1x8x1xi32, #tpu.memory_space<vmem>>, %arg8: memref<32x128xbf16, #tpu.memory_space<vmem>>, %arg9: memref<1x128xf32, #tpu.memory_space<vmem>>, %arg10: memref<1x32xf32, #tpu.memory_space<vmem>>, %arg11: memref<1x32xf32, #tpu.memory_space<vmem>>, %arg12: memref<32x32xbf16, #tpu.memory_space<vmem>>, %arg13: memref<32x32xbf16, #tpu.memory_space<vmem>>, %arg14: memref<1x32xf32, #tpu.memory_space<vmem>>, %arg15: memref<1x32xf32, #tpu.memory_space<vmem>>, %arg16: memref<1x8x128xf32, #tpu.memory_space<vmem>>, %arg17: memref<1x8x1xf32, #tpu.memory_space<vmem>>, %arg18: memref<1x8x1xf32, #tpu.memory_space<vmem>>, %arg19: memref<8x8xbf16, #tpu.memory_space<vmem>>, %arg20: memref<8x1xf32, #tpu.memory_space<vmem>>, %arg21: memref<8x1xf32, #tpu.memory_space<vmem>>) attributes {dimension_semantics = [#tpu.dimension_semantics<parallel>, #tpu.dimension_semantics<parallel>, #tpu.dimension_semantics<arbitrary>], iteration_bounds = array<i64: 2, 1, 1>, scalar_prefetch = 0 : i64, scratch_operands = 3 : i64, tpu.core_type = #tpu.core_type<tc>, window_params = [{transform_indices = @transform_0, window_bounds = array<i64: 2>}, {transform_indices = @transform_1, window_bounds = array<i64: 1, 8, 32>}, {transform_indices = @transform_2, window_bounds = array<i64: 1, 8, 32>}, {transform_indices = @transform_3, window_bounds = array<i64: 1, 1, 8>}, {transform_indices = @transform_4, window_bounds = array<i64: 1, 8, 1>}, {transform_indices = @transform_5, window_bounds = array<i64: 32, 128>}, {transform_indices = @transform_6, window_bounds = array<i64: 1, 128>}, {pipeline_mode = #tpu.pipeline_mode<synchronous>, transform_indices = @transform_7, window_bounds = array<i64: 1, 32>}, {pipeline_mode = #tpu.pipeline_mode<synchronous>, transform_indices = @transform_8, window_bounds = array<i64: 1, 32>}, {pipeline_mode = #tpu.pipeline_mode<synchronous>, transform_indices = @transform_9, window_bounds = array<i64: 32, 32>}, {pipeline_mode = #tpu.pipeline_mode<synchronous>, transform_indices = @transform_10, window_bounds = array<i64: 32, 32>}, {pipeline_mode = #tpu.pipeline_mode<synchronous>, transform_indices = @transform_11, window_bounds = array<i64: 1, 32>}, {pipeline_mode = #tpu.pipeline_mode<synchronous>, transform_indices = @transform_12, window_bounds = array<i64: 1, 32>}, {transform_indices = @transform_13, window_bounds = array<i64: 1, 8, 128>}, {transform_indices = @transform_14, window_bounds = array<i64: 1, 8, 1>}, {transform_indices = @transform_15, window_bounds = array<i64: 1, 8, 1>}]} {
    %c0 = arith.constant 0 : index
    %c0_0 = arith.constant 0 : index
    %c0_1 = arith.constant 0 : index
    %0 = vector.load %arg4[%c0, %c0_0, %c0_1] : memref<1x8x32xbf16, #tpu.memory_space<vmem>>, vector<1x8x32xbf16>
    %1 = vector.shape_cast %0 : vector<1x8x32xbf16> to vector<8x32xbf16>
    %c0_i32 = arith.constant 0 : i32
    %2 = arith.cmpi eq, %arg2, %c0_i32 : i32
    %3 = arith.extui %2 : i1 to i32
    %c0_i32_2 = arith.constant 0 : i32
    %4 = arith.cmpi ne, %3, %c0_i32_2 : i32
    scf.if %4 {
      %c0_31 = arith.constant 0 : index
      %51 = memref.load %arg3[%c0_31] : memref<2xf32, #tpu.memory_space<smem>>
      %c1 = arith.constant 1 : index
      %52 = memref.load %arg3[%c1] : memref<2xf32, #tpu.memory_space<smem>>
      %53 = arith.extf %1 : vector<8x32xbf16> to vector<8x32xf32>
      %c0_32 = arith.constant 0 : index
      %c0_33 = arith.constant 0 : index
      %c0_34 = arith.constant 0 : index
      %54 = vector.load %arg5[%c0_32, %c0_33, %c0_34] : memref<1x8x32xbf16, #tpu.memory_space<vmem>>, vector<1x8x32xbf16>
      %55 = vector.shape_cast %54 : vector<1x8x32xbf16> to vector<8x32xbf16>
      %56 = arith.extf %55 : vector<8x32xbf16> to vector<8x32xf32>
      %c0_35 = arith.constant 0 : index
      %c0_36 = arith.constant 0 : index
      %57 = vector.load %arg10[%c0_35, %c0_36] : memref<1x32xf32, #tpu.memory_space<vmem>>, vector<1x32xf32>
      %58 = vector.broadcast %57 : vector<1x32xf32> to vector<8x32xf32>
      %59 = arith.mulf %53, %58 : vector<8x32xf32>
      %cst_37 = arith.constant dense<0.000000e+00> : vector<8xf32>
      %60 = vector.multi_reduction <add>, %59, %cst_37 [1] : vector<8x32xf32> to vector<8xf32>
      %61 = vector.shape_cast %60 : vector<8xf32> to vector<8x1xf32>
      %c0_38 = arith.constant 0 : index
      %c0_39 = arith.constant 0 : index
      %62 = vector.load %arg11[%c0_38, %c0_39] : memref<1x32xf32, #tpu.memory_space<vmem>>, vector<1x32xf32>
      %cst_40 = arith.constant dense<0.000000e+00> : vector<1x8xf32>
      %63 = tpu.matmul %62, %56, %cst_40 {dimension_numbers = #tpu.dot_dimension_numbers<[1], [1], [0], [0], [0, 0, 1, 0], [], []>} : vector<1x32xf32>, vector<8x32xf32>, vector<1x8xf32> -> vector<1x8xf32>
      %64 = vector.broadcast %61 : vector<8x1xf32> to vector<8x8xf32>
      %65 = vector.broadcast %63 : vector<1x8xf32> to vector<8x8xf32>
      %66 = arith.addf %64, %65 : vector<8x8xf32>
      %67 = vector.broadcast %51 : f32 to vector<8x8xf32>
      %68 = arith.addf %66, %67 : vector<8x8xf32>
      %c0_41 = arith.constant 0 : index
      %c0_42 = arith.constant 0 : index
      %c0_43 = arith.constant 0 : index
      %69 = vector.load %arg6[%c0_41, %c0_42, %c0_43] : memref<1x1x8xi32, #tpu.memory_space<vmem>>, vector<1x1x8xi32>
      %70 = vector.shape_cast %69 : vector<1x1x8xi32> to vector<1x8xi32>
      %c0_i32_44 = arith.constant 0 : i32
      %71 = vector.broadcast %c0_i32_44 : i32 to vector<1x8xi32>
      %72 = arith.cmpi eq, %70, %71 : vector<1x8xi32>
      %cst_45 = arith.constant -9.99999993E-9 : f32
      %73 = vector.shape_cast %72 : vector<1x8xi1> to vector<1x8xi1>
      %74 = vector.broadcast %73 : vector<1x8xi1> to vector<8x8xi1>
      %75 = vector.broadcast %cst_45 : f32 to vector<8x8xf32>
      %76 = arith.select %74, %75, %68 : vector<8x8xi1>, vector<8x8xf32>
      %77 = arith.truncf %76 : vector<8x8xf32> to vector<8x8xbf16>
      %c0_46 = arith.constant 0 : index
      %c0_47 = arith.constant 0 : index
      %78 = vector.load %arg19[%c0_46, %c0_47] : memref<8x8xbf16, #tpu.memory_space<vmem>>, vector<8x8xbf16>
      tpu.vector_store %arg19[%c0_46, %c0_47], %77 {strides = array<i32>} : memref<8x8xbf16, #tpu.memory_space<vmem>>, vector<8x8xbf16>,
      %cst_48 = arith.constant dense<0.000000e+00> : vector<8x32xf32>
      %79 = tpu.matmul %77, %55, %cst_48 {dimension_numbers = #tpu.dot_dimension_numbers<[1], [0], [0], [1], [0, 0, 1, 1], [], []>} : vector<8x8xbf16>, vector<8x32xbf16>, vector<8x32xf32> -> vector<8x32xf32>
      %c0_49 = arith.constant 0 : index
      %c0_50 = arith.constant 0 : index
      %80 = vector.load %arg12[%c0_49, %c0_50] : memref<32x32xbf16, #tpu.memory_space<vmem>>, vector<32x32xbf16>
      %cst_51 = arith.constant dense<0.000000e+00> : vector<8x32xf32>
      %81 = tpu.matmul %1, %80, %cst_51 {dimension_numbers = #tpu.dot_dimension_numbers<[1], [0], [0], [1], [0, 0, 1, 1], [], []>} : vector<8x32xbf16>, vector<32x32xbf16>, vector<8x32xf32> -> vector<8x32xf32>
      %82 = arith.truncf %79 : vector<8x32xf32> to vector<8x32xbf16>
      %c0_52 = arith.constant 0 : index
      %c0_53 = arith.constant 0 : index
      %83 = vector.load %arg13[%c0_52, %c0_53] : memref<32x32xbf16, #tpu.memory_space<vmem>>, vector<32x32xbf16>
      %cst_54 = arith.constant dense<0.000000e+00> : vector<8x32xf32>
      %84 = tpu.matmul %82, %83, %cst_54 {dimension_numbers = #tpu.dot_dimension_numbers<[1], [0], [0], [1], [0, 0, 1, 1], [], []>} : vector<8x32xbf16>, vector<32x32xbf16>, vector<8x32xf32> -> vector<8x32xf32>
      %85 = arith.addf %81, %84 : vector<8x32xf32>
      %c0_55 = arith.constant 0 : index
      %c0_56 = arith.constant 0 : index
      %86 = vector.load %arg14[%c0_55, %c0_56] : memref<1x32xf32, #tpu.memory_space<vmem>>, vector<1x32xf32>
      %87 = vector.broadcast %86 : vector<1x32xf32> to vector<8x32xf32>
      %88 = arith.addf %85, %87 : vector<8x32xf32>
      %c0_57 = arith.constant 0 : index
      %c0_58 = arith.constant 0 : index
      %89 = vector.load %arg15[%c0_57, %c0_58] : memref<1x32xf32, #tpu.memory_space<vmem>>, vector<1x32xf32>
      %90 = vector.broadcast %89 : vector<1x32xf32> to vector<8x32xf32>
      %91 = arith.mulf %88, %90 : vector<8x32xf32>
      %cst_59 = arith.constant dense<0.000000e+00> : vector<8xf32>
      %92 = vector.multi_reduction <add>, %91, %cst_59 [1] : vector<8x32xf32> to vector<8xf32>
      %93 = vector.shape_cast %92 : vector<8xf32> to vector<8x1xf32>
      %94 = vector.broadcast %52 : f32 to vector<8x1xf32>
      %95 = arith.addf %93, %94 : vector<8x1xf32>
      %96 = arith.negf %95 : vector<8x1xf32>
      %97 = math.exp %96 : vector<8x1xf32>
      %cst_60 = arith.constant 1.000000e+00 : f32
      %98 = vector.broadcast %cst_60 : f32 to vector<8x1xf32>
      %99 = arith.addf %98, %97 : vector<8x1xf32>
      %100 = arith.divf %98, %99 : vector<8x1xf32>
      %c0_61 = arith.constant 0 : index
      %c0_62 = arith.constant 0 : index
      %c0_63 = arith.constant 0 : index
      %101 = vector.load %arg18[%c0_61, %c0_62, %c0_63] : memref<1x8x1xf32, #tpu.memory_space<vmem>>, vector<1x8x1xf32>
      %102 = vector.shape_cast %101 : vector<1x8x1xf32> to vector<8x1xf32>
      %103 = vector.shape_cast %100 : vector<8x1xf32> to vector<1x8x1xf32>
      tpu.vector_store %arg18[%c0_61, %c0_62, %c0_63], %103 {strides = array<i32>} : memref<1x8x1xf32, #tpu.memory_space<vmem>>, vector<1x8x1xf32>,
      %cst_64 = arith.constant 0xFF800000 : f32
      %104 = vector.broadcast %cst_64 : f32 to vector<8x1xf32>
      %c0_65 = arith.constant 0 : index
      %c0_66 = arith.constant 0 : index
      %105 = vector.load %arg20[%c0_65, %c0_66] : memref<8x1xf32, #tpu.memory_space<vmem>>, vector<8x1xf32>
      tpu.vector_store %arg20[%c0_65, %c0_66], %104 {strides = array<i32>} : memref<8x1xf32, #tpu.memory_space<vmem>>, vector<8x1xf32>,
      %cst_67 = arith.constant 0.000000e+00 : f32
      %106 = vector.broadcast %cst_67 : f32 to vector<8x1xf32>
      %c0_68 = arith.constant 0 : index
      %c0_69 = arith.constant 0 : index
      %107 = vector.load %arg21[%c0_68, %c0_69] : memref<8x1xf32, #tpu.memory_space<vmem>>, vector<8x1xf32>
      tpu.vector_store %arg21[%c0_68, %c0_69], %106 {strides = array<i32>} : memref<8x1xf32, #tpu.memory_space<vmem>>, vector<8x1xf32>,
    } else {
    }
    %c0_3 = arith.constant 0 : index
    %c0_4 = arith.constant 0 : index
    %5 = vector.load %arg8[%c0_3, %c0_4] : memref<32x128xbf16, #tpu.memory_space<vmem>>, vector<32x128xbf16>
    %cst = arith.constant dense<0.000000e+00> : vector<8x128xf32>
    %6 = tpu.matmul %1, %5, %cst {dimension_numbers = #tpu.dot_dimension_numbers<[1], [0], [0], [1], [0, 0, 1, 1], [], []>} : vector<8x32xbf16>, vector<32x128xbf16>, vector<8x128xf32> -> vector<8x128xf32>
    %c0_5 = arith.constant 0 : index
    %c0_6 = arith.constant 0 : index
    %7 = vector.load %arg9[%c0_5, %c0_6] : memref<1x128xf32, #tpu.memory_space<vmem>>, vector<1x128xf32>
    %8 = vector.broadcast %7 : vector<1x128xf32> to vector<8x128xf32>
    %9 = arith.addf %6, %8 : vector<8x128xf32>
    %10 = tpu.iota {dimensions = array<i32: 1>} : vector<8x128xi32>
    %c128_i32 = arith.constant 128 : i32
    %11 = arith.muli %arg2, %c128_i32 : i32
    %12 = vector.broadcast %11 : i32 to vector<8x128xi32>
    %13 = arith.addi %10, %12 : vector<8x128xi32>
    %c0_7 = arith.constant 0 : index
    %c0_8 = arith.constant 0 : index
    %c0_9 = arith.constant 0 : index
    %14 = vector.load %arg7[%c0_7, %c0_8, %c0_9] : memref<1x8x1xi32, #tpu.memory_space<vmem>>, vector<1x8x1xi32>
    %15 = vector.shape_cast %14 : vector<1x8x1xi32> to vector<8x1xi32>
    %16 = vector.broadcast %15 : vector<8x1xi32> to vector<8x128xi32>
    %17 = arith.cmpi eq, %13, %16 : vector<8x128xi32>
    %18 = arith.extui %17 : vector<8x128xi1> to vector<8x128xi32>
    %19 = arith.sitofp %18 : vector<8x128xi32> to vector<8x128xf32>
    %20 = arith.truncf %19 : vector<8x128xf32> to vector<8x128xbf16>
    %c0_10 = arith.constant 0 : index
    %c0_11 = arith.constant 0 : index
    %21 = vector.load %arg19[%c0_10, %c0_11] : memref<8x8xbf16, #tpu.memory_space<vmem>>, vector<8x8xbf16>
    %cst_12 = arith.constant dense<0.000000e+00> : vector<8x128xf32>
    %22 = tpu.matmul %21, %20, %cst_12 {dimension_numbers = #tpu.dot_dimension_numbers<[1], [0], [0], [1], [0, 0, 1, 1], [], []>} : vector<8x8xbf16>, vector<8x128xbf16>, vector<8x128xf32> -> vector<8x128xf32>
    %c0_13 = arith.constant 0 : index
    %c0_14 = arith.constant 0 : index
    %c0_15 = arith.constant 0 : index
    %23 = vector.load %arg18[%c0_13, %c0_14, %c0_15] : memref<1x8x1xf32, #tpu.memory_space<vmem>>, vector<1x8x1xf32>
    %24 = vector.shape_cast %23 : vector<1x8x1xf32> to vector<8x1xf32>
    %25 = arith.subf %22, %9 : vector<8x128xf32>
    %26 = vector.broadcast %24 : vector<8x1xf32> to vector<8x128xf32>
    %27 = arith.mulf %26, %25 : vector<8x128xf32>
    %28 = arith.addf %9, %27 : vector<8x128xf32>
    %c0_16 = arith.constant 0 : index
    %c0_17 = arith.constant 0 : index
    %29 = vector.load %arg20[%c0_16, %c0_17] : memref<8x1xf32, #tpu.memory_space<vmem>>, vector<8x1xf32>
    %cst_18 = arith.constant dense<0xFF800000> : vector<8xf32>
    %30 = vector.multi_reduction <maximumf>, %28, %cst_18 [1] : vector<8x128xf32> to vector<8xf32>
    %31 = vector.shape_cast %30 : vector<8xf32> to vector<8x1xf32>
    %32 = arith.maximumf %29, %31 : vector<8x1xf32>
    %c0_19 = arith.constant 0 : index
    %c0_20 = arith.constant 0 : index
    %33 = vector.load %arg21[%c0_19, %c0_20] : memref<8x1xf32, #tpu.memory_space<vmem>>, vector<8x1xf32>
    %34 = arith.subf %29, %32 : vector<8x1xf32>
    %35 = math.exp %34 : vector<8x1xf32>
    %36 = arith.mulf %33, %35 : vector<8x1xf32>
    %37 = vector.broadcast %32 : vector<8x1xf32> to vector<8x128xf32>
    %38 = arith.subf %28, %37 : vector<8x128xf32>
    %39 = math.exp %38 : vector<8x128xf32>
    %cst_21 = arith.constant dense<0.000000e+00> : vector<8xf32>
    %40 = vector.multi_reduction <add>, %39, %cst_21 [1] : vector<8x128xf32> to vector<8xf32>
    %41 = vector.shape_cast %40 : vector<8xf32> to vector<8x1xf32>
    %42 = arith.addf %36, %41 : vector<8x1xf32>
    %c0_22 = arith.constant 0 : index
    %c0_23 = arith.constant 0 : index
    %43 = vector.load %arg21[%c0_22, %c0_23] : memref<8x1xf32, #tpu.memory_space<vmem>>, vector<8x1xf32>
    tpu.vector_store %arg21[%c0_22, %c0_23], %42 {strides = array<i32>} : memref<8x1xf32, #tpu.memory_space<vmem>>, vector<8x1xf32>,
    %c0_24 = arith.constant 0 : index
    %c0_25 = arith.constant 0 : index
    %44 = vector.load %arg20[%c0_24, %c0_25] : memref<8x1xf32, #tpu.memory_space<vmem>>, vector<8x1xf32>
    tpu.vector_store %arg20[%c0_24, %c0_25], %32 {strides = array<i32>} : memref<8x1xf32, #tpu.memory_space<vmem>>, vector<8x1xf32>,
    %c0_26 = arith.constant 0 : index
    %c0_27 = arith.constant 0 : index
    %c0_28 = arith.constant 0 : index
    %45 = vector.load %arg16[%c0_26, %c0_27, %c0_28] : memref<1x8x128xf32, #tpu.memory_space<vmem>>, vector<1x8x128xf32>
    %46 = vector.shape_cast %45 : vector<1x8x128xf32> to vector<8x128xf32>
    %47 = vector.shape_cast %28 : vector<8x128xf32> to vector<1x8x128xf32>
    tpu.vector_store %arg16[%c0_26, %c0_27, %c0_28], %47 {strides = array<i32>} : memref<1x8x128xf32, #tpu.memory_space<vmem>>, vector<1x8x128xf32>,
    %c0_i32_29 = arith.constant 0 : i32
    %48 = arith.cmpi eq, %arg2, %c0_i32_29 : i32
    %49 = arith.extui %48 : i1 to i32
    %c0_i32_30 = arith.constant 0 : i32
    %50 = arith.cmpi ne, %49, %c0_i32_30 : i32
    scf.if %50 {
      %c0_31 = arith.constant 0 : index
      %c0_32 = arith.constant 0 : index
      %51 = vector.load %arg20[%c0_31, %c0_32] : memref<8x1xf32, #tpu.memory_space<vmem>>, vector<8x1xf32>
      %c0_33 = arith.constant 0 : index
      %c0_34 = arith.constant 0 : index
      %52 = vector.load %arg21[%c0_33, %c0_34] : memref<8x1xf32, #tpu.memory_space<vmem>>, vector<8x1xf32>
      %53 = math.log %52 : vector<8x1xf32>
      %54 = arith.addf %51, %53 : vector<8x1xf32>
      %c0_35 = arith.constant 0 : index
      %c0_36 = arith.constant 0 : index
      %c0_37 = arith.constant 0 : index
      %55 = vector.load %arg17[%c0_35, %c0_36, %c0_37] : memref<1x8x1xf32, #tpu.memory_space<vmem>>, vector<1x8x1xf32>
      %56 = vector.shape_cast %55 : vector<1x8x1xf32> to vector<8x1xf32>
      %57 = vector.shape_cast %54 : vector<8x1xf32> to vector<1x8x1xf32>
      tpu.vector_store %arg17[%c0_35, %c0_36, %c0_37], %57 {strides = array<i32>} : memref<1x8x1xf32, #tpu.memory_space<vmem>>, vector<1x8x1xf32>,
    } else {
    }
    return
  }
  func.func @transform_0(%arg0: i32, %arg1: i32, %arg2: i32) -> i32 {
    %c0_i32 = arith.constant 0 : i32
    %c0_i32_0 = arith.constant 0 : i32
    return %c0_i32 : i32
  }
  func.func @transform_1(%arg0: i32, %arg1: i32, %arg2: i32) -> (i32, i32, i32) {
    %c0_i32 = arith.constant 0 : i32
    %c0_i32_0 = arith.constant 0 : i32
    return %arg0, %arg1, %c0_i32 : i32, i32, i32
  }
  func.func @transform_2(%arg0: i32, %arg1: i32, %arg2: i32) -> (i32, i32, i32) {
    %c0_i32 = arith.constant 0 : i32
    %c0_i32_0 = arith.constant 0 : i32
    %c0_i32_1 = arith.constant 0 : i32
    return %arg0, %c0_i32, %c0_i32_0 : i32, i32, i32
  }
  func.func @transform_3(%arg0: i32, %arg1: i32, %arg2: i32) -> (i32, i32, i32) {
    %c0_i32 = arith.constant 0 : i32
    %c0_i32_0 = arith.constant 0 : i32
    %c0_i32_1 = arith.constant 0 : i32
    return %arg0, %c0_i32, %c0_i32_0 : i32, i32, i32
  }
  func.func @transform_4(%arg0: i32, %arg1: i32, %arg2: i32) -> (i32, i32, i32) {
    %c0_i32 = arith.constant 0 : i32
    %c0_i32_0 = arith.constant 0 : i32
    %c0_i32_1 = arith.constant 0 : i32
    return %arg0, %c0_i32, %c0_i32_0 : i32, i32, i32
  }
  func.func @transform_5(%arg0: i32, %arg1: i32, %arg2: i32) -> (i32, i32) {
    %c0_i32 = arith.constant 0 : i32
    %c0_i32_0 = arith.constant 0 : i32
    return %c0_i32, %arg2 : i32, i32
  }
  func.func @transform_6(%arg0: i32, %arg1: i32, %arg2: i32) -> (i32, i32) {
    %c0_i32 = arith.constant 0 : i32
    %c0_i32_0 = arith.constant 0 : i32
    return %c0_i32, %arg2 : i32, i32
  }
  func.func @transform_7(%arg0: i32, %arg1: i32, %arg2: i32) -> (i32, i32) {
    %c0_i32 = arith.constant 0 : i32
    %c0_i32_0 = arith.constant 0 : i32
    %c0_i32_1 = arith.constant 0 : i32
    return %c0_i32, %c0_i32_0 : i32, i32
  }
  func.func @transform_8(%arg0: i32, %arg1: i32, %arg2: i32) -> (i32, i32) {
    %c0_i32 = arith.constant 0 : i32
    %c0_i32_0 = arith.constant 0 : i32
    %c0_i32_1 = arith.constant 0 : i32
    return %c0_i32, %c0_i32_0 : i32, i32
  }
  func.func @transform_9(%arg0: i32, %arg1: i32, %arg2: i32) -> (i32, i32) {
    %c0_i32 = arith.constant 0 : i32
    %c0_i32_0 = arith.constant 0 : i32
    %c0_i32_1 = arith.constant 0 : i32
    return %c0_i32, %c0_i32_0 : i32, i32
  }
  func.func @transform_10(%arg0: i32, %arg1: i32, %arg2: i32) -> (i32, i32) {
    %c0_i32 = arith.constant 0 : i32
    %c0_i32_0 = arith.constant 0 : i32
    %c0_i32_1 = arith.constant 0 : i32
    return %c0_i32, %c0_i32_0 : i32, i32
  }
  func.func @transform_11(%arg0: i32, %arg1: i32, %arg2: i32) -> (i32, i32) {
    %c0_i32 = arith.constant 0 : i32
    %c0_i32_0 = arith.constant 0 : i32
    %c0_i32_1 = arith.constant 0 : i32
    return %c0_i32, %c0_i32_0 : i32, i32
  }
  func.func @transform_12(%arg0: i32, %arg1: i32, %arg2: i32) -> (i32, i32) {
    %c0_i32 = arith.constant 0 : i32
    %c0_i32_0 = arith.constant 0 : i32
    %c0_i32_1 = arith.constant 0 : i32
    return %c0_i32, %c0_i32_0 : i32, i32
  }
  func.func @transform_13(%arg0: i32, %arg1: i32, %arg2: i32) -> (i32, i32, i32) {
    %c0_i32 = arith.constant 0 : i32
    return %arg0, %arg1, %arg2 : i32, i32, i32
  }
  func.func @transform_14(%arg0: i32, %arg1: i32, %arg2: i32) -> (i32, i32, i32) {
    %c0_i32 = arith.constant 0 : i32
    %c0_i32_0 = arith.constant 0 : i32
    return %arg0, %arg1, %c0_i32 : i32, i32, i32
  }
  func.func @transform_15(%arg0: i32, %arg1: i32, %arg2: i32) -> (i32, i32, i32) {
    %c0_i32 = arith.constant 0 : i32
    %c0_i32_0 = arith.constant 0 : i32
    return %arg0, %arg1, %c0_i32 : i32, i32, i32
  }
}

module attributes {stable_mosaic.version = 11 : i64} {
  func.func @_lse_sub_kernel(%arg0: i32, %arg1: i32, %arg2: memref<16x128xf32, #tpu.memory_space<vmem>>, %arg3: memref<16x1xf32, #tpu.memory_space<vmem>>, %arg4: memref<16x128xf32, #tpu.memory_space<vmem>>) attributes {dimension_semantics = [#tpu.dimension_semantics<parallel>, #tpu.dimension_semantics<parallel>], iteration_bounds = array<i64: 1, 1>, scalar_prefetch = 0 : i64, scratch_operands = 0 : i64, tpu.core_type = #tpu.core_type<tc>, window_params = [{transform_indices = @transform_0, window_bounds = array<i64: 16, 128>}, {transform_indices = @transform_1, window_bounds = array<i64: 16, 1>}, {transform_indices = @transform_2, window_bounds = array<i64: 16, 128>}]} {
    %c0 = arith.constant 0 : index
    %c0_0 = arith.constant 0 : index
    %0 = vector.load %arg2[%c0, %c0_0] : memref<16x128xf32, #tpu.memory_space<vmem>>, vector<16x128xf32>
    %c0_1 = arith.constant 0 : index
    %c0_2 = arith.constant 0 : index
    %1 = vector.load %arg3[%c0_1, %c0_2] : memref<16x1xf32, #tpu.memory_space<vmem>>, vector<16x1xf32>
    %2 = vector.broadcast %1 : vector<16x1xf32> to vector<16x128xf32>
    %3 = arith.subf %0, %2 : vector<16x128xf32>
    %c0_3 = arith.constant 0 : index
    %c0_4 = arith.constant 0 : index
    %4 = vector.load %arg4[%c0_3, %c0_4] : memref<16x128xf32, #tpu.memory_space<vmem>>, vector<16x128xf32>
    tpu.vector_store %arg4[%c0_3, %c0_4], %3 {strides = array<i32>} : memref<16x128xf32, #tpu.memory_space<vmem>>, vector<16x128xf32>,
    return
  }
  func.func @transform_0(%arg0: i32, %arg1: i32) -> (i32, i32) {
    %c0_i32 = arith.constant 0 : i32
    return %arg0, %arg1 : i32, i32
  }
  func.func @transform_1(%arg0: i32, %arg1: i32) -> (i32, i32) {
    %c0_i32 = arith.constant 0 : i32
    %c0_i32_0 = arith.constant 0 : i32
    return %arg0, %c0_i32 : i32, i32
  }
  func.func @transform_2(%arg0: i32, %arg1: i32) -> (i32, i32) {
    %c0_i32 = arith.constant 0 : i32
    return %arg0, %arg1 : i32, i32
  }
}

module attributes {stable_mosaic.version = 11 : i64} {
  func.func @_copy_gen_kernel(%arg0: i32, %arg1: i32, %arg2: i32, %arg3: memref<2xf32, #tpu.memory_space<smem>>, %arg4: memref<1x8x32xbf16, #tpu.memory_space<vmem>>, %arg5: memref<1x8x32xbf16, #tpu.memory_space<vmem>>, %arg6: memref<1x1x8xi32, #tpu.memory_space<vmem>>, %arg7: memref<1x8x1xi32, #tpu.memory_space<vmem>>, %arg8: memref<32x128xbf16, #tpu.memory_space<vmem>>, %arg9: memref<1x128xf32, #tpu.memory_space<vmem>>, %arg10: memref<1x32xf32, #tpu.memory_space<vmem>>, %arg11: memref<1x32xf32, #tpu.memory_space<vmem>>, %arg12: memref<32x32xbf16, #tpu.memory_space<vmem>>, %arg13: memref<32x32xbf16, #tpu.memory_space<vmem>>, %arg14: memref<1x32xf32, #tpu.memory_space<vmem>>, %arg15: memref<1x32xf32, #tpu.memory_space<vmem>>, %arg16: memref<1x8x128xf32, #tpu.memory_space<vmem>>, %arg17: memref<1x8x1xf32, #tpu.memory_space<vmem>>, %arg18: memref<1x8x1xf32, #tpu.memory_space<vmem>>, %arg19: memref<8x8xbf16, #tpu.memory_space<vmem>>, %arg20: memref<8x1xf32, #tpu.memory_space<vmem>>, %arg21: memref<8x1xf32, #tpu.memory_space<vmem>>) attributes {dimension_semantics = [#tpu.dimension_semantics<parallel>, #tpu.dimension_semantics<parallel>, #tpu.dimension_semantics<arbitrary>], iteration_bounds = array<i64: 2, 1, 1>, scalar_prefetch = 0 : i64, scratch_operands = 3 : i64, tpu.core_type = #tpu.core_type<tc>, window_params = [{transform_indices = @transform_0, window_bounds = array<i64: 2>}, {transform_indices = @transform_1, window_bounds = array<i64: 1, 8, 32>}, {transform_indices = @transform_2, window_bounds = array<i64: 1, 8, 32>}, {transform_indices = @transform_3, window_bounds = array<i64: 1, 1, 8>}, {transform_indices = @transform_4, window_bounds = array<i64: 1, 8, 1>}, {transform_indices = @transform_5, window_bounds = array<i64: 32, 128>}, {transform_indices = @transform_6, window_bounds = array<i64: 1, 128>}, {pipeline_mode = #tpu.pipeline_mode<synchronous>, transform_indices = @transform_7, window_bounds = array<i64: 1, 32>}, {pipeline_mode = #tpu.pipeline_mode<synchronous>, transform_indices = @transform_8, window_bounds = array<i64: 1, 32>}, {pipeline_mode = #tpu.pipeline_mode<synchronous>, transform_indices = @transform_9, window_bounds = array<i64: 32, 32>}, {pipeline_mode = #tpu.pipeline_mode<synchronous>, transform_indices = @transform_10, window_bounds = array<i64: 32, 32>}, {pipeline_mode = #tpu.pipeline_mode<synchronous>, transform_indices = @transform_11, window_bounds = array<i64: 1, 32>}, {pipeline_mode = #tpu.pipeline_mode<synchronous>, transform_indices = @transform_12, window_bounds = array<i64: 1, 32>}, {transform_indices = @transform_13, window_bounds = array<i64: 1, 8, 128>}, {transform_indices = @transform_14, window_bounds = array<i64: 1, 8, 1>}, {transform_indices = @transform_15, window_bounds = array<i64: 1, 8, 1>}]} {
    %c0 = arith.constant 0 : index
    %c0_0 = arith.constant 0 : index
    %c0_1 = arith.constant 0 : index
    %0 = vector.load %arg4[%c0, %c0_0, %c0_1] : memref<1x8x32xbf16, #tpu.memory_space<vmem>>, vector<1x8x32xbf16>
    %1 = vector.shape_cast %0 : vector<1x8x32xbf16> to vector<8x32xbf16>
    %c0_i32 = arith.constant 0 : i32
    %2 = arith.cmpi eq, %arg2, %c0_i32 : i32
    %3 = arith.extui %2 : i1 to i32
    %c0_i32_2 = arith.constant 0 : i32
    %4 = arith.cmpi ne, %3, %c0_i32_2 : i32
    scf.if %4 {
      %c0_31 = arith.constant 0 : index
      %51 = memref.load %arg3[%c0_31] : memref<2xf32, #tpu.memory_space<smem>>
      %c1 = arith.constant 1 : index
      %52 = memref.load %arg3[%c1] : memref<2xf32, #tpu.memory_space<smem>>
      %53 = arith.extf %1 : vector<8x32xbf16> to vector<8x32xf32>
      %c0_32 = arith.constant 0 : index
      %c0_33 = arith.constant 0 : index
      %c0_34 = arith.constant 0 : index
      %54 = vector.load %arg5[%c0_32, %c0_33, %c0_34] : memref<1x8x32xbf16, #tpu.memory_space<vmem>>, vector<1x8x32xbf16>
      %55 = vector.shape_cast %54 : vector<1x8x32xbf16> to vector<8x32xbf16>
      %56 = arith.extf %55 : vector<8x32xbf16> to vector<8x32xf32>
      %c0_35 = arith.constant 0 : index
      %c0_36 = arith.constant 0 : index
      %57 = vector.load %arg10[%c0_35, %c0_36] : memref<1x32xf32, #tpu.memory_space<vmem>>, vector<1x32xf32>
      %58 = vector.broadcast %57 : vector<1x32xf32> to vector<8x32xf32>
      %59 = arith.mulf %53, %58 : vector<8x32xf32>
      %cst_37 = arith.constant dense<0.000000e+00> : vector<8xf32>
      %60 = vector.multi_reduction <add>, %59, %cst_37 [1] : vector<8x32xf32> to vector<8xf32>
      %61 = vector.shape_cast %60 : vector<8xf32> to vector<8x1xf32>
      %c0_38 = arith.constant 0 : index
      %c0_39 = arith.constant 0 : index
      %62 = vector.load %arg11[%c0_38, %c0_39] : memref<1x32xf32, #tpu.memory_space<vmem>>, vector<1x32xf32>
      %cst_40 = arith.constant dense<0.000000e+00> : vector<1x8xf32>
      %63 = tpu.matmul %62, %56, %cst_40 {dimension_numbers = #tpu.dot_dimension_numbers<[1], [1], [0], [0], [0, 0, 1, 0], [], []>} : vector<1x32xf32>, vector<8x32xf32>, vector<1x8xf32> -> vector<1x8xf32>
      %64 = vector.broadcast %61 : vector<8x1xf32> to vector<8x8xf32>
      %65 = vector.broadcast %63 : vector<1x8xf32> to vector<8x8xf32>
      %66 = arith.addf %64, %65 : vector<8x8xf32>
      %67 = vector.broadcast %51 : f32 to vector<8x8xf32>
      %68 = arith.addf %66, %67 : vector<8x8xf32>
      %c0_41 = arith.constant 0 : index
      %c0_42 = arith.constant 0 : index
      %c0_43 = arith.constant 0 : index
      %69 = vector.load %arg6[%c0_41, %c0_42, %c0_43] : memref<1x1x8xi32, #tpu.memory_space<vmem>>, vector<1x1x8xi32>
      %70 = vector.shape_cast %69 : vector<1x1x8xi32> to vector<1x8xi32>
      %c0_i32_44 = arith.constant 0 : i32
      %71 = vector.broadcast %c0_i32_44 : i32 to vector<1x8xi32>
      %72 = arith.cmpi eq, %70, %71 : vector<1x8xi32>
      %cst_45 = arith.constant -9.99999993E-9 : f32
      %73 = vector.shape_cast %72 : vector<1x8xi1> to vector<1x8xi1>
      %74 = vector.broadcast %73 : vector<1x8xi1> to vector<8x8xi1>
      %75 = vector.broadcast %cst_45 : f32 to vector<8x8xf32>
      %76 = arith.select %74, %75, %68 : vector<8x8xi1>, vector<8x8xf32>
      %77 = arith.truncf %76 : vector<8x8xf32> to vector<8x8xbf16>
      %c0_46 = arith.constant 0 : index
      %c0_47 = arith.constant 0 : index
      %78 = vector.load %arg19[%c0_46, %c0_47] : memref<8x8xbf16, #tpu.memory_space<vmem>>, vector<8x8xbf16>
      tpu.vector_store %arg19[%c0_46, %c0_47], %77 {strides = array<i32>} : memref<8x8xbf16, #tpu.memory_space<vmem>>, vector<8x8xbf16>,
      %cst_48 = arith.constant dense<0.000000e+00> : vector<8x32xf32>
      %79 = tpu.matmul %77, %55, %cst_48 {dimension_numbers = #tpu.dot_dimension_numbers<[1], [0], [0], [1], [0, 0, 1, 1], [], []>} : vector<8x8xbf16>, vector<8x32xbf16>, vector<8x32xf32> -> vector<8x32xf32>
      %c0_49 = arith.constant 0 : index
      %c0_50 = arith.constant 0 : index
      %80 = vector.load %arg12[%c0_49, %c0_50] : memref<32x32xbf16, #tpu.memory_space<vmem>>, vector<32x32xbf16>
      %cst_51 = arith.constant dense<0.000000e+00> : vector<8x32xf32>
      %81 = tpu.matmul %1, %80, %cst_51 {dimension_numbers = #tpu.dot_dimension_numbers<[1], [0], [0], [1], [0, 0, 1, 1], [], []>} : vector<8x32xbf16>, vector<32x32xbf16>, vector<8x32xf32> -> vector<8x32xf32>
      %82 = arith.truncf %79 : vector<8x32xf32> to vector<8x32xbf16>
      %c0_52 = arith.constant 0 : index
      %c0_53 = arith.constant 0 : index
      %83 = vector.load %arg13[%c0_52, %c0_53] : memref<32x32xbf16, #tpu.memory_space<vmem>>, vector<32x32xbf16>
      %cst_54 = arith.constant dense<0.000000e+00> : vector<8x32xf32>
      %84 = tpu.matmul %82, %83, %cst_54 {dimension_numbers = #tpu.dot_dimension_numbers<[1], [0], [0], [1], [0, 0, 1, 1], [], []>} : vector<8x32xbf16>, vector<32x32xbf16>, vector<8x32xf32> -> vector<8x32xf32>
      %85 = arith.addf %81, %84 : vector<8x32xf32>
      %c0_55 = arith.constant 0 : index
      %c0_56 = arith.constant 0 : index
      %86 = vector.load %arg14[%c0_55, %c0_56] : memref<1x32xf32, #tpu.memory_space<vmem>>, vector<1x32xf32>
      %87 = vector.broadcast %86 : vector<1x32xf32> to vector<8x32xf32>
      %88 = arith.addf %85, %87 : vector<8x32xf32>
      %c0_57 = arith.constant 0 : index
      %c0_58 = arith.constant 0 : index
      %89 = vector.load %arg15[%c0_57, %c0_58] : memref<1x32xf32, #tpu.memory_space<vmem>>, vector<1x32xf32>
      %90 = vector.broadcast %89 : vector<1x32xf32> to vector<8x32xf32>
      %91 = arith.mulf %88, %90 : vector<8x32xf32>
      %cst_59 = arith.constant dense<0.000000e+00> : vector<8xf32>
      %92 = vector.multi_reduction <add>, %91, %cst_59 [1] : vector<8x32xf32> to vector<8xf32>
      %93 = vector.shape_cast %92 : vector<8xf32> to vector<8x1xf32>
      %94 = vector.broadcast %52 : f32 to vector<8x1xf32>
      %95 = arith.addf %93, %94 : vector<8x1xf32>
      %96 = arith.negf %95 : vector<8x1xf32>
      %97 = math.exp %96 : vector<8x1xf32>
      %cst_60 = arith.constant 1.000000e+00 : f32
      %98 = vector.broadcast %cst_60 : f32 to vector<8x1xf32>
      %99 = arith.addf %98, %97 : vector<8x1xf32>
      %100 = arith.divf %98, %99 : vector<8x1xf32>
      %c0_61 = arith.constant 0 : index
      %c0_62 = arith.constant 0 : index
      %c0_63 = arith.constant 0 : index
      %101 = vector.load %arg18[%c0_61, %c0_62, %c0_63] : memref<1x8x1xf32, #tpu.memory_space<vmem>>, vector<1x8x1xf32>
      %102 = vector.shape_cast %101 : vector<1x8x1xf32> to vector<8x1xf32>
      %103 = vector.shape_cast %100 : vector<8x1xf32> to vector<1x8x1xf32>
      tpu.vector_store %arg18[%c0_61, %c0_62, %c0_63], %103 {strides = array<i32>} : memref<1x8x1xf32, #tpu.memory_space<vmem>>, vector<1x8x1xf32>,
      %cst_64 = arith.constant 0xFF800000 : f32
      %104 = vector.broadcast %cst_64 : f32 to vector<8x1xf32>
      %c0_65 = arith.constant 0 : index
      %c0_66 = arith.constant 0 : index
      %105 = vector.load %arg20[%c0_65, %c0_66] : memref<8x1xf32, #tpu.memory_space<vmem>>, vector<8x1xf32>
      tpu.vector_store %arg20[%c0_65, %c0_66], %104 {strides = array<i32>} : memref<8x1xf32, #tpu.memory_space<vmem>>, vector<8x1xf32>,
      %cst_67 = arith.constant 0.000000e+00 : f32
      %106 = vector.broadcast %cst_67 : f32 to vector<8x1xf32>
      %c0_68 = arith.constant 0 : index
      %c0_69 = arith.constant 0 : index
      %107 = vector.load %arg21[%c0_68, %c0_69] : memref<8x1xf32, #tpu.memory_space<vmem>>, vector<8x1xf32>
      tpu.vector_store %arg21[%c0_68, %c0_69], %106 {strides = array<i32>} : memref<8x1xf32, #tpu.memory_space<vmem>>, vector<8x1xf32>,
    } else {
    }
    %c0_3 = arith.constant 0 : index
    %c0_4 = arith.constant 0 : index
    %5 = vector.load %arg8[%c0_3, %c0_4] : memref<32x128xbf16, #tpu.memory_space<vmem>>, vector<32x128xbf16>
    %cst = arith.constant dense<0.000000e+00> : vector<8x128xf32>
    %6 = tpu.matmul %1, %5, %cst {dimension_numbers = #tpu.dot_dimension_numbers<[1], [0], [0], [1], [0, 0, 1, 1], [], []>} : vector<8x32xbf16>, vector<32x128xbf16>, vector<8x128xf32> -> vector<8x128xf32>
    %c0_5 = arith.constant 0 : index
    %c0_6 = arith.constant 0 : index
    %7 = vector.load %arg9[%c0_5, %c0_6] : memref<1x128xf32, #tpu.memory_space<vmem>>, vector<1x128xf32>
    %8 = vector.broadcast %7 : vector<1x128xf32> to vector<8x128xf32>
    %9 = arith.addf %6, %8 : vector<8x128xf32>
    %10 = tpu.iota {dimensions = array<i32: 1>} : vector<8x128xi32>
    %c128_i32 = arith.constant 128 : i32
    %11 = arith.muli %arg2, %c128_i32 : i32
    %12 = vector.broadcast %11 : i32 to vector<8x128xi32>
    %13 = arith.addi %10, %12 : vector<8x128xi32>
    %c0_7 = arith.constant 0 : index
    %c0_8 = arith.constant 0 : index
    %c0_9 = arith.constant 0 : index
    %14 = vector.load %arg7[%c0_7, %c0_8, %c0_9] : memref<1x8x1xi32, #tpu.memory_space<vmem>>, vector<1x8x1xi32>
    %15 = vector.shape_cast %14 : vector<1x8x1xi32> to vector<8x1xi32>
    %16 = vector.broadcast %15 : vector<8x1xi32> to vector<8x128xi32>
    %17 = arith.cmpi eq, %13, %16 : vector<8x128xi32>
    %18 = arith.extui %17 : vector<8x128xi1> to vector<8x128xi32>
    %19 = arith.sitofp %18 : vector<8x128xi32> to vector<8x128xf32>
    %20 = arith.truncf %19 : vector<8x128xf32> to vector<8x128xbf16>
    %c0_10 = arith.constant 0 : index
    %c0_11 = arith.constant 0 : index
    %21 = vector.load %arg19[%c0_10, %c0_11] : memref<8x8xbf16, #tpu.memory_space<vmem>>, vector<8x8xbf16>
    %cst_12 = arith.constant dense<0.000000e+00> : vector<8x128xf32>
    %22 = tpu.matmul %21, %20, %cst_12 {dimension_numbers = #tpu.dot_dimension_numbers<[1], [0], [0], [1], [0, 0, 1, 1], [], []>} : vector<8x8xbf16>, vector<8x128xbf16>, vector<8x128xf32> -> vector<8x128xf32>
    %c0_13 = arith.constant 0 : index
    %c0_14 = arith.constant 0 : index
    %c0_15 = arith.constant 0 : index
    %23 = vector.load %arg18[%c0_13, %c0_14, %c0_15] : memref<1x8x1xf32, #tpu.memory_space<vmem>>, vector<1x8x1xf32>
    %24 = vector.shape_cast %23 : vector<1x8x1xf32> to vector<8x1xf32>
    %25 = arith.subf %22, %9 : vector<8x128xf32>
    %26 = vector.broadcast %24 : vector<8x1xf32> to vector<8x128xf32>
    %27 = arith.mulf %26, %25 : vector<8x128xf32>
    %28 = arith.addf %9, %27 : vector<8x128xf32>
    %c0_16 = arith.constant 0 : index
    %c0_17 = arith.constant 0 : index
    %29 = vector.load %arg20[%c0_16, %c0_17] : memref<8x1xf32, #tpu.memory_space<vmem>>, vector<8x1xf32>
    %cst_18 = arith.constant dense<0xFF800000> : vector<8xf32>
    %30 = vector.multi_reduction <maximumf>, %28, %cst_18 [1] : vector<8x128xf32> to vector<8xf32>
    %31 = vector.shape_cast %30 : vector<8xf32> to vector<8x1xf32>
    %32 = arith.maximumf %29, %31 : vector<8x1xf32>
    %c0_19 = arith.constant 0 : index
    %c0_20 = arith.constant 0 : index
    %33 = vector.load %arg21[%c0_19, %c0_20] : memref<8x1xf32, #tpu.memory_space<vmem>>, vector<8x1xf32>
    %34 = arith.subf %29, %32 : vector<8x1xf32>
    %35 = math.exp %34 : vector<8x1xf32>
    %36 = arith.mulf %33, %35 : vector<8x1xf32>
    %37 = vector.broadcast %32 : vector<8x1xf32> to vector<8x128xf32>
    %38 = arith.subf %28, %37 : vector<8x128xf32>
    %39 = math.exp %38 : vector<8x128xf32>
    %cst_21 = arith.constant dense<0.000000e+00> : vector<8xf32>
    %40 = vector.multi_reduction <add>, %39, %cst_21 [1] : vector<8x128xf32> to vector<8xf32>
    %41 = vector.shape_cast %40 : vector<8xf32> to vector<8x1xf32>
    %42 = arith.addf %36, %41 : vector<8x1xf32>
    %c0_22 = arith.constant 0 : index
    %c0_23 = arith.constant 0 : index
    %43 = vector.load %arg21[%c0_22, %c0_23] : memref<8x1xf32, #tpu.memory_space<vmem>>, vector<8x1xf32>
    tpu.vector_store %arg21[%c0_22, %c0_23], %42 {strides = array<i32>} : memref<8x1xf32, #tpu.memory_space<vmem>>, vector<8x1xf32>,
    %c0_24 = arith.constant 0 : index
    %c0_25 = arith.constant 0 : index
    %44 = vector.load %arg20[%c0_24, %c0_25] : memref<8x1xf32, #tpu.memory_space<vmem>>, vector<8x1xf32>
    tpu.vector_store %arg20[%c0_24, %c0_25], %32 {strides = array<i32>} : memref<8x1xf32, #tpu.memory_space<vmem>>, vector<8x1xf32>,
    %c0_26 = arith.constant 0 : index
    %c0_27 = arith.constant 0 : index
    %c0_28 = arith.constant 0 : index
    %45 = vector.load %arg16[%c0_26, %c0_27, %c0_28] : memref<1x8x128xf32, #tpu.memory_space<vmem>>, vector<1x8x128xf32>
    %46 = vector.shape_cast %45 : vector<1x8x128xf32> to vector<8x128xf32>
    %47 = vector.shape_cast %28 : vector<8x128xf32> to vector<1x8x128xf32>
    tpu.vector_store %arg16[%c0_26, %c0_27, %c0_28], %47 {strides = array<i32>} : memref<1x8x128xf32, #tpu.memory_space<vmem>>, vector<1x8x128xf32>,
    %c0_i32_29 = arith.constant 0 : i32
    %48 = arith.cmpi eq, %arg2, %c0_i32_29 : i32
    %49 = arith.extui %48 : i1 to i32
    %c0_i32_30 = arith.constant 0 : i32
    %50 = arith.cmpi ne, %49, %c0_i32_30 : i32
    scf.if %50 {
      %c0_31 = arith.constant 0 : index
      %c0_32 = arith.constant 0 : index
      %51 = vector.load %arg20[%c0_31, %c0_32] : memref<8x1xf32, #tpu.memory_space<vmem>>, vector<8x1xf32>
      %c0_33 = arith.constant 0 : index
      %c0_34 = arith.constant 0 : index
      %52 = vector.load %arg21[%c0_33, %c0_34] : memref<8x1xf32, #tpu.memory_space<vmem>>, vector<8x1xf32>
      %53 = math.log %52 : vector<8x1xf32>
      %54 = arith.addf %51, %53 : vector<8x1xf32>
      %c0_35 = arith.constant 0 : index
      %c0_36 = arith.constant 0 : index
      %c0_37 = arith.constant 0 : index
      %55 = vector.load %arg17[%c0_35, %c0_36, %c0_37] : memref<1x8x1xf32, #tpu.memory_space<vmem>>, vector<1x8x1xf32>
      %56 = vector.shape_cast %55 : vector<1x8x1xf32> to vector<8x1xf32>
      %57 = vector.shape_cast %54 : vector<8x1xf32> to vector<1x8x1xf32>
      tpu.vector_store %arg17[%c0_35, %c0_36, %c0_37], %57 {strides = array<i32>} : memref<1x8x1xf32, #tpu.memory_space<vmem>>, vector<1x8x1xf32>,
    } else {
    }
    return
  }
  func.func @transform_0(%arg0: i32, %arg1: i32, %arg2: i32) -> i32 {
    %c0_i32 = arith.constant 0 : i32
    %c0_i32_0 = arith.constant 0 : i32
    return %c0_i32 : i32
  }
  func.func @transform_1(%arg0: i32, %arg1: i32, %arg2: i32) -> (i32, i32, i32) {
    %c0_i32 = arith.constant 0 : i32
    %c0_i32_0 = arith.constant 0 : i32
    return %arg0, %arg1, %c0_i32 : i32, i32, i32
  }
  func.func @transform_2(%arg0: i32, %arg1: i32, %arg2: i32) -> (i32, i32, i32) {
    %c0_i32 = arith.constant 0 : i32
    %c0_i32_0 = arith.constant 0 : i32
    %c0_i32_1 = arith.constant 0 : i32
    return %arg0, %c0_i32, %c0_i32_0 : i32, i32, i32
  }
  func.func @transform_3(%arg0: i32, %arg1: i32, %arg2: i32) -> (i32, i32, i32) {
    %c0_i32 = arith.constant 0 : i32
    %c0_i32_0 = arith.constant 0 : i32
    %c0_i32_1 = arith.constant 0 : i32
    return %arg0, %c0_i32, %c0_i32_0 : i32, i32, i32
  }
  func.func @transform_4(%arg0: i32, %arg1: i32, %arg2: i32) -> (i32, i32, i32) {
    %c0_i32 = arith.constant 0 : i32
    %c0_i32_0 = arith.constant 0 : i32
    %c0_i32_1 = arith.constant 0 : i32
    return %arg0, %c0_i32, %c0_i32_0 : i32, i32, i32
  }
  func.func @transform_5(%arg0: i32, %arg1: i32, %arg2: i32) -> (i32, i32) {
    %c0_i32 = arith.constant 0 : i32
    %c0_i32_0 = arith.constant 0 : i32
    return %c0_i32, %arg2 : i32, i32
  }
  func.func @transform_6(%arg0: i32, %arg1: i32, %arg2: i32) -> (i32, i32) {
    %c0_i32 = arith.constant 0 : i32
    %c0_i32_0 = arith.constant 0 : i32
    return %c0_i32, %arg2 : i32, i32
  }
  func.func @transform_7(%arg0: i32, %arg1: i32, %arg2: i32) -> (i32, i32) {
    %c0_i32 = arith.constant 0 : i32
    %c0_i32_0 = arith.constant 0 : i32
    %c0_i32_1 = arith.constant 0 : i32
    return %c0_i32, %c0_i32_0 : i32, i32
  }
  func.func @transform_8(%arg0: i32, %arg1: i32, %arg2: i32) -> (i32, i32) {
    %c0_i32 = arith.constant 0 : i32
    %c0_i32_0 = arith.constant 0 : i32
    %c0_i32_1 = arith.constant 0 : i32
    return %c0_i32, %c0_i32_0 : i32, i32
  }
  func.func @transform_9(%arg0: i32, %arg1: i32, %arg2: i32) -> (i32, i32) {
    %c0_i32 = arith.constant 0 : i32
    %c0_i32_0 = arith.constant 0 : i32
    %c0_i32_1 = arith.constant 0 : i32
    return %c0_i32, %c0_i32_0 : i32, i32
  }
  func.func @transform_10(%arg0: i32, %arg1: i32, %arg2: i32) -> (i32, i32) {
    %c0_i32 = arith.constant 0 : i32
    %c0_i32_0 = arith.constant 0 : i32
    %c0_i32_1 = arith.constant 0 : i32
    return %c0_i32, %c0_i32_0 : i32, i32
  }
  func.func @transform_11(%arg0: i32, %arg1: i32, %arg2: i32) -> (i32, i32) {
    %c0_i32 = arith.constant 0 : i32
    %c0_i32_0 = arith.constant 0 : i32
    %c0_i32_1 = arith.constant 0 : i32
    return %c0_i32, %c0_i32_0 : i32, i32
  }
  func.func @transform_12(%arg0: i32, %arg1: i32, %arg2: i32) -> (i32, i32) {
    %c0_i32 = arith.constant 0 : i32
    %c0_i32_0 = arith.constant 0 : i32
    %c0_i32_1 = arith.constant 0 : i32
    return %c0_i32, %c0_i32_0 : i32, i32
  }
  func.func @transform_13(%arg0: i32, %arg1: i32, %arg2: i32) -> (i32, i32, i32) {
    %c0_i32 = arith.constant 0 : i32
    return %arg0, %arg1, %arg2 : i32, i32, i32
  }
  func.func @transform_14(%arg0: i32, %arg1: i32, %arg2: i32) -> (i32, i32, i32) {
    %c0_i32 = arith.constant 0 : i32
    %c0_i32_0 = arith.constant 0 : i32
    return %arg0, %arg1, %c0_i32 : i32, i32, i32
  }
  func.func @transform_15(%arg0: i32, %arg1: i32, %arg2: i32) -> (i32, i32, i32) {
    %c0_i32 = arith.constant 0 : i32
    %c0_i32_0 = arith.constant 0 : i32
    return %arg0, %arg1, %c0_i32 : i32, i32, i32
  }
}

</mosaic_0001>

<llo_original>
// kernel: generator_forward.3
$region0: #{generator_forward.3}
  #allocation0 [shape = 'u32[]', space=smem, size = 0x4, offset = 0x4, fixed_abs, tag = 'smem constant byte address 0x4 - core index']
  #allocation1 [shape = 'u32[72,128]{1,0:T(1,128)}', space=vmem, size = 0x9000, scoped, tag = 'internal scratch']
  %s0 = inlined_call_operand.vmem [shape: f32[16,128], index: 0, kind: input, shape index: {}, may-alias: {0,2}]
  %s1 = inlined_call_operand.vmem [shape: f32[16,1], index: 1, kind: input, shape index: {}]
  %s2 = inlined_call_operand.vmem [shape: f32[16,128], index: 2, kind: output, shape index: {}, may-alias: {0,2}]
  %s3 = sld [smem:[#allocation0]]
  $region18: #{generator_forward.3} parent=0
    _
  %s5 = ssub.s32 1, %s3
  %s6 = scalar_select 0, %s5, %s3
  // Predicated region
  $region2: #{generator_forward.3} parent=0 // pred_check
    _
  $region3: #{generator_forward.3} parent=0 // pred_check_branch
    %8 = sbr.rel (0) target = $region5
  $region4: #{generator_forward.3} parent=0 // pred_region
    _
  $region5: #{generator_forward.3} parent=0 // pred_fallthru
    _
  // Predicated region
  $region6: #{generator_forward.3} parent=0 // pred_check
    _
  $region7: #{generator_forward.3} parent=0 // pred_check_branch
    %10 = sbr.rel (0) target = $region9
  $region8: #{generator_forward.3} parent=0 // pred_region
    _
  $region9: #{generator_forward.3} parent=0 // pred_fallthru
    _
  %v11 = vld [vmem:[%s0] sm:$0xff]
  %v12 = vld [vmem:[%s0 + $0x8] sm:$0xff]
  %v13 = vld [vmem:[%s1] sm:$0xff]
  %v14 = vld [vmem:[%s1 + $0x8] sm:$0xff]
  %16 = vset.pattern.permute.xlu0 0
  %17 = vperm.xlu0 %16, %v13
  %v18 = vpop.permute.xlu0 %17
  %21 = vset.pattern.permute.xlu0 0
  %22 = vperm.xlu0 %21, %v14
  %v23 = vpop.permute.xlu0 %22
  %v25 = vsub.f32 %v11, %v18
  %v26 = vsub.f32 %v12, %v23
  %27 = vst [vmem:[%s2] sm:$0xff] %v25
  %28 = vst [vmem:[%s2 + $0x8] sm:$0xff] %v26
  // Predicated region
  $region10: #{generator_forward.3} parent=0 // pred_check
    _
  $region11: #{generator_forward.3} parent=0 // pred_check_branch
    %30 = sbr.rel (0) target = $region13
  $region12: #{generator_forward.3} parent=0 // pred_region
    _
  $region13: #{generator_forward.3} parent=0 // pred_fallthru
    _
  // Predicated region
  $region14: #{generator_forward.3} parent=0 // pred_check
    _
  $region15: #{generator_forward.3} parent=0 // pred_check_branch
    %32 = sbr.rel (0) target = $region17
  $region16: #{generator_forward.3} parent=0 // pred_region
    _
  $region17: #{generator_forward.3} parent=0 // pred_fallthru
    _

// kernel: generator_forward.2
$region0: #{generator_forward.2}
  #allocation0 [shape = 'u32[]', space=smem, size = 0x4, offset = 0x4, fixed_abs, tag = 'smem constant byte address 0x4 - core index']
  #allocation1 [shape = 'u32[72,128]{1,0:T(1,128)}', space=vmem, size = 0x9000, scoped, tag = 'internal scratch']
  #allocation2 [shape = 'bf16[8,8]{1,0:T(8,128)(2,1)}', space=vmem, size = 0x800, scoped, tag = 'scratch operand']
  #allocation3 [shape = 'f32[8,1]{1,0:T(8,128)}', space=vmem, size = 0x1000, scoped, tag = 'scratch operand']
  #allocation4 [shape = 'f32[8,1]{1,0:T(8,128)}', space=vmem, size = 0x1000, scoped, tag = 'scratch operand']
  %s0 = inlined_call_operand.vmem [shape: f32[2], index: 0, kind: input, shape index: {}]
  %s1 = inlined_call_operand.vmem [shape: bf16[2,8,32], index: 1, kind: input, shape index: {}]
  %s2 = inlined_call_operand.vmem [shape: bf16[2,8,32], index: 2, kind: input, shape index: {}]
  %s3 = inlined_call_operand.vmem [shape: s32[2,1,8], index: 3, kind: input, shape index: {}]
  %s4 = inlined_call_operand.vmem [shape: s32[2,8,1], index: 4, kind: input, shape index: {}]
  %s5 = inlined_call_operand.vmem [shape: bf16[32,128], index: 5, kind: input, shape index: {}]
  %s6 = inlined_call_operand.vmem [shape: f32[1,128], index: 6, kind: input, shape index: {}]
  %s7 = inlined_call_operand.vmem [shape: f32[1,32], index: 7, kind: input, shape index: {}]
  %s8 = inlined_call_operand.vmem [shape: f32[1,32], index: 8, kind: input, shape index: {}]
  %s9 = inlined_call_operand.vmem [shape: bf16[32,32], index: 9, kind: input, shape index: {}]
  %s10 = inlined_call_operand.vmem [shape: bf16[32,32], index: 10, kind: input, shape index: {}]
  %s11 = inlined_call_operand.vmem [shape: f32[1,32], index: 11, kind: input, shape index: {}]
  %s12 = inlined_call_operand.vmem [shape: f32[1,32], index: 12, kind: input, shape index: {}]
  %s13 = inlined_call_operand.vmem [shape: f32[2,8,128], index: 13, kind: output, shape index: {0}]
  %s14 = inlined_call_operand.vmem [shape: f32[2,8,1], index: 14, kind: output, shape index: {1}]
  %s15 = inlined_call_operand.vmem [shape: f32[2,8,1], index: 15, kind: output, shape index: {2}]
  %16 = xla_tuple %s13, %s14, %s15
  %s17 = sld [smem:[#allocation0]]
  $region113: #{generator_forward.2} parent=0
    _
  %s19 = ssub.s32 1, %s17
  %s20 = scalar_select 0, %s19, %s17
  $region1: #{generator_forward.2} parent=0
    #allocation5 [shape = 'u8[512]{0}', space=smem, size = 0x200, scoped, tag = 'input window, operand 0, single buffered']
    #allocation6 [shape = 's32[2]{0}', space=sflag, size = 0x8, scoped, tag = 'scoped memory for generator_forward.2']
    %21 = vsyncpa [#allocation6], 0
    loop: start=0, step=1, limit=4
    $region2: #{generator_forward.2} parent=1 // loop_pre_header
      _
    $region3: #{generator_forward.2} parent=1 // loop_header
      %s23 = sphi 0, %s27
      %p24 = scmp.ge.s32.totalorder %s23, 4
      %s30 = sphi 0, %s49
      %s31 = sphi 0, %s45
      %s32 = sphi 0, %s41
      %s33 = sphi 0, %s30
      %s34 = sphi 0, %s31
      %s35 = sphi 0, %s32
      %s36 = sphi 0, %s33
      %s37 = sphi 0, %s34
      %s38 = sphi 0, %s35
      %s50 = sphi 0, %s50
      %s52 = sphi 0, %s50
      %s53 = sphi 0, %s52
      %s67 = sphi 0, %s53
      %s75 = sphi 0, %s77
      %s78 = sphi 0, %s75
      %s79 = sphi 0, %s78
      %s95 = sphi 0, %s79
      %s101 = sphi 0, %s103
      %s104 = sphi 0, %s101
      %s105 = sphi 0, %s104
      %s121 = sphi 0, %s105
      %s127 = sphi 0, %s129
      %s130 = sphi 0, %s127
      %s131 = sphi 0, %s130
      %s147 = sphi 0, %s131
      %s153 = sphi 0, %s155
      %s156 = sphi 0, %s153
      %s157 = sphi 0, %s156
      %s173 = sphi 0, %s157
      %s179 = sphi 0, %s181
      %s182 = sphi 0, %s179
      %s183 = sphi 0, %s182
      %s199 = sphi 0, %s183
      %s205 = sphi 0, %s207
      %s208 = sphi 0, %s205
      %s209 = sphi 0, %s208
      %s225 = sphi 0, %s209
      %s229 = sphi 0, %s229
      %s231 = sphi 0, %s229
      %s232 = sphi 0, %s231
      %s246 = sphi 0, %s232
      %s250 = sphi 0, %s250
      %s252 = sphi 0, %s250
      %s253 = sphi 0, %s252
      %s267 = sphi 0, %s253
      %s271 = sphi 0, %s271
      %s273 = sphi 0, %s271
      %s274 = sphi 0, %s273
      %s288 = sphi 0, %s274
      %s292 = sphi 0, %s292
      %s294 = sphi 0, %s292
      %s295 = sphi 0, %s294
      %s309 = sphi 0, %s295
      %s313 = sphi 0, %s313
      %s315 = sphi 0, %s313
      %s316 = sphi 0, %s315
      %s330 = sphi 0, %s316
      %s334 = sphi 0, %s334
      %s336 = sphi 0, %s334
      %s337 = sphi 0, %s336
      %s351 = sphi 0, %s337
      %s361 = sphi 0, %s363
      %s364 = sphi 0, %s361
      %s365 = sphi 0, %s364
      %s381 = sphi 0, %s365
      %s389 = sphi 0, %s391
      %s392 = sphi 0, %s389
      %s393 = sphi 0, %s392
      %s409 = sphi 0, %s393
      %s417 = sphi 0, %s419
      %s420 = sphi 0, %s417
      %s421 = sphi 0, %s420
      %s437 = sphi 0, %s421
    $region4: #{generator_forward.2} parent=1 // loop_header_branch
      %26 = sbr.rel (%p24) target = $region8
    $region5: #{generator_forward.2} parent=1 // loop_body
      %s28 = ssub.s32 %s23, 1
      %s29 = ssub.s32 %s23, 2
      %s39 = sadd.s32 1, %s32
      %p40 = scmp.ge.s32.totalorder %s39, 1
      %s41 = scalar_select %p40, 0, %s39
      %s42 = sadd.s32 1, %s31
      %s43 = scalar_select %p40, %s42, %s31
      %p44 = scmp.ge.s32.totalorder %s43, 1
      %s45 = scalar_select %p44, 0, %s43
      %s46 = sadd.s32 1, %s30
      %s47 = scalar_select %p44, %s46, %s30
      %p48 = scmp.ge.s32.totalorder %s47, 2
      %s49 = scalar_select %p48, 0, %s47
      %s51 = sadd.s32 %s50, 1
      %p54 = scmp.eq.s32.totalorder %s23, 1
      %p55 = scmp.ne.s32.totalorder %s50, %s52
      %p56 = scmp.eq.s32.totalorder %s23, 0
      %p57 = por %p55, %p56
      %p58 = scmp.ne.s32.totalorder %s50, %s52
      %p59 = scmp.eq.s32.totalorder %s28, 1
      %p60 = por %p58, %p59
      %p61 = scmp.ne.s32.totalorder %s52, %s53
      %p62 = scmp.eq.s32.totalorder %s28, 0
      %p63 = por %p61, %p62
      %p64 = scmp.ne.s32.totalorder %s52, %s53
      %p65 = scmp.eq.s32.totalorder %s29, 1
      %p66 = por %p64, %p65
      %p68 = scmp.ne.s32.totalorder %s53, %s67
      %p69 = scmp.eq.s32.totalorder %s29, 0
      %p70 = por %p68, %p69
      %s71 = ssub.s32 %s30, %s49
      %s72 = ssub.s32 %s31, %s45
      %s73 = sor.u32 %s71, %s72
      %p74 = scmp.eq.s32.totalorder %s73, 0
      %s76 = sadd.s32 %s75, 1
      %s77 = scalar_select %p74, %s75, %s76
      %p80 = pneg %p74
      %p81 = scmp.eq.s32.totalorder %s23, 1
      %p82 = por %p80, %p81
      %p83 = scmp.ne.s32.totalorder %s75, %s78
      %p84 = scmp.eq.s32.totalorder %s23, 0
      %p85 = por %p83, %p84
      %p86 = scmp.ne.s32.totalorder %s75, %s78
      %p87 = scmp.eq.s32.totalorder %s28, 1
      %p88 = por %p86, %p87
      %p89 = scmp.ne.s32.totalorder %s78, %s79
      %p90 = scmp.eq.s32.totalorder %s28, 0
      %p91 = por %p89, %p90
      %p92 = scmp.ne.s32.totalorder %s78, %s79
      %p93 = scmp.eq.s32.totalorder %s29, 1
      %p94 = por %p92, %p93
      %p96 = scmp.ne.s32.totalorder %s79, %s95
      %p97 = scmp.eq.s32.totalorder %s29, 0
      %p98 = por %p96, %p97
      %s99 = ssub.s32 %s30, %s49
      %p100 = scmp.eq.s32.totalorder %s99, 0
      %s102 = sadd.s32 %s101, 1
      %s103 = scalar_select %p100, %s101, %s102
      %p106 = pneg %p100
      %p107 = scmp.eq.s32.totalorder %s23, 1
      %p108 = por %p106, %p107
      %p109 = scmp.ne.s32.totalorder %s101, %s104
      %p110 = scmp.eq.s32.totalorder %s23, 0
      %p111 = por %p109, %p110
      %p112 = scmp.ne.s32.totalorder %s101, %s104
      %p113 = scmp.eq.s32.totalorder %s28, 1
      %p114 = por %p112, %p113
      %p115 = scmp.ne.s32.totalorder %s104, %s105
      %p116 = scmp.eq.s32.totalorder %s28, 0
      %p117 = por %p115, %p116
      %p118 = scmp.ne.s32.totalorder %s104, %s105
      %p119 = scmp.eq.s32.totalorder %s29, 1
      %p120 = por %p118, %p119
      %p122 = scmp.ne.s32.totalorder %s105, %s121
      %p123 = scmp.eq.s32.totalorder %s29, 0
      %p124 = por %p122, %p123
      %s125 = ssub.s32 %s30, %s49
      %p126 = scmp.eq.s32.totalorder %s125, 0
      %s128 = sadd.s32 %s127, 1
      %s129 = scalar_select %p126, %s127, %s128
      %p132 = pneg %p126
      %p133 = scmp.eq.s32.totalorder %s23, 1
      %p134 = por %p132, %p133
      %p135 = scmp.ne.s32.totalorder %s127, %s130
      %p136 = scmp.eq.s32.totalorder %s23, 0
      %p137 = por %p135, %p136
      %p138 = scmp.ne.s32.totalorder %s127, %s130
      %p139 = scmp.eq.s32.totalorder %s28, 1
      %p140 = por %p138, %p139
      %p141 = scmp.ne.s32.totalorder %s130, %s131
      %p142 = scmp.eq.s32.totalorder %s28, 0
      %p143 = por %p141, %p142
      %p144 = scmp.ne.s32.totalorder %s130, %s131
      %p145 = scmp.eq.s32.totalorder %s29, 1
      %p146 = por %p144, %p145
      %p148 = scmp.ne.s32.totalorder %s131, %s147
      %p149 = scmp.eq.s32.totalorder %s29, 0
      %p150 = por %p148, %p149
      %s151 = ssub.s32 %s30, %s49
      %p152 = scmp.eq.s32.totalorder %s151, 0
      %s154 = sadd.s32 %s153, 1
      %s155 = scalar_select %p152, %s153, %s154
      %p158 = pneg %p152
      %p159 = scmp.eq.s32.totalorder %s23, 1
      %p160 = por %p158, %p159
      %p161 = scmp.ne.s32.totalorder %s153, %s156
      %p162 = scmp.eq.s32.totalorder %s23, 0
      %p163 = por %p161, %p162
      %p164 = scmp.ne.s32.totalorder %s153, %s156
      %p165 = scmp.eq.s32.totalorder %s28, 1
      %p166 = por %p164, %p165
      %p167 = scmp.ne.s32.totalorder %s156, %s157
      %p168 = scmp.eq.s32.totalorder %s28, 0
      %p169 = por %p167, %p168
      %p170 = scmp.ne.s32.totalorder %s156, %s157
      %p171 = scmp.eq.s32.totalorder %s29, 1
      %p172 = por %p170, %p171
      %p174 = scmp.ne.s32.totalorder %s157, %s173
      %p175 = scmp.eq.s32.totalorder %s29, 0
      %p176 = por %p174, %p175
      %s177 = ssub.s32 %s32, %s41
      %p178 = scmp.eq.s32.totalorder %s177, 0
      %s180 = sadd.s32 %s179, 1
      %s181 = scalar_select %p178, %s179, %s180
      %p184 = pneg %p178
      %p185 = scmp.eq.s32.totalorder %s23, 1
      %p186 = por %p184, %p185
      %p187 = scmp.ne.s32.totalorder %s179, %s182
      %p188 = scmp.eq.s32.totalorder %s23, 0
      %p189 = por %p187, %p188
      %p190 = scmp.ne.s32.totalorder %s179, %s182
      %p191 = scmp.eq.s32.totalorder %s28, 1
      %p192 = por %p190, %p191
      %p193 = scmp.ne.s32.totalorder %s182, %s183
      %p194 = scmp.eq.s32.totalorder %s28, 0
      %p195 = por %p193, %p194
      %p196 = scmp.ne.s32.totalorder %s182, %s183
      %p197 = scmp.eq.s32.totalorder %s29, 1
      %p198 = por %p196, %p197
      %p200 = scmp.ne.s32.totalorder %s183, %s199
      %p201 = scmp.eq.s32.totalorder %s29, 0
      %p202 = por %p200, %p201
      %s203 = ssub.s32 %s32, %s41
      %p204 = scmp.eq.s32.totalorder %s203, 0
      %s206 = sadd.s32 %s205, 1
      %s207 = scalar_select %p204, %s205, %s206
      %p210 = pneg %p204
      %p211 = scmp.eq.s32.totalorder %s23, 1
      %p212 = por %p210, %p211
      %p213 = scmp.ne.s32.totalorder %s205, %s208
      %p214 = scmp.eq.s32.totalorder %s23, 0
      %p215 = por %p213, %p214
      %p216 = scmp.ne.s32.totalorder %s205, %s208
      %p217 = scmp.eq.s32.totalorder %s28, 1
      %p218 = por %p216, %p217
      %p219 = scmp.ne.s32.totalorder %s208, %s209
      %p220 = scmp.eq.s32.totalorder %s28, 0
      %p221 = por %p219, %p220
      %p222 = scmp.ne.s32.totalorder %s208, %s209
      %p223 = scmp.eq.s32.totalorder %s29, 1
      %p224 = por %p222, %p223
      %p226 = scmp.ne.s32.totalorder %s209, %s225
      %p227 = scmp.eq.s32.totalorder %s29, 0
      %p228 = por %p226, %p227
      %s230 = sadd.s32 %s229, 1
      %p233 = scmp.eq.s32.totalorder %s23, 1
      %p234 = scmp.ne.s32.totalorder %s229, %s231
      %p235 = scmp.eq.s32.totalorder %s23, 0
      %p236 = por %p234, %p235
      %p237 = scmp.ne.s32.totalorder %s229, %s231
      %p238 = scmp.eq.s32.totalorder %s28, 1
      %p239 = por %p237, %p238
      %p240 = scmp.ne.s32.totalorder %s231, %s232
      %p241 = scmp.eq.s32.totalorder %s28, 0
      %p242 = por %p240, %p241
      %p243 = scmp.ne.s32.totalorder %s231, %s232
      %p244 = scmp.eq.s32.totalorder %s29, 1
      %p245 = por %p243, %p244
      %p247 = scmp.ne.s32.totalorder %s232, %s246
      %p248 = scmp.eq.s32.totalorder %s29, 0
      %p249 = por %p247, %p248
      %s251 = sadd.s32 %s250, 1
      %p254 = scmp.eq.s32.totalorder %s23, 1
      %p255 = scmp.ne.s32.totalorder %s250, %s252
      %p256 = scmp.eq.s32.totalorder %s23, 0
      %p257 = por %p255, %p256
      %p258 = scmp.ne.s32.totalorder %s250, %s252
      %p259 = scmp.eq.s32.totalorder %s28, 1
      %p260 = por %p258, %p259
      %p261 = scmp.ne.s32.totalorder %s252, %s253
      %p262 = scmp.eq.s32.totalorder %s28, 0
      %p263 = por %p261, %p262
      %p264 = scmp.ne.s32.totalorder %s252, %s253
      %p265 = scmp.eq.s32.totalorder %s29, 1
      %p266 = por %p264, %p265
      %p268 = scmp.ne.s32.totalorder %s253, %s267
      %p269 = scmp.eq.s32.totalorder %s29, 0
      %p270 = por %p268, %p269
      %s272 = sadd.s32 %s271, 1
      %p275 = scmp.eq.s32.totalorder %s23, 1
      %p276 = scmp.ne.s32.totalorder %s271, %s273
      %p277 = scmp.eq.s32.totalorder %s23, 0
      %p278 = por %p276, %p277
      %p279 = scmp.ne.s32.totalorder %s271, %s273
      %p280 = scmp.eq.s32.totalorder %s28, 1
      %p281 = por %p279, %p280
      %p282 = scmp.ne.s32.totalorder %s273, %s274
      %p283 = scmp.eq.s32.totalorder %s28, 0
      %p284 = por %p282, %p283
      %p285 = scmp.ne.s32.totalorder %s273, %s274
      %p286 = scmp.eq.s32.totalorder %s29, 1
      %p287 = por %p285, %p286
      %p289 = scmp.ne.s32.totalorder %s274, %s288
      %p290 = scmp.eq.s32.totalorder %s29, 0
      %p291 = por %p289, %p290
      %s293 = sadd.s32 %s292, 1
      %p296 = scmp.eq.s32.totalorder %s23, 1
      %p297 = scmp.ne.s32.totalorder %s292, %s294
      %p298 = scmp.eq.s32.totalorder %s23, 0
      %p299 = por %p297, %p298
      %p300 = scmp.ne.s32.totalorder %s292, %s294
      %p301 = scmp.eq.s32.totalorder %s28, 1
      %p302 = por %p300, %p301
      %p303 = scmp.ne.s32.totalorder %s294, %s295
      %p304 = scmp.eq.s32.totalorder %s28, 0
      %p305 = por %p303, %p304
      %p306 = scmp.ne.s32.totalorder %s294, %s295
      %p307 = scmp.eq.s32.totalorder %s29, 1
      %p308 = por %p306, %p307
      %p310 = scmp.ne.s32.totalorder %s295, %s309
      %p311 = scmp.eq.s32.totalorder %s29, 0
      %p312 = por %p310, %p311
      %s314 = sadd.s32 %s313, 1
      %p317 = scmp.eq.s32.totalorder %s23, 1
      %p318 = scmp.ne.s32.totalorder %s313, %s315
      %p319 = scmp.eq.s32.totalorder %s23, 0
      %p320 = por %p318, %p319
      %p321 = scmp.ne.s32.totalorder %s313, %s315
      %p322 = scmp.eq.s32.totalorder %s28, 1
      %p323 = por %p321, %p322
      %p324 = scmp.ne.s32.totalorder %s315, %s316
      %p325 = scmp.eq.s32.totalorder %s28, 0
      %p326 = por %p324, %p325
      %p327 = scmp.ne.s32.totalorder %s315, %s316
      %p328 = scmp.eq.s32.totalorder %s29, 1
      %p329 = por %p327, %p328
      %p331 = scmp.ne.s32.totalorder %s316, %s330
      %p332 = scmp.eq.s32.totalorder %s29, 0
      %p333 = por %p331, %p332
      %s335 = sadd.s32 %s334, 1
      %p338 = scmp.eq.s32.totalorder %s23, 1
      %p339 = scmp.ne.s32.totalorder %s334, %s336
      %p340 = scmp.eq.s32.totalorder %s23, 0
      %p341 = por %p339, %p340
      %p342 = scmp.ne.s32.totalorder %s334, %s336
      %p343 = scmp.eq.s32.totalorder %s28, 1
      %p344 = por %p342, %p343
      %p345 = scmp.ne.s32.totalorder %s336, %s337
      %p346 = scmp.eq.s32.totalorder %s28, 0
      %p347 = por %p345, %p346
      %p348 = scmp.ne.s32.totalorder %s336, %s337
      %p349 = scmp.eq.s32.totalorder %s29, 1
      %p350 = por %p348, %p349
      %p352 = scmp.ne.s32.totalorder %s337, %s351
      %p353 = scmp.eq.s32.totalorder %s29, 0
      %p354 = por %p352, %p353
      %s355 = ssub.s32 %s30, %s49
      %s356 = ssub.s32 %s31, %s45
      %s357 = sor.u32 %s355, %s356
      %s358 = ssub.s32 %s32, %s41
      %s359 = sor.u32 %s357, %s358
      %p360 = scmp.eq.s32.totalorder %s359, 0
      %s362 = sadd.s32 %s361, 1
      %s363 = scalar_select %p360, %s361, %s362
      %p366 = pneg %p360
      %p367 = scmp.eq.s32.totalorder %s23, 1
      %p368 = por %p366, %p367
      %p369 = scmp.ne.s32.totalorder %s361, %s364
      %p370 = scmp.eq.s32.totalorder %s23, 0
      %p371 = por %p369, %p370
      %p372 = scmp.ne.s32.totalorder %s361, %s364
      %p373 = scmp.eq.s32.totalorder %s28, 1
      %p374 = por %p372, %p373
      %p375 = scmp.ne.s32.totalorder %s364, %s365
      %p376 = scmp.eq.s32.totalorder %s28, 0
      %p377 = por %p375, %p376
      %p378 = scmp.ne.s32.totalorder %s364, %s365
      %p379 = scmp.eq.s32.totalorder %s29, 1
      %p380 = por %p378, %p379
      %p382 = scmp.ne.s32.totalorder %s365, %s381
      %p383 = scmp.eq.s32.totalorder %s29, 0
      %p384 = por %p382, %p383
      %s385 = ssub.s32 %s30, %s49
      %s386 = ssub.s32 %s31, %s45
      %s387 = sor.u32 %s385, %s386
      %p388 = scmp.eq.s32.totalorder %s387, 0
      %s390 = sadd.s32 %s389, 1
      %s391 = scalar_select %p388, %s389, %s390
      %p394 = pneg %p388
      %p395 = scmp.eq.s32.totalorder %s23, 1
      %p396 = por %p394, %p395
      %p397 = scmp.ne.s32.totalorder %s389, %s392
      %p398 = scmp.eq.s32.totalorder %s23, 0
      %p399 = por %p397, %p398
      %p400 = scmp.ne.s32.totalorder %s389, %s392
      %p401 = scmp.eq.s32.totalorder %s28, 1
      %p402 = por %p400, %p401
      %p403 = scmp.ne.s32.totalorder %s392, %s393
      %p404 = scmp.eq.s32.totalorder %s28, 0
      %p405 = por %p403, %p404
      %p406 = scmp.ne.s32.totalorder %s392, %s393
      %p407 = scmp.eq.s32.totalorder %s29, 1
      %p408 = por %p406, %p407
      %p410 = scmp.ne.s32.totalorder %s393, %s409
      %p411 = scmp.eq.s32.totalorder %s29, 0
      %p412 = por %p410, %p411
      %s413 = ssub.s32 %s30, %s49
      %s414 = ssub.s32 %s31, %s45
      %s415 = sor.u32 %s413, %s414
      %p416 = scmp.eq.s32.totalorder %s415, 0
      %s418 = sadd.s32 %s417, 1
      %s419 = scalar_select %p416, %s417, %s418
      %p422 = pneg %p416
      %p423 = scmp.eq.s32.totalorder %s23, 1
      %p424 = por %p422, %p423
      %p425 = scmp.ne.s32.totalorder %s417, %s420
      %p426 = scmp.eq.s32.totalorder %s23, 0
      %p427 = por %p425, %p426
      %p428 = scmp.ne.s32.totalorder %s417, %s420
      %p429 = scmp.eq.s32.totalorder %s28, 1
      %p430 = por %p428, %p429
      %p431 = scmp.ne.s32.totalorder %s420, %s421
      %p432 = scmp.eq.s32.totalorder %s28, 0
      %p433 = por %p431, %p432
      %p434 = scmp.ne.s32.totalorder %s420, %s421
      %p435 = scmp.eq.s32.totalorder %s29, 1
      %p436 = por %p434, %p435
      %p438 = scmp.ne.s32.totalorder %s421, %s437
      %p439 = scmp.eq.s32.totalorder %s29, 0
      %p440 = por %p438, %p439
      %p441 = scmp.le.s32.totalorder 1, %s23
      %p442 = scmp.lt.s32.totalorder %s23, 3
      %p443 = pnand %p441, %p442
      %p444 = pneg %p443
      // Predicated region
      $region9: #{generator_forward.2} parent=5 // pred_check
        _
      $region10: #{generator_forward.2} parent=5 // pred_check_branch
        %446 = sbr.rel (%p443) target = $region12
      $region11: #{generator_forward.2} parent=5 // pred_region
        %s447 = ssub.s32 %s23, 1
        // Predicated region
        $region13: #{generator_forward.2} parent=11 // pred_check
          %p448 = pneg %p63
        $region14: #{generator_forward.2} parent=11 // pred_check_branch
          %450 = sbr.rel (%p448) target = $region16
        $region15: #{generator_forward.2} parent=11 // pred_region
          %452 = vsyncadd [#allocation6], 0
          %s454 = sshll.u32 %s0, 4
          %s455 = int_to_ptr.vmem [resolvable:$true] %s454
          %457 = dma.vmem_to_smem %s455, 16, [#allocation5], [#allocation6]
        $region16: #{generator_forward.2} parent=11 // pred_fallthru
          _
        // Predicated region
        $region17: #{generator_forward.2} parent=11 // pred_check
          %p458 = pneg %p195
        $region18: #{generator_forward.2} parent=11 // pred_check_branch
          %460 = sbr.rel (%p458) target = $region20
        $region19: #{generator_forward.2} parent=11 // pred_region
          %p461 = scmp.lt.s32.totalorder %s35, 0
          %s462 = scalar_select %p461, %s35, 0
          %s463 = smul.addr %s462, 4
          %s464 = scalar_lea.vmem %s5, %s463
        $region20: #{generator_forward.2} parent=11 // pred_fallthru
          _
        // Predicated region
        $region21: #{generator_forward.2} parent=11 // pred_check
          %p465 = pneg %p221
        $region22: #{generator_forward.2} parent=11 // pred_check_branch
          %467 = sbr.rel (%p465) target = $region24
        $region23: #{generator_forward.2} parent=11 // pred_region
          %p468 = scmp.lt.s32.totalorder %s35, 0
          %s469 = scalar_select %p468, %s35, 0
          %s470 = scalar_lea.vmem %s6, %s469
        $region24: #{generator_forward.2} parent=11 // pred_fallthru
          _
        // Predicated region
        $region25: #{generator_forward.2} parent=11 // pred_check
          %p471 = pneg %p242
        $region26: #{generator_forward.2} parent=11 // pred_check_branch
          %473 = sbr.rel (%p471) target = $region28
        $region27: #{generator_forward.2} parent=11 // pred_region
          _
        $region28: #{generator_forward.2} parent=11 // pred_fallthru
          _
        // Predicated region
        $region29: #{generator_forward.2} parent=11 // pred_check
          %p474 = pneg %p263
        $region30: #{generator_forward.2} parent=11 // pred_check_branch
          %476 = sbr.rel (%p474) target = $region32
        $region31: #{generator_forward.2} parent=11 // pred_region
          _
        $region32: #{generator_forward.2} parent=11 // pred_fallthru
          _
        // Predicated region
        $region33: #{generator_forward.2} parent=11 // pred_check
          %p477 = pneg %p284
        $region34: #{generator_forward.2} parent=11 // pred_check_branch
          %479 = sbr.rel (%p477) target = $region36
        $region35: #{generator_forward.2} parent=11 // pred_region
          _
        $region36: #{generator_forward.2} parent=11 // pred_fallthru
          _
        // Predicated region
        $region37: #{generator_forward.2} parent=11 // pred_check
          %p480 = pneg %p305
        $region38: #{generator_forward.2} parent=11 // pred_check_branch
          %482 = sbr.rel (%p480) target = $region40
        $region39: #{generator_forward.2} parent=11 // pred_region
          _
        $region40: #{generator_forward.2} parent=11 // pred_fallthru
          _
        // Predicated region
        $region41: #{generator_forward.2} parent=11 // pred_check
          %p483 = pneg %p326
        $region42: #{generator_forward.2} parent=11 // pred_check_branch
          %485 = sbr.rel (%p483) target = $region44
        $region43: #{generator_forward.2} parent=11 // pred_region
          _
        $region44: #{generator_forward.2} parent=11 // pred_fallthru
          _
        // Predicated region
        $region45: #{generator_forward.2} parent=11 // pred_check
          %p486 = pneg %p347
        $region46: #{generator_forward.2} parent=11 // pred_check_branch
          %488 = sbr.rel (%p486) target = $region48
        $region47: #{generator_forward.2} parent=11 // pred_region
          _
        $region48: #{generator_forward.2} parent=11 // pred_fallthru
          _
      $region12: #{generator_forward.2} parent=5 // pred_fallthru
        _
      %p489 = scmp.lt.s32.totalorder %s23, 2
      // Predicated region
      $region49: #{generator_forward.2} parent=5 // pred_check
        %p490 = pneg %p489
      $region50: #{generator_forward.2} parent=5 // pred_check_branch
        %492 = sbr.rel (%p490) target = $region52
      $region51: #{generator_forward.2} parent=5 // pred_region
        // Predicated region
        $region53: #{generator_forward.2} parent=51 // pred_check
          %p493 = pneg %p85
        $region54: #{generator_forward.2} parent=51 // pred_check_branch
          %495 = sbr.rel (%p493) target = $region56
        $region55: #{generator_forward.2} parent=51 // pred_region
          %p496 = scmp.lt.s32.totalorder %s30, 1
          %s497 = scalar_select %p496, %s30, 1
          %p498 = scmp.lt.s32.totalorder %s31, 0
          %s499 = scalar_select %p498, %s31, 0
          %s500 = sadd.s32 %s499, %s497
          %s501 = smul.addr %s500, 4
          %s502 = scalar_lea.vmem %s1, %s501
        $region56: #{generator_forward.2} parent=51 // pred_fallthru
          _
        // Predicated region
        $region57: #{generator_forward.2} parent=51 // pred_check
          %p503 = pneg %p111
        $region58: #{generator_forward.2} parent=51 // pred_check_branch
          %505 = sbr.rel (%p503) target = $region60
        $region59: #{generator_forward.2} parent=51 // pred_region
          %p506 = scmp.lt.s32.totalorder %s30, 1
          %s507 = scalar_select %p506, %s30, 1
          %s508 = smul.addr %s507, 4
          %s509 = scalar_lea.vmem %s2, %s508
        $region60: #{generator_forward.2} parent=51 // pred_fallthru
          _
        // Predicated region
        $region61: #{generator_forward.2} parent=51 // pred_check
          %p510 = pneg %p137
        $region62: #{generator_forward.2} parent=51 // pred_check_branch
          %512 = sbr.rel (%p510) target = $region64
        $region63: #{generator_forward.2} parent=51 // pred_region
          %p513 = scmp.lt.s32.totalorder %s30, 1
          %s514 = scalar_select %p513, %s30, 1
          %s515 = scalar_lea.vmem %s3, %s514
        $region64: #{generator_forward.2} parent=51 // pred_fallthru
          _
        // Predicated region
        $region65: #{generator_forward.2} parent=51 // pred_check
          %p516 = pneg %p163
        $region66: #{generator_forward.2} parent=51 // pred_check_branch
          %518 = sbr.rel (%p516) target = $region68
        $region67: #{generator_forward.2} parent=51 // pred_region
          %p519 = scmp.lt.s32.totalorder %s30, 1
          %s520 = scalar_select %p519, %s30, 1
          %s521 = smul.addr %s520, 8
          %s522 = scalar_lea.vmem %s4, %s521
        $region68: #{generator_forward.2} parent=51 // pred_fallthru
          _
      $region52: #{generator_forward.2} parent=5 // pred_fallthru
        _
      %p523 = scmp.le.s32.totalorder 1, %s23
      %p524 = scmp.lt.s32.totalorder %s23, 3
      %p525 = pnand %p523, %p524
      %p526 = pneg %p525
      // Predicated region
      $region69: #{generator_forward.2} parent=5 // pred_check
        _
      $region70: #{generator_forward.2} parent=5 // pred_check_branch
        %528 = sbr.rel (%p525) target = $region72
      $region71: #{generator_forward.2} parent=5 // pred_region
        %s529 = ssub.s32 %s23, 1
        // Predicated region
        $region73: #{generator_forward.2} parent=71 // pred_check
          %p530 = pneg %p63
        $region74: #{generator_forward.2} parent=71 // pred_check_branch
          %532 = sbr.rel (%p530) target = $region76
        $region75: #{generator_forward.2} parent=71 // pred_region
          %534 = dma.done [#allocation6], 16
        $region76: #{generator_forward.2} parent=71 // pred_fallthru
          _
        %535 = sfence
        %p536 = pneg %p63
        %p537 = pneg %p60
        %p538 = scmp.lt.s32.totalorder %s33, 1
        %s539 = scalar_select %p538, %s33, 1
        %p540 = scmp.lt.s32.totalorder %s34, 0
        %s541 = scalar_select %p540, %s34, 0
        %s542 = sadd.s32 %s541, %s539
        %s543 = smul.addr %s542, 4
        %s544 = scalar_lea.vmem %s1, %s543
        %p545 = pneg %p91
        %p546 = pneg %p88
        %p547 = scmp.lt.s32.totalorder %s33, 1
        %s548 = scalar_select %p547, %s33, 1
        %s549 = smul.addr %s548, 4
        %s550 = scalar_lea.vmem %s2, %s549
        %p551 = pneg %p117
        %p552 = pneg %p114
        %p553 = scmp.lt.s32.totalorder %s33, 1
        %s554 = scalar_select %p553, %s33, 1
        %s555 = scalar_lea.vmem %s3, %s554
        %p556 = pneg %p143
        %p557 = pneg %p140
        %p558 = scmp.lt.s32.totalorder %s33, 1
        %s559 = scalar_select %p558, %s33, 1
        %s560 = smul.addr %s559, 8
        %s561 = scalar_lea.vmem %s4, %s560
        %p562 = pneg %p169
        %p563 = pneg %p166
        %p564 = scmp.lt.s32.totalorder %s35, 0
        %s565 = scalar_select %p564, %s35, 0
        %s566 = smul.addr %s565, 4
        %s567 = scalar_lea.vmem %s5, %s566
        %p568 = pneg %p195
        %p569 = pneg %p192
        %p570 = scmp.lt.s32.totalorder %s35, 0
        %s571 = scalar_select %p570, %s35, 0
        %s572 = scalar_lea.vmem %s6, %s571
        %p573 = pneg %p221
        %p574 = pneg %p218
        %p575 = pneg %p242
        %p576 = pneg %p239
        %p577 = pneg %p263
        %p578 = pneg %p260
        %p579 = pneg %p284
        %p580 = pneg %p281
        %p581 = pneg %p305
        %p582 = pneg %p302
        %p583 = pneg %p326
        %p584 = pneg %p323
        %p585 = pneg %p347
        %p586 = pneg %p344
        %p587 = pneg %p377
        %p588 = pneg %p374
        %p589 = scmp.lt.s32.totalorder %s33, 1
        %s590 = scalar_select %p589, %s33, 1
        %p591 = scmp.lt.s32.totalorder %s34, 0
        %s592 = scalar_select %p591, %s34, 0
        %p593 = scmp.lt.s32.totalorder %s35, 0
        %s594 = scalar_select %p593, %s35, 0
        %s595 = sadd.s32 %s594, %s592
        %s596 = sadd.s32 %s595, %s590
        %s597 = smul.addr %s596, 8
        %s598 = scalar_lea.vmem %s13, %s597
        %p599 = pneg %p405
        %p600 = pneg %p402
        %p601 = scmp.lt.s32.totalorder %s33, 1
        %s602 = scalar_select %p601, %s33, 1
        %p603 = scmp.lt.s32.totalorder %s34, 0
        %s604 = scalar_select %p603, %s34, 0
        %s605 = sadd.s32 %s604, %s602
        %s606 = smul.addr %s605, 8
        %s607 = scalar_lea.vmem %s14, %s606
        %p608 = pneg %p433
        %p609 = pneg %p430
        %p610 = scmp.lt.s32.totalorder %s33, 1
        %s611 = scalar_select %p610, %s33, 1
        %p612 = scmp.lt.s32.totalorder %s34, 0
        %s613 = scalar_select %p612, %s34, 0
        %s614 = sadd.s32 %s613, %s611
        %s615 = smul.addr %s614, 8
        %s616 = scalar_lea.vmem %s15, %s615
        %p617 = scmp.lt.s32.totalorder %s33, 1
        %s618 = scalar_select %p617, %s33, 1
        %p619 = scmp.lt.s32.totalorder %s34, 0
        %s620 = scalar_select %p619, %s34, 0
        %s621 = sadd.s32 %s620, %s618
        %s622 = smul.addr %s621, 4
        %s623 = scalar_lea.vmem %s1, %s622
        %p624 = scmp.lt.s32.totalorder %s33, 1
        %s625 = scalar_select %p624, %s33, 1
        %s626 = smul.addr %s625, 4
        %s627 = scalar_lea.vmem %s2, %s626
        %p628 = scmp.lt.s32.totalorder %s33, 1
        %s629 = scalar_select %p628, %s33, 1
        %s630 = scalar_lea.vmem %s3, %s629
        %p631 = scmp.lt.s32.totalorder %s33, 1
        %s632 = scalar_select %p631, %s33, 1
        %s633 = smul.addr %s632, 8
        %s634 = scalar_lea.vmem %s4, %s633
        %p635 = scmp.lt.s32.totalorder %s35, 0
        %s636 = scalar_select %p635, %s35, 0
        %s637 = smul.addr %s636, 4
        %s638 = scalar_lea.vmem %s5, %s637
        %p639 = scmp.lt.s32.totalorder %s35, 0
        %s640 = scalar_select %p639, %s35, 0
        %s641 = scalar_lea.vmem %s6, %s640
        %p642 = scmp.lt.s32.totalorder %s33, 1
        %s643 = scalar_select %p642, %s33, 1
        %p644 = scmp.lt.s32.totalorder %s34, 0
        %s645 = scalar_select %p644, %s34, 0
        %p646 = scmp.lt.s32.totalorder %s35, 0
        %s647 = scalar_select %p646, %s35, 0
        %s648 = sadd.s32 %s647, %s645
        %s649 = sadd.s32 %s648, %s643
        %s650 = smul.addr %s649, 8
        %s651 = scalar_lea.vmem %s13, %s650
        %p652 = scmp.lt.s32.totalorder %s33, 1
        %s653 = scalar_select %p652, %s33, 1
        %p654 = scmp.lt.s32.totalorder %s34, 0
        %s655 = scalar_select %p654, %s34, 0
        %s656 = sadd.s32 %s655, %s653
        %s657 = smul.addr %s656, 8
        %s658 = scalar_lea.vmem %s14, %s657
        %p659 = scmp.lt.s32.totalorder %s33, 1
        %s660 = scalar_select %p659, %s33, 1
        %p661 = scmp.lt.s32.totalorder %s34, 0
        %s662 = scalar_select %p661, %s34, 0
        %s663 = sadd.s32 %s662, %s660
        %s664 = smul.addr %s663, 8
        %s665 = scalar_lea.vmem %s15, %s664
        %v667 = vld [vmem:[%s623] sm:$0xf]
        %p668 = scmp.eq.s32.totalorder %s35, 0
        // Predicated region
        $region77: #{generator_forward.2} parent=71 // pred_check
          %p669 = pneg %p668
        $region78: #{generator_forward.2} parent=71 // pred_check_branch
          %671 = sbr.rel (%p669) target = $region80
        $region79: #{generator_forward.2} parent=71 // pred_region
          %s672 = sld [smem:[#allocation5]]
          %s673 = sld [smem:[#allocation5 + $0x1]]
          %v674 = vunpack.c.l.bf16 %v667
          %v675 = vld [vmem:[%s627] sm:$0xf]
          %v676 = vunpack.c.l.bf16 %v675
          %v677 = vld [vmem:[%s7] sm:$0x1]
          %v679 = vperm.slane %v677, 0
          %v681 = vmul.f32 %v674, %v679
          %vm682 = vcmask 261120
          %v683 = vsel %vm682, %v681, 0.0
          %684 = vadd.xlane.f32.xlu0 %v683
          %v685 = vpop.xlane.xlu0 %684
          %v686 = vld [vmem:[%s8] sm:$0x1]
          %v688 = vsel %vm682, %v686, 0
          %v691 = vsel %vm682, %v676, 0
          %693 = vmatpush.xpose.msra.mxu0 0.0
          %694 = vmatpush.xpose.msra.mxu0 0.0
          %695 = vmatpush.xpose.msra.mxu0 0.0
          %696 = vmatpush.xpose.msra.mxu0 0.0
          %697 = vmatpush.xpose.msra.mxu0 0.0
          %698 = vmatpush.xpose.msra.mxu0 0.0
          %699 = vmatpush.xpose.msra.mxu0 0.0
          %700 = vmatpush.xpose.msra.mxu0 0.0
          %701 = vmatpush.xpose.msra.mxu0 0.0
          %702 = vmatpush.xpose.msra.mxu0 0.0
          %703 = vmatpush.xpose.msra.mxu0 0.0
          %704 = vmatpush.xpose.msra.mxu0 0.0
          %705 = vmatpush.xpose.msra.mxu0 0.0
          %706 = vmatpush.xpose.msra.mxu0 0.0
          %707 = vmatpush.xpose.msra.mxu0 0.0
          %708 = vmatpush.xpose.msra.mxu0 %v691
          %709 = vmatmul.f32.gmra.mxu0 %v688
          %v710 = vpop.f32.mrf.mxu0
          %v711 = vadd.f32 0.0, %v710
          %712 = vdwg.mxu0
          %v713 = vperm.slane %v711, 0
          %v714 = vadd.f32 %v685, %v713
          %v715 = vstv %s672
          %v716 = vadd.f32 %v714, %v715
          %v717 = vld [vmem:[%s630] sm:$0x1]
          %vm718 = vcmp.eq.s32.totalorder %v717, 0
          %v719 = vsel %vm718, 1, 0
          %v720 = vperm.slane %v719, 0
          %vm721 = vcmp.eq.s32.totalorder %v720, 1
          %v722 = vsel %vm721, -1e-08, %v716
          %v723 = vpack.c.bf16 %v722, %v722
          %vm724 = vcmask 60416
          %725 = vst.msk [vmem:[#allocation2] sm:$0xf] %vm724, %v723
          %vm726 = vcmask 64512
          %v728 = vsel %vm726, %v723, 0
          %vm730 = vcmask 1043456
          %v732 = vsel %vm730, %v675, 0
          %734 = vmatpush.bf16.msra.mxu0 0
          %735 = vmatpush.bf16.msra.mxu0 0
          %736 = vmatpush.bf16.msra.mxu0 0
          %737 = vmatpush.bf16.msra.mxu0 0
          %738 = vmatpush.bf16.msra.mxu0 0
          %739 = vmatpush.bf16.msra.mxu0 0
          %740 = vmatpush.bf16.msra.mxu0 0
          %741 = vmatpush.bf16.msra.mxu0 %v732
          %742 = vmatmul.bf16.gmra.mxu0 %v728
          %v743 = vpop.f32.mrf.mxu0
          %v744 = vadd.f32 0.0, %v743
          %v745 = vpop.f32.mrf.mxu0
          %746 = vdwg.mxu0
          %v747 = vld [vmem:[%s9] sm:$0xf]
          %v748 = vld [vmem:[%s9 + $0x4] sm:$0xf]
          %v749 = vld [vmem:[%s9 + $0x8] sm:$0xf]
          %v750 = vld [vmem:[%s9 + $0xc] sm:$0xf]
          %v751 = vpack.c.bf16 %v744, %v744
          %v752 = vld [vmem:[%s10] sm:$0xf]
          %v753 = vld [vmem:[%s10 + $0x4] sm:$0xf]
          %v754 = vld [vmem:[%s10 + $0x8] sm:$0xf]
          %v755 = vld [vmem:[%s10 + $0xc] sm:$0xf]
          %v760 = vunpack.c.l.b16 %v752
          %v761 = vunpack.c.l.b16 %v753
          %v762 = vunpack.c.l.b16 %v754
          %v763 = vunpack.c.l.b16 %v755
          %v764 = vpack.c.b16 %v761, %v760
          %v765 = vpack.c.b16 %v763, %v762
          %v769 = vsel %vm682, %v751, 0
          %771 = vmatpush.bf16.msra.mxu0 0
          %772 = vmatpush.bf16.msra.mxu0 0
          %773 = vmatpush.bf16.msra.mxu0 0
          %774 = vmatpush.bf16.msra.mxu0 0
          %775 = vmatpush.bf16.msra.mxu0 0
          %776 = vmatpush.bf16.msra.mxu0 0
          %777 = vmatpush.bf16.msra.mxu0 %v765
          %778 = vmatpush.bf16.msra.mxu0 %v764
          %779 = vmatmul.bf16.gmra.mxu0 %v769
          %v780 = vpop.f32.mrf.mxu0
          %v781 = vadd.f32 0.0, %v780
          %v782 = vpop.f32.mrf.mxu0
          %783 = vdwg.mxu0
          %v788 = vunpack.c.l.b16 %v747
          %v789 = vunpack.c.l.b16 %v748
          %v790 = vunpack.c.l.b16 %v749
          %v791 = vunpack.c.l.b16 %v750
          %v792 = vpack.c.b16 %v789, %v788
          %v793 = vpack.c.b16 %v791, %v790
          %v797 = vsel %vm682, %v667, 0
          %799 = vmatpush.bf16.msra.mxu0 0
          %800 = vmatpush.bf16.msra.mxu0 0
          %801 = vmatpush.bf16.msra.mxu0 0
          %802 = vmatpush.bf16.msra.mxu0 0
          %803 = vmatpush.bf16.msra.mxu0 0
          %804 = vmatpush.bf16.msra.mxu0 0
          %805 = vmatpush.bf16.msra.mxu0 %v793
          %806 = vmatpush.bf16.msra.mxu0 %v792
          %807 = vmatmul.bf16.gmra.mxu0 %v797
          %v808 = vpop.f32.mrf.mxu0
          %v809 = vadd.f32 %v781, %v808
          %v810 = vpop.f32.mrf.mxu0
          %811 = vdwg.mxu0
          %v812 = vld [vmem:[%s11] sm:$0x1]
          %v814 = vperm.slane %v812, 0
          %v816 = vadd.f32 %v809, %v814
          %v817 = vld [vmem:[%s12] sm:$0x1]
          %v819 = vperm.slane %v817, 0
          %v821 = vmul.f32 %v816, %v819
          %v822 = vsel %vm682, %v821, 0.0
          %823 = vadd.xlane.f32.xlu0 %v822
          %v824 = vpop.xlane.xlu0 %823
          %v825 = vstv %s673
          %v826 = vadd.f32 %v824, %v825
          %v827 = vxor.u32 %v826, 2147483648
          %v828 = vmul.f32 %v827, 1.442695
          %v829 = vpow.pop %v828
          %v830 = vadd.f32 %v829, 1.0
          %v831 = vrcp.pop %v830
          %v832 = vmul.f32 %v830, %v831
          %v833 = vsub.f32 1.0, %v832
          %v834 = vmul.f32 %v831, %v833
          %v835 = vadd.f32 %v831, %v834
          %vm836 = vweird.f32 %v830
          %vm837 = vweird.f32 %v831
          %vm838 = vmor %vm836, %vm837
          %v839 = vsel %vm838, %v831, %v835
          %v840 = vand.u32 2147483647, %v830
          %vm841 = vcmp.eq.f32.partialorder %v840, 8.507059e+37
          %v842 = vand.u32 %v830, 2147483648
          %v843 = vor.u32 1.1754944e-38, %v842
          %v844 = vsel %vm841, %v843, %v839
          %v845 = vmul.f32 1.0, %v844
          %vm846 = vcmask 7168
          %847 = vst.msk [vmem:[%s665] sm:$0xff] %vm846, %v845
          %848 = vst.msk [vmem:[#allocation3] sm:$0xff] %vm846, -inf
          %849 = vst.msk [vmem:[#allocation4] sm:$0xff] %vm846, 0.0
        $region80: #{generator_forward.2} parent=71 // pred_fallthru
          _
        %v850 = vld [vmem:[%s638] sm:$0xf]
        %v851 = vld [vmem:[%s638 + $0x4] sm:$0xf]
        %v852 = vld [vmem:[%s638 + $0x8] sm:$0xf]
        %v853 = vld [vmem:[%s638 + $0xc] sm:$0xf]
        %v854 = vld [vmem:[%s641] sm:$0x1]
        %v856 = vperm.slane %v854, 0
        %v862 = vunpack.c.l.b16 %v850
        %v863 = vunpack.c.l.b16 %v851
        %v864 = vunpack.c.l.b16 %v852
        %v865 = vunpack.c.l.b16 %v853
        %v866 = vpack.c.b16 %v863, %v862
        %v867 = vpack.c.b16 %v865, %v864
        %vm870 = vcmask 261120
        %v872 = vsel %vm870, %v667, 0
        %874 = vmatpush.bf16.msra.mxu0 0
        %875 = vmatpush.bf16.msra.mxu0 0
        %876 = vmatpush.bf16.msra.mxu0 0
        %877 = vmatpush.bf16.msra.mxu0 0
        %878 = vmatpush.bf16.msra.mxu0 0
        %879 = vmatpush.bf16.msra.mxu0 0
        %880 = vmatpush.bf16.msra.mxu0 %v867
        %881 = vmatpush.bf16.msra.mxu0 %v866
        %882 = vmatmul.bf16.gmra.mxu0 %v872
        %v883 = vpop.f32.mrf.mxu0
        %v884 = vadd.f32 %v856, %v883
        %v885 = vpop.f32.mrf.mxu0
        %886 = vdwg.mxu0
        %v887 = vlaneseq
        %v888 = vand.u32 %v887, 127
        %s889 = smul.u32 %s35, 128
        %v890 = vstv %s889
        %v891 = vadd.s32 %v888, %v890
        %v892 = vld [vmem:[%s634] sm:$0xff]
        %893 = vset.pattern.permute.xlu0 0
        %894 = vperm.xlu0 %893, %v892
        %v895 = vpop.permute.xlu0 %894
        %vm896 = vcmp.eq.s32.totalorder %v891, %v895
        %v897 = vsel %vm896, 1, 0
        %v898 = vcvt.s32.f32 %v897
        %v899 = vpack.c.bf16 %v898, %v898
        %v900 = vld [vmem:[#allocation2] sm:$0xf]
        %vm901 = vcmask 64512
        %v903 = vsel %vm901, %v900, 0
        %vm905 = vcmask 1043456
        %v907 = vsel %vm905, %v899, 0
        %909 = vmatpush.bf16.msra.mxu0 0
        %910 = vmatpush.bf16.msra.mxu0 0
        %911 = vmatpush.bf16.msra.mxu0 0
        %912 = vmatpush.bf16.msra.mxu0 0
        %913 = vmatpush.bf16.msra.mxu0 0
        %914 = vmatpush.bf16.msra.mxu0 0
        %915 = vmatpush.bf16.msra.mxu0 0
        %916 = vmatpush.bf16.msra.mxu0 %v907
        %917 = vmatmul.bf16.gmra.mxu0 %v903
        %v918 = vpop.f32.mrf.mxu0
        %v919 = vadd.f32 0.0, %v918
        %v920 = vpop.f32.mrf.mxu0
        %921 = vdwg.mxu0
        %v922 = vld [vmem:[%s665] sm:$0xff]
        %v923 = vsub.f32 %v919, %v884
        %925 = vset.pattern.permute.xlu0 0
        %926 = vperm.xlu0 %925, %v922
        %v927 = vpop.permute.xlu0 %926
        %v929 = vmul.f32 %v927, %v923
        %v930 = vadd.f32 %v884, %v929
        %v931 = vld [vmem:[#allocation3] sm:$0xff]
        %932 = vmax.xlane.f32.xlu0 %v930
        %v933 = vpop.xlane.xlu0 %932
        %v934 = vmax.f32 %v931, %v933
        %v935 = vld [vmem:[#allocation4] sm:$0xff]
        %v936 = vsub.f32 %v931, %v934
        %v937 = vmul.f32 %v936, 1.442695
        %v938 = vpow.pop %v937
        %v939 = vmul.f32 %v935, %v938
        %941 = vset.pattern.permute.xlu0 0
        %942 = vperm.xlu0 %941, %v934
        %v943 = vpop.permute.xlu0 %942
        %v945 = vsub.f32 %v930, %v943
        %v946 = vmul.f32 %v945, 1.442695
        %v947 = vpow.pop %v946
        %948 = vadd.xlane.f32.xlu0 %v947
        %v949 = vpop.xlane.xlu0 %948
        %v950 = vadd.f32 %v939, %v949
        %vm951 = vcmask 7168
        %952 = vst.msk [vmem:[#allocation4] sm:$0xff] %vm951, %v950
        %953 = vst.msk [vmem:[#allocation3] sm:$0xff] %vm951, %v934
        %954 = vst [vmem:[%s651] sm:$0xff] %v930
        // Predicated region
        $region81: #{generator_forward.2} parent=71 // pred_check
          %p955 = pneg %p668
        $region82: #{generator_forward.2} parent=71 // pred_check_branch
          %957 = sbr.rel (%p955) target = $region84
        $region83: #{generator_forward.2} parent=71 // pred_region
          %v958 = vld [vmem:[#allocation3] sm:$0xff]
          %v959 = vld [vmem:[#allocation4] sm:$0xff]
          %v960 = vlog2.pop %v959
          %v961 = vmul.f32 %v960, 0.6931472
          %v962 = vadd.f32 %v958, %v961
          %963 = vst.msk [vmem:[%s658] sm:$0xff] %vm951, %v962
        $region84: #{generator_forward.2} parent=71 // pred_fallthru
          _
        %p964 = scmp.lt.s32.totalorder %s33, 1
        %s965 = scalar_select %p964, %s33, 1
        %p966 = scmp.lt.s32.totalorder %s34, 0
        %s967 = scalar_select %p966, %s34, 0
        %p968 = scmp.lt.s32.totalorder %s35, 0
        %s969 = scalar_select %p968, %s35, 0
        %s970 = sadd.s32 %s969, %s967
        %s971 = sadd.s32 %s970, %s965
        %s972 = smul.addr %s971, 8
        %s973 = scalar_lea.vmem %s13, %s972
        %p974 = scmp.lt.s32.totalorder %s33, 1
        %s975 = scalar_select %p974, %s33, 1
        %p976 = scmp.lt.s32.totalorder %s34, 0
        %s977 = scalar_select %p976, %s34, 0
        %s978 = sadd.s32 %s977, %s975
        %s979 = smul.addr %s978, 8
        %s980 = scalar_lea.vmem %s14, %s979
        %p981 = scmp.lt.s32.totalorder %s33, 1
        %s982 = scalar_select %p981, %s33, 1
        %p983 = scmp.lt.s32.totalorder %s34, 0
        %s984 = scalar_select %p983, %s34, 0
        %s985 = sadd.s32 %s984, %s982
        %s986 = smul.addr %s985, 8
        %s987 = scalar_lea.vmem %s15, %s986
        // Predicated region
        $region85: #{generator_forward.2} parent=71 // pred_check
          %p988 = pneg %p374
        $region86: #{generator_forward.2} parent=71 // pred_check_branch
          %990 = sbr.rel (%p988) target = $region88
        $region87: #{generator_forward.2} parent=71 // pred_region
          _
        $region88: #{generator_forward.2} parent=71 // pred_fallthru
          _
        // Predicated region
        $region89: #{generator_forward.2} parent=71 // pred_check
          %p991 = pneg %p402
        $region90: #{generator_forward.2} parent=71 // pred_check_branch
          %993 = sbr.rel (%p991) target = $region92
        $region91: #{generator_forward.2} parent=71 // pred_region
          _
        $region92: #{generator_forward.2} parent=71 // pred_fallthru
          _
        // Predicated region
        $region93: #{generator_forward.2} parent=71 // pred_check
          %p994 = pneg %p430
        $region94: #{generator_forward.2} parent=71 // pred_check_branch
          %996 = sbr.rel (%p994) target = $region96
        $region95: #{generator_forward.2} parent=71 // pred_region
          _
        $region96: #{generator_forward.2} parent=71 // pred_fallthru
          _
      $region72: #{generator_forward.2} parent=5 // pred_fallthru
        _
      %p997 = scmp.le.s32.totalorder 2, %s23
      // Predicated region
      $region97: #{generator_forward.2} parent=5 // pred_check
        %p998 = pneg %p997
      $region98: #{generator_forward.2} parent=5 // pred_check_branch
        %1000 = sbr.rel (%p998) target = $region100
      $region99: #{generator_forward.2} parent=5 // pred_region
        %s1001 = ssub.s32 %s23, 2
        // Predicated region
        $region101: #{generator_forward.2} parent=99 // pred_check
          %p1002 = pneg %p380
        $region102: #{generator_forward.2} parent=99 // pred_check_branch
          %1004 = sbr.rel (%p1002) target = $region104
        $region103: #{generator_forward.2} parent=99 // pred_region
          %p1005 = scmp.lt.s32.totalorder %s36, 1
          %s1006 = scalar_select %p1005, %s36, 1
          %p1007 = scmp.lt.s32.totalorder %s37, 0
          %s1008 = scalar_select %p1007, %s37, 0
          %p1009 = scmp.lt.s32.totalorder %s38, 0
          %s1010 = scalar_select %p1009, %s38, 0
          %s1011 = sadd.s32 %s1010, %s1008
          %s1012 = sadd.s32 %s1011, %s1006
          %s1013 = smul.addr %s1012, 8
          %s1014 = scalar_lea.vmem %s13, %s1013
        $region104: #{generator_forward.2} parent=99 // pred_fallthru
          _
        // Predicated region
        $region105: #{generator_forward.2} parent=99 // pred_check
          %p1015 = pneg %p408
        $region106: #{generator_forward.2} parent=99 // pred_check_branch
          %1017 = sbr.rel (%p1015) target = $region108
        $region107: #{generator_forward.2} parent=99 // pred_region
          %p1018 = scmp.lt.s32.totalorder %s36, 1
          %s1019 = scalar_select %p1018, %s36, 1
          %p1020 = scmp.lt.s32.totalorder %s37, 0
          %s1021 = scalar_select %p1020, %s37, 0
          %s1022 = sadd.s32 %s1021, %s1019
          %s1023 = smul.addr %s1022, 8
          %s1024 = scalar_lea.vmem %s14, %s1023
        $region108: #{generator_forward.2} parent=99 // pred_fallthru
          _
        // Predicated region
        $region109: #{generator_forward.2} parent=99 // pred_check
          %p1025 = pneg %p436
        $region110: #{generator_forward.2} parent=99 // pred_check_branch
          %1027 = sbr.rel (%p1025) target = $region112
        $region111: #{generator_forward.2} parent=99 // pred_region
          %p1028 = scmp.lt.s32.totalorder %s36, 1
          %s1029 = scalar_select %p1028, %s36, 1
          %p1030 = scmp.lt.s32.totalorder %s37, 0
          %s1031 = scalar_select %p1030, %s37, 0
          %s1032 = sadd.s32 %s1031, %s1029
          %s1033 = smul.addr %s1032, 8
          %s1034 = scalar_lea.vmem %s15, %s1033
        $region112: #{generator_forward.2} parent=99 // pred_fallthru
          _
      $region100: #{generator_forward.2} parent=5 // pred_fallthru
        _
    $region6: #{generator_forward.2} parent=1 // loop_footer
      %s27 = sadd.s32 1, %s23
    $region7: #{generator_forward.2} parent=1 // loop_footer_branch
      %22 = sbr.rel target = $region3
    $region8: #{generator_forward.2} parent=1 // loop_exit
      _
    %1035 = vsyncpa [#allocation6], 1
    %s1036 = scalar_lea.sflag [#allocation6], 1
    %1037 = vsyncpa %s1036, 1

// kernel: generator_forward.3
$region0: #{generator_forward.3}
  #allocation0 [shape = 'u32[]', space=smem, size = 0x4, offset = 0x4, fixed_abs, tag = 'smem constant byte address 0x4 - core index']
  #allocation1 [shape = 'u32[72,128]{1,0:T(1,128)}', space=vmem, size = 0x9000, scoped, tag = 'internal scratch']
  %s0 = inlined_call_operand.vmem [shape: f32[16,128], index: 0, kind: input, shape index: {}, may-alias: {0,2}]
  %s1 = inlined_call_operand.vmem [shape: f32[16,1], index: 1, kind: input, shape index: {}]
  %s2 = inlined_call_operand.vmem [shape: f32[16,128], index: 2, kind: output, shape index: {}, may-alias: {0,2}]
  %s3 = sld [smem:[#allocation0]]
  $region18: #{generator_forward.3} parent=0
    _
  %s5 = ssub.s32 1, %s3
  %s6 = scalar_select 0, %s5, %s3
  // Predicated region
  $region2: #{generator_forward.3} parent=0 // pred_check
    _
  $region3: #{generator_forward.3} parent=0 // pred_check_branch
    %8 = sbr.rel (0) target = $region5
  $region4: #{generator_forward.3} parent=0 // pred_region
    _
  $region5: #{generator_forward.3} parent=0 // pred_fallthru
    _
  // Predicated region
  $region6: #{generator_forward.3} parent=0 // pred_check
    _
  $region7: #{generator_forward.3} parent=0 // pred_check_branch
    %10 = sbr.rel (0) target = $region9
  $region8: #{generator_forward.3} parent=0 // pred_region
    _
  $region9: #{generator_forward.3} parent=0 // pred_fallthru
    _
  %v11 = vld [vmem:[%s0] sm:$0xff]
  %v12 = vld [vmem:[%s0 + $0x8] sm:$0xff]
  %v13 = vld [vmem:[%s1] sm:$0xff]
  %v14 = vld [vmem:[%s1 + $0x8] sm:$0xff]
  %16 = vset.pattern.permute.xlu0 0
  %17 = vperm.xlu0 %16, %v13
  %v18 = vpop.permute.xlu0 %17
  %21 = vset.pattern.permute.xlu0 0
  %22 = vperm.xlu0 %21, %v14
  %v23 = vpop.permute.xlu0 %22
  %v25 = vsub.f32 %v11, %v18
  %v26 = vsub.f32 %v12, %v23
  %27 = vst [vmem:[%s2] sm:$0xff] %v25
  %28 = vst [vmem:[%s2 + $0x8] sm:$0xff] %v26
  // Predicated region
  $region10: #{generator_forward.3} parent=0 // pred_check
    _
  $region11: #{generator_forward.3} parent=0 // pred_check_branch
    %30 = sbr.rel (0) target = $region13
  $region12: #{generator_forward.3} parent=0 // pred_region
    _
  $region13: #{generator_forward.3} parent=0 // pred_fallthru
    _
  // Predicated region
  $region14: #{generator_forward.3} parent=0 // pred_check
    _
  $region15: #{generator_forward.3} parent=0 // pred_check_branch
    %32 = sbr.rel (0) target = $region17
  $region16: #{generator_forward.3} parent=0 // pred_region
    _
  $region17: #{generator_forward.3} parent=0 // pred_fallthru
    _

// kernel: generator_forward.2
$region0: #{generator_forward.2}
  #allocation0 [shape = 'u32[]', space=smem, size = 0x4, offset = 0x4, fixed_abs, tag = 'smem constant byte address 0x4 - core index']
  #allocation1 [shape = 'u32[72,128]{1,0:T(1,128)}', space=vmem, size = 0x9000, scoped, tag = 'internal scratch']
  #allocation2 [shape = 'bf16[8,8]{1,0:T(8,128)(2,1)}', space=vmem, size = 0x800, scoped, tag = 'scratch operand']
  #allocation3 [shape = 'f32[8,1]{1,0:T(8,128)}', space=vmem, size = 0x1000, scoped, tag = 'scratch operand']
  #allocation4 [shape = 'f32[8,1]{1,0:T(8,128)}', space=vmem, size = 0x1000, scoped, tag = 'scratch operand']
  %s0 = inlined_call_operand.vmem [shape: f32[2], index: 0, kind: input, shape index: {}]
  %s1 = inlined_call_operand.vmem [shape: bf16[2,8,32], index: 1, kind: input, shape index: {}]
  %s2 = inlined_call_operand.vmem [shape: bf16[2,8,32], index: 2, kind: input, shape index: {}]
  %s3 = inlined_call_operand.vmem [shape: s32[2,1,8], index: 3, kind: input, shape index: {}]
  %s4 = inlined_call_operand.vmem [shape: s32[2,8,1], index: 4, kind: input, shape index: {}]
  %s5 = inlined_call_operand.vmem [shape: bf16[32,128], index: 5, kind: input, shape index: {}]
  %s6 = inlined_call_operand.vmem [shape: f32[1,128], index: 6, kind: input, shape index: {}]
  %s7 = inlined_call_operand.vmem [shape: f32[1,32], index: 7, kind: input, shape index: {}]
  %s8 = inlined_call_operand.vmem [shape: f32[1,32], index: 8, kind: input, shape index: {}]
  %s9 = inlined_call_operand.vmem [shape: bf16[32,32], index: 9, kind: input, shape index: {}]
  %s10 = inlined_call_operand.vmem [shape: bf16[32,32], index: 10, kind: input, shape index: {}]
  %s11 = inlined_call_operand.vmem [shape: f32[1,32], index: 11, kind: input, shape index: {}]
  %s12 = inlined_call_operand.vmem [shape: f32[1,32], index: 12, kind: input, shape index: {}]
  %s13 = inlined_call_operand.vmem [shape: f32[2,8,128], index: 13, kind: output, shape index: {0}]
  %s14 = inlined_call_operand.vmem [shape: f32[2,8,1], index: 14, kind: output, shape index: {1}]
  %s15 = inlined_call_operand.vmem [shape: f32[2,8,1], index: 15, kind: output, shape index: {2}]
  %16 = xla_tuple %s13, %s14, %s15
  %s17 = sld [smem:[#allocation0]]
  $region113: #{generator_forward.2} parent=0
    _
  %s19 = ssub.s32 1, %s17
  %s20 = scalar_select 0, %s19, %s17
  $region1: #{generator_forward.2} parent=0
    #allocation5 [shape = 'u8[512]{0}', space=smem, size = 0x200, scoped, tag = 'input window, operand 0, single buffered']
    #allocation6 [shape = 's32[2]{0}', space=sflag, size = 0x8, scoped, tag = 'scoped memory for generator_forward.2']
    %21 = vsyncpa [#allocation6], 0
    loop: start=0, step=1, limit=4
    $region2: #{generator_forward.2} parent=1 // loop_pre_header
      _
    $region3: #{generator_forward.2} parent=1 // loop_header
      %s23 = sphi 0, %s27
      %p24 = scmp.ge.s32.totalorder %s23, 4
      %s30 = sphi 0, %s49
      %s31 = sphi 0, %s45
      %s32 = sphi 0, %s41
      %s33 = sphi 0, %s30
      %s34 = sphi 0, %s31
      %s35 = sphi 0, %s32
      %s36 = sphi 0, %s33
      %s37 = sphi 0, %s34
      %s38 = sphi 0, %s35
      %s50 = sphi 0, %s50
      %s52 = sphi 0, %s50
      %s53 = sphi 0, %s52
      %s67 = sphi 0, %s53
      %s75 = sphi 0, %s77
      %s78 = sphi 0, %s75
      %s79 = sphi 0, %s78
      %s95 = sphi 0, %s79
      %s101 = sphi 0, %s103
      %s104 = sphi 0, %s101
      %s105 = sphi 0, %s104
      %s121 = sphi 0, %s105
      %s127 = sphi 0, %s129
      %s130 = sphi 0, %s127
      %s131 = sphi 0, %s130
      %s147 = sphi 0, %s131
      %s153 = sphi 0, %s155
      %s156 = sphi 0, %s153
      %s157 = sphi 0, %s156
      %s173 = sphi 0, %s157
      %s179 = sphi 0, %s181
      %s182 = sphi 0, %s179
      %s183 = sphi 0, %s182
      %s199 = sphi 0, %s183
      %s205 = sphi 0, %s207
      %s208 = sphi 0, %s205
      %s209 = sphi 0, %s208
      %s225 = sphi 0, %s209
      %s229 = sphi 0, %s229
      %s231 = sphi 0, %s229
      %s232 = sphi 0, %s231
      %s246 = sphi 0, %s232
      %s250 = sphi 0, %s250
      %s252 = sphi 0, %s250
      %s253 = sphi 0, %s252
      %s267 = sphi 0, %s253
      %s271 = sphi 0, %s271
      %s273 = sphi 0, %s271
      %s274 = sphi 0, %s273
      %s288 = sphi 0, %s274
      %s292 = sphi 0, %s292
      %s294 = sphi 0, %s292
      %s295 = sphi 0, %s294
      %s309 = sphi 0, %s295
      %s313 = sphi 0, %s313
      %s315 = sphi 0, %s313
      %s316 = sphi 0, %s315
      %s330 = sphi 0, %s316
      %s334 = sphi 0, %s334
      %s336 = sphi 0, %s334
      %s337 = sphi 0, %s336
      %s351 = sphi 0, %s337
      %s361 = sphi 0, %s363
      %s364 = sphi 0, %s361
      %s365 = sphi 0, %s364
      %s381 = sphi 0, %s365
      %s389 = sphi 0, %s391
      %s392 = sphi 0, %s389
      %s393 = sphi 0, %s392
      %s409 = sphi 0, %s393
      %s417 = sphi 0, %s419
      %s420 = sphi 0, %s417
      %s421 = sphi 0, %s420
      %s437 = sphi 0, %s421
    $region4: #{generator_forward.2} parent=1 // loop_header_branch
      %26 = sbr.rel (%p24) target = $region8
    $region5: #{generator_forward.2} parent=1 // loop_body
      %s28 = ssub.s32 %s23, 1
      %s29 = ssub.s32 %s23, 2
      %s39 = sadd.s32 1, %s32
      %p40 = scmp.ge.s32.totalorder %s39, 1
      %s41 = scalar_select %p40, 0, %s39
      %s42 = sadd.s32 1, %s31
      %s43 = scalar_select %p40, %s42, %s31
      %p44 = scmp.ge.s32.totalorder %s43, 1
      %s45 = scalar_select %p44, 0, %s43
      %s46 = sadd.s32 1, %s30
      %s47 = scalar_select %p44, %s46, %s30
      %p48 = scmp.ge.s32.totalorder %s47, 2
      %s49 = scalar_select %p48, 0, %s47
      %s51 = sadd.s32 %s50, 1
      %p54 = scmp.eq.s32.totalorder %s23, 1
      %p55 = scmp.ne.s32.totalorder %s50, %s52
      %p56 = scmp.eq.s32.totalorder %s23, 0
      %p57 = por %p55, %p56
      %p58 = scmp.ne.s32.totalorder %s50, %s52
      %p59 = scmp.eq.s32.totalorder %s28, 1
      %p60 = por %p58, %p59
      %p61 = scmp.ne.s32.totalorder %s52, %s53
      %p62 = scmp.eq.s32.totalorder %s28, 0
      %p63 = por %p61, %p62
      %p64 = scmp.ne.s32.totalorder %s52, %s53
      %p65 = scmp.eq.s32.totalorder %s29, 1
      %p66 = por %p64, %p65
      %p68 = scmp.ne.s32.totalorder %s53, %s67
      %p69 = scmp.eq.s32.totalorder %s29, 0
      %p70 = por %p68, %p69
      %s71 = ssub.s32 %s30, %s49
      %s72 = ssub.s32 %s31, %s45
      %s73 = sor.u32 %s71, %s72
      %p74 = scmp.eq.s32.totalorder %s73, 0
      %s76 = sadd.s32 %s75, 1
      %s77 = scalar_select %p74, %s75, %s76
      %p80 = pneg %p74
      %p81 = scmp.eq.s32.totalorder %s23, 1
      %p82 = por %p80, %p81
      %p83 = scmp.ne.s32.totalorder %s75, %s78
      %p84 = scmp.eq.s32.totalorder %s23, 0
      %p85 = por %p83, %p84
      %p86 = scmp.ne.s32.totalorder %s75, %s78
      %p87 = scmp.eq.s32.totalorder %s28, 1
      %p88 = por %p86, %p87
      %p89 = scmp.ne.s32.totalorder %s78, %s79
      %p90 = scmp.eq.s32.totalorder %s28, 0
      %p91 = por %p89, %p90
      %p92 = scmp.ne.s32.totalorder %s78, %s79
      %p93 = scmp.eq.s32.totalorder %s29, 1
      %p94 = por %p92, %p93
      %p96 = scmp.ne.s32.totalorder %s79, %s95
      %p97 = scmp.eq.s32.totalorder %s29, 0
      %p98 = por %p96, %p97
      %s99 = ssub.s32 %s30, %s49
      %p100 = scmp.eq.s32.totalorder %s99, 0
      %s102 = sadd.s32 %s101, 1
      %s103 = scalar_select %p100, %s101, %s102
      %p106 = pneg %p100
      %p107 = scmp.eq.s32.totalorder %s23, 1
      %p108 = por %p106, %p107
      %p109 = scmp.ne.s32.totalorder %s101, %s104
      %p110 = scmp.eq.s32.totalorder %s23, 0
      %p111 = por %p109, %p110
      %p112 = scmp.ne.s32.totalorder %s101, %s104
      %p113 = scmp.eq.s32.totalorder %s28, 1
      %p114 = por %p112, %p113
      %p115 = scmp.ne.s32.totalorder %s104, %s105
      %p116 = scmp.eq.s32.totalorder %s28, 0
      %p117 = por %p115, %p116
      %p118 = scmp.ne.s32.totalorder %s104, %s105
      %p119 = scmp.eq.s32.totalorder %s29, 1
      %p120 = por %p118, %p119
      %p122 = scmp.ne.s32.totalorder %s105, %s121
      %p123 = scmp.eq.s32.totalorder %s29, 0
      %p124 = por %p122, %p123
      %s125 = ssub.s32 %s30, %s49
      %p126 = scmp.eq.s32.totalorder %s125, 0
      %s128 = sadd.s32 %s127, 1
      %s129 = scalar_select %p126, %s127, %s128
      %p132 = pneg %p126
      %p133 = scmp.eq.s32.totalorder %s23, 1
      %p134 = por %p132, %p133
      %p135 = scmp.ne.s32.totalorder %s127, %s130
      %p136 = scmp.eq.s32.totalorder %s23, 0
      %p137 = por %p135, %p136
      %p138 = scmp.ne.s32.totalorder %s127, %s130
      %p139 = scmp.eq.s32.totalorder %s28, 1
      %p140 = por %p138, %p139
      %p141 = scmp.ne.s32.totalorder %s130, %s131
      %p142 = scmp.eq.s32.totalorder %s28, 0
      %p143 = por %p141, %p142
      %p144 = scmp.ne.s32.totalorder %s130, %s131
      %p145 = scmp.eq.s32.totalorder %s29, 1
      %p146 = por %p144, %p145
      %p148 = scmp.ne.s32.totalorder %s131, %s147
      %p149 = scmp.eq.s32.totalorder %s29, 0
      %p150 = por %p148, %p149
      %s151 = ssub.s32 %s30, %s49
      %p152 = scmp.eq.s32.totalorder %s151, 0
      %s154 = sadd.s32 %s153, 1
      %s155 = scalar_select %p152, %s153, %s154
      %p158 = pneg %p152
      %p159 = scmp.eq.s32.totalorder %s23, 1
      %p160 = por %p158, %p159
      %p161 = scmp.ne.s32.totalorder %s153, %s156
      %p162 = scmp.eq.s32.totalorder %s23, 0
      %p163 = por %p161, %p162
      %p164 = scmp.ne.s32.totalorder %s153, %s156
      %p165 = scmp.eq.s32.totalorder %s28, 1
      %p166 = por %p164, %p165
      %p167 = scmp.ne.s32.totalorder %s156, %s157
      %p168 = scmp.eq.s32.totalorder %s28, 0
      %p169 = por %p167, %p168
      %p170 = scmp.ne.s32.totalorder %s156, %s157
      %p171 = scmp.eq.s32.totalorder %s29, 1
      %p172 = por %p170, %p171
      %p174 = scmp.ne.s32.totalorder %s157, %s173
      %p175 = scmp.eq.s32.totalorder %s29, 0
      %p176 = por %p174, %p175
      %s177 = ssub.s32 %s32, %s41
      %p178 = scmp.eq.s32.totalorder %s177, 0
      %s180 = sadd.s32 %s179, 1
      %s181 = scalar_select %p178, %s179, %s180
      %p184 = pneg %p178
      %p185 = scmp.eq.s32.totalorder %s23, 1
      %p186 = por %p184, %p185
      %p187 = scmp.ne.s32.totalorder %s179, %s182
      %p188 = scmp.eq.s32.totalorder %s23, 0
      %p189 = por %p187, %p188
      %p190 = scmp.ne.s32.totalorder %s179, %s182
      %p191 = scmp.eq.s32.totalorder %s28, 1
      %p192 = por %p190, %p191
      %p193 = scmp.ne.s32.totalorder %s182, %s183
      %p194 = scmp.eq.s32.totalorder %s28, 0
      %p195 = por %p193, %p194
      %p196 = scmp.ne.s32.totalorder %s182, %s183
      %p197 = scmp.eq.s32.totalorder %s29, 1
      %p198 = por %p196, %p197
      %p200 = scmp.ne.s32.totalorder %s183, %s199
      %p201 = scmp.eq.s32.totalorder %s29, 0
      %p202 = por %p200, %p201
      %s203 = ssub.s32 %s32, %s41
      %p204 = scmp.eq.s32.totalorder %s203, 0
      %s206 = sadd.s32 %s205, 1
      %s207 = scalar_select %p204, %s205, %s206
      %p210 = pneg %p204
      %p211 = scmp.eq.s32.totalorder %s23, 1
      %p212 = por %p210, %p211
      %p213 = scmp.ne.s32.totalorder %s205, %s208
      %p214 = scmp.eq.s32.totalorder %s23, 0
      %p215 = por %p213, %p214
      %p216 = scmp.ne.s32.totalorder %s205, %s208
      %p217 = scmp.eq.s32.totalorder %s28, 1
      %p218 = por %p216, %p217
      %p219 = scmp.ne.s32.totalorder %s208, %s209
      %p220 = scmp.eq.s32.totalorder %s28, 0
      %p221 = por %p219, %p220
      %p222 = scmp.ne.s32.totalorder %s208, %s209
      %p223 = scmp.eq.s32.totalorder %s29, 1
      %p224 = por %p222, %p223
      %p226 = scmp.ne.s32.totalorder %s209, %s225
      %p227 = scmp.eq.s32.totalorder %s29, 0
      %p228 = por %p226, %p227
      %s230 = sadd.s32 %s229, 1
      %p233 = scmp.eq.s32.totalorder %s23, 1
      %p234 = scmp.ne.s32.totalorder %s229, %s231
      %p235 = scmp.eq.s32.totalorder %s23, 0
      %p236 = por %p234, %p235
      %p237 = scmp.ne.s32.totalorder %s229, %s231
      %p238 = scmp.eq.s32.totalorder %s28, 1
      %p239 = por %p237, %p238
      %p240 = scmp.ne.s32.totalorder %s231, %s232
      %p241 = scmp.eq.s32.totalorder %s28, 0
      %p242 = por %p240, %p241
      %p243 = scmp.ne.s32.totalorder %s231, %s232
      %p244 = scmp.eq.s32.totalorder %s29, 1
      %p245 = por %p243, %p244
      %p247 = scmp.ne.s32.totalorder %s232, %s246
      %p248 = scmp.eq.s32.totalorder %s29, 0
      %p249 = por %p247, %p248
      %s251 = sadd.s32 %s250, 1
      %p254 = scmp.eq.s32.totalorder %s23, 1
      %p255 = scmp.ne.s32.totalorder %s250, %s252
      %p256 = scmp.eq.s32.totalorder %s23, 0
      %p257 = por %p255, %p256
      %p258 = scmp.ne.s32.totalorder %s250, %s252
      %p259 = scmp.eq.s32.totalorder %s28, 1
      %p260 = por %p258, %p259
      %p261 = scmp.ne.s32.totalorder %s252, %s253
      %p262 = scmp.eq.s32.totalorder %s28, 0
      %p263 = por %p261, %p262
      %p264 = scmp.ne.s32.totalorder %s252, %s253
      %p265 = scmp.eq.s32.totalorder %s29, 1
      %p266 = por %p264, %p265
      %p268 = scmp.ne.s32.totalorder %s253, %s267
      %p269 = scmp.eq.s32.totalorder %s29, 0
      %p270 = por %p268, %p269
      %s272 = sadd.s32 %s271, 1
      %p275 = scmp.eq.s32.totalorder %s23, 1
      %p276 = scmp.ne.s32.totalorder %s271, %s273
      %p277 = scmp.eq.s32.totalorder %s23, 0
      %p278 = por %p276, %p277
      %p279 = scmp.ne.s32.totalorder %s271, %s273
      %p280 = scmp.eq.s32.totalorder %s28, 1
      %p281 = por %p279, %p280
      %p282 = scmp.ne.s32.totalorder %s273, %s274
      %p283 = scmp.eq.s32.totalorder %s28, 0
      %p284 = por %p282, %p283
      %p285 = scmp.ne.s32.totalorder %s273, %s274
      %p286 = scmp.eq.s32.totalorder %s29, 1
      %p287 = por %p285, %p286
      %p289 = scmp.ne.s32.totalorder %s274, %s288
      %p290 = scmp.eq.s32.totalorder %s29, 0
      %p291 = por %p289, %p290
      %s293 = sadd.s32 %s292, 1
      %p296 = scmp.eq.s32.totalorder %s23, 1
      %p297 = scmp.ne.s32.totalorder %s292, %s294
      %p298 = scmp.eq.s32.totalorder %s23, 0
      %p299 = por %p297, %p298
      %p300 = scmp.ne.s32.totalorder %s292, %s294
      %p301 = scmp.eq.s32.totalorder %s28, 1
      %p302 = por %p300, %p301
      %p303 = scmp.ne.s32.totalorder %s294, %s295
      %p304 = scmp.eq.s32.totalorder %s28, 0
      %p305 = por %p303, %p304
      %p306 = scmp.ne.s32.totalorder %s294, %s295
      %p307 = scmp.eq.s32.totalorder %s29, 1
      %p308 = por %p306, %p307
      %p310 = scmp.ne.s32.totalorder %s295, %s309
      %p311 = scmp.eq.s32.totalorder %s29, 0
      %p312 = por %p310, %p311
      %s314 = sadd.s32 %s313, 1
      %p317 = scmp.eq.s32.totalorder %s23, 1
      %p318 = scmp.ne.s32.totalorder %s313, %s315
      %p319 = scmp.eq.s32.totalorder %s23, 0
      %p320 = por %p318, %p319
      %p321 = scmp.ne.s32.totalorder %s313, %s315
      %p322 = scmp.eq.s32.totalorder %s28, 1
      %p323 = por %p321, %p322
      %p324 = scmp.ne.s32.totalorder %s315, %s316
      %p325 = scmp.eq.s32.totalorder %s28, 0
      %p326 = por %p324, %p325
      %p327 = scmp.ne.s32.totalorder %s315, %s316
      %p328 = scmp.eq.s32.totalorder %s29, 1
      %p329 = por %p327, %p328
      %p331 = scmp.ne.s32.totalorder %s316, %s330
      %p332 = scmp.eq.s32.totalorder %s29, 0
      %p333 = por %p331, %p332
      %s335 = sadd.s32 %s334, 1
      %p338 = scmp.eq.s32.totalorder %s23, 1
      %p339 = scmp.ne.s32.totalorder %s334, %s336
      %p340 = scmp.eq.s32.totalorder %s23, 0
      %p341 = por %p339, %p340
      %p342 = scmp.ne.s32.totalorder %s334, %s336
      %p343 = scmp.eq.s32.totalorder %s28, 1
      %p344 = por %p342, %p343
      %p345 = scmp.ne.s32.totalorder %s336, %s337
      %p346 = scmp.eq.s32.totalorder %s28, 0
      %p347 = por %p345, %p346
      %p348 = scmp.ne.s32.totalorder %s336, %s337
      %p349 = scmp.eq.s32.totalorder %s29, 1
      %p350 = por %p348, %p349
      %p352 = scmp.ne.s32.totalorder %s337, %s351
      %p353 = scmp.eq.s32.totalorder %s29, 0
      %p354 = por %p352, %p353
      %s355 = ssub.s32 %s30, %s49
      %s356 = ssub.s32 %s31, %s45
      %s357 = sor.u32 %s355, %s356
      %s358 = ssub.s32 %s32, %s41
      %s359 = sor.u32 %s357, %s358
      %p360 = scmp.eq.s32.totalorder %s359, 0
      %s362 = sadd.s32 %s361, 1
      %s363 = scalar_select %p360, %s361, %s362
      %p366 = pneg %p360
      %p367 = scmp.eq.s32.totalorder %s23, 1
      %p368 = por %p366, %p367
      %p369 = scmp.ne.s32.totalorder %s361, %s364
      %p370 = scmp.eq.s32.totalorder %s23, 0
      %p371 = por %p369, %p370
      %p372 = scmp.ne.s32.totalorder %s361, %s364
      %p373 = scmp.eq.s32.totalorder %s28, 1
      %p374 = por %p372, %p373
      %p375 = scmp.ne.s32.totalorder %s364, %s365
      %p376 = scmp.eq.s32.totalorder %s28, 0
      %p377 = por %p375, %p376
      %p378 = scmp.ne.s32.totalorder %s364, %s365
      %p379 = scmp.eq.s32.totalorder %s29, 1
      %p380 = por %p378, %p379
      %p382 = scmp.ne.s32.totalorder %s365, %s381
      %p383 = scmp.eq.s32.totalorder %s29, 0
      %p384 = por %p382, %p383
      %s385 = ssub.s32 %s30, %s49
      %s386 = ssub.s32 %s31, %s45
      %s387 = sor.u32 %s385, %s386
      %p388 = scmp.eq.s32.totalorder %s387, 0
      %s390 = sadd.s32 %s389, 1
      %s391 = scalar_select %p388, %s389, %s390
      %p394 = pneg %p388
      %p395 = scmp.eq.s32.totalorder %s23, 1
      %p396 = por %p394, %p395
      %p397 = scmp.ne.s32.totalorder %s389, %s392
      %p398 = scmp.eq.s32.totalorder %s23, 0
      %p399 = por %p397, %p398
      %p400 = scmp.ne.s32.totalorder %s389, %s392
      %p401 = scmp.eq.s32.totalorder %s28, 1
      %p402 = por %p400, %p401
      %p403 = scmp.ne.s32.totalorder %s392, %s393
      %p404 = scmp.eq.s32.totalorder %s28, 0
      %p405 = por %p403, %p404
      %p406 = scmp.ne.s32.totalorder %s392, %s393
      %p407 = scmp.eq.s32.totalorder %s29, 1
      %p408 = por %p406, %p407
      %p410 = scmp.ne.s32.totalorder %s393, %s409
      %p411 = scmp.eq.s32.totalorder %s29, 0
      %p412 = por %p410, %p411
      %s413 = ssub.s32 %s30, %s49
      %s414 = ssub.s32 %s31, %s45
      %s415 = sor.u32 %s413, %s414
      %p416 = scmp.eq.s32.totalorder %s415, 0
      %s418 = sadd.s32 %s417, 1
      %s419 = scalar_select %p416, %s417, %s418
      %p422 = pneg %p416
      %p423 = scmp.eq.s32.totalorder %s23, 1
      %p424 = por %p422, %p423
      %p425 = scmp.ne.s32.totalorder %s417, %s420
      %p426 = scmp.eq.s32.totalorder %s23, 0
      %p427 = por %p425, %p426
      %p428 = scmp.ne.s32.totalorder %s417, %s420
      %p429 = scmp.eq.s32.totalorder %s28, 1
      %p430 = por %p428, %p429
      %p431 = scmp.ne.s32.totalorder %s420, %s421
      %p432 = scmp.eq.s32.totalorder %s28, 0
      %p433 = por %p431, %p432
      %p434 = scmp.ne.s32.totalorder %s420, %s421
      %p435 = scmp.eq.s32.totalorder %s29, 1
      %p436 = por %p434, %p435
      %p438 = scmp.ne.s32.totalorder %s421, %s437
      %p439 = scmp.eq.s32.totalorder %s29, 0
      %p440 = por %p438, %p439
      %p441 = scmp.le.s32.totalorder 1, %s23
      %p442 = scmp.lt.s32.totalorder %s23, 3
      %p443 = pnand %p441, %p442
      %p444 = pneg %p443
      // Predicated region
      $region9: #{generator_forward.2} parent=5 // pred_check
        _
      $region10: #{generator_forward.2} parent=5 // pred_check_branch
        %446 = sbr.rel (%p443) target = $region12
      $region11: #{generator_forward.2} parent=5 // pred_region
        %s447 = ssub.s32 %s23, 1
        // Predicated region
        $region13: #{generator_forward.2} parent=11 // pred_check
          %p448 = pneg %p63
        $region14: #{generator_forward.2} parent=11 // pred_check_branch
          %450 = sbr.rel (%p448) target = $region16
        $region15: #{generator_forward.2} parent=11 // pred_region
          %452 = vsyncadd [#allocation6], 0
          %s454 = sshll.u32 %s0, 4
          %s455 = int_to_ptr.vmem [resolvable:$true] %s454
          %457 = dma.vmem_to_smem %s455, 16, [#allocation5], [#allocation6]
        $region16: #{generator_forward.2} parent=11 // pred_fallthru
          _
        // Predicated region
        $region17: #{generator_forward.2} parent=11 // pred_check
          %p458 = pneg %p195
        $region18: #{generator_forward.2} parent=11 // pred_check_branch
          %460 = sbr.rel (%p458) target = $region20
        $region19: #{generator_forward.2} parent=11 // pred_region
          %p461 = scmp.lt.s32.totalorder %s35, 0
          %s462 = scalar_select %p461, %s35, 0
          %s463 = smul.addr %s462, 4
          %s464 = scalar_lea.vmem %s5, %s463
        $region20: #{generator_forward.2} parent=11 // pred_fallthru
          _
        // Predicated region
        $region21: #{generator_forward.2} parent=11 // pred_check
          %p465 = pneg %p221
        $region22: #{generator_forward.2} parent=11 // pred_check_branch
          %467 = sbr.rel (%p465) target = $region24
        $region23: #{generator_forward.2} parent=11 // pred_region
          %p468 = scmp.lt.s32.totalorder %s35, 0
          %s469 = scalar_select %p468, %s35, 0
          %s470 = scalar_lea.vmem %s6, %s469
        $region24: #{generator_forward.2} parent=11 // pred_fallthru
          _
        // Predicated region
        $region25: #{generator_forward.2} parent=11 // pred_check
          %p471 = pneg %p242
        $region26: #{generator_forward.2} parent=11 // pred_check_branch
          %473 = sbr.rel (%p471) target = $region28
        $region27: #{generator_forward.2} parent=11 // pred_region
          _
        $region28: #{generator_forward.2} parent=11 // pred_fallthru
          _
        // Predicated region
        $region29: #{generator_forward.2} parent=11 // pred_check
          %p474 = pneg %p263
        $region30: #{generator_forward.2} parent=11 // pred_check_branch
          %476 = sbr.rel (%p474) target = $region32
        $region31: #{generator_forward.2} parent=11 // pred_region
          _
        $region32: #{generator_forward.2} parent=11 // pred_fallthru
          _
        // Predicated region
        $region33: #{generator_forward.2} parent=11 // pred_check
          %p477 = pneg %p284
        $region34: #{generator_forward.2} parent=11 // pred_check_branch
          %479 = sbr.rel (%p477) target = $region36
        $region35: #{generator_forward.2} parent=11 // pred_region
          _
        $region36: #{generator_forward.2} parent=11 // pred_fallthru
          _
        // Predicated region
        $region37: #{generator_forward.2} parent=11 // pred_check
          %p480 = pneg %p305
        $region38: #{generator_forward.2} parent=11 // pred_check_branch
          %482 = sbr.rel (%p480) target = $region40
        $region39: #{generator_forward.2} parent=11 // pred_region
          _
        $region40: #{generator_forward.2} parent=11 // pred_fallthru
          _
        // Predicated region
        $region41: #{generator_forward.2} parent=11 // pred_check
          %p483 = pneg %p326
        $region42: #{generator_forward.2} parent=11 // pred_check_branch
          %485 = sbr.rel (%p483) target = $region44
        $region43: #{generator_forward.2} parent=11 // pred_region
          _
        $region44: #{generator_forward.2} parent=11 // pred_fallthru
          _
        // Predicated region
        $region45: #{generator_forward.2} parent=11 // pred_check
          %p486 = pneg %p347
        $region46: #{generator_forward.2} parent=11 // pred_check_branch
          %488 = sbr.rel (%p486) target = $region48
        $region47: #{generator_forward.2} parent=11 // pred_region
          _
        $region48: #{generator_forward.2} parent=11 // pred_fallthru
          _
      $region12: #{generator_forward.2} parent=5 // pred_fallthru
        _
      %p489 = scmp.lt.s32.totalorder %s23, 2
      // Predicated region
      $region49: #{generator_forward.2} parent=5 // pred_check
        %p490 = pneg %p489
      $region50: #{generator_forward.2} parent=5 // pred_check_branch
        %492 = sbr.rel (%p490) target = $region52
      $region51: #{generator_forward.2} parent=5 // pred_region
        // Predicated region
        $region53: #{generator_forward.2} parent=51 // pred_check
          %p493 = pneg %p85
        $region54: #{generator_forward.2} parent=51 // pred_check_branch
          %495 = sbr.rel (%p493) target = $region56
        $region55: #{generator_forward.2} parent=51 // pred_region
          %p496 = scmp.lt.s32.totalorder %s30, 1
          %s497 = scalar_select %p496, %s30, 1
          %p498 = scmp.lt.s32.totalorder %s31, 0
          %s499 = scalar_select %p498, %s31, 0
          %s500 = sadd.s32 %s499, %s497
          %s501 = smul.addr %s500, 4
          %s502 = scalar_lea.vmem %s1, %s501
        $region56: #{generator_forward.2} parent=51 // pred_fallthru
          _
        // Predicated region
        $region57: #{generator_forward.2} parent=51 // pred_check
          %p503 = pneg %p111
        $region58: #{generator_forward.2} parent=51 // pred_check_branch
          %505 = sbr.rel (%p503) target = $region60
        $region59: #{generator_forward.2} parent=51 // pred_region
          %p506 = scmp.lt.s32.totalorder %s30, 1
          %s507 = scalar_select %p506, %s30, 1
          %s508 = smul.addr %s507, 4
          %s509 = scalar_lea.vmem %s2, %s508
        $region60: #{generator_forward.2} parent=51 // pred_fallthru
          _
        // Predicated region
        $region61: #{generator_forward.2} parent=51 // pred_check
          %p510 = pneg %p137
        $region62: #{generator_forward.2} parent=51 // pred_check_branch
          %512 = sbr.rel (%p510) target = $region64
        $region63: #{generator_forward.2} parent=51 // pred_region
          %p513 = scmp.lt.s32.totalorder %s30, 1
          %s514 = scalar_select %p513, %s30, 1
          %s515 = scalar_lea.vmem %s3, %s514
        $region64: #{generator_forward.2} parent=51 // pred_fallthru
          _
        // Predicated region
        $region65: #{generator_forward.2} parent=51 // pred_check
          %p516 = pneg %p163
        $region66: #{generator_forward.2} parent=51 // pred_check_branch
          %518 = sbr.rel (%p516) target = $region68
        $region67: #{generator_forward.2} parent=51 // pred_region
          %p519 = scmp.lt.s32.totalorder %s30, 1
          %s520 = scalar_select %p519, %s30, 1
          %s521 = smul.addr %s520, 8
          %s522 = scalar_lea.vmem %s4, %s521
        $region68: #{generator_forward.2} parent=51 // pred_fallthru
          _
      $region52: #{generator_forward.2} parent=5 // pred_fallthru
        _
      %p523 = scmp.le.s32.totalorder 1, %s23
      %p524 = scmp.lt.s32.totalorder %s23, 3
      %p525 = pnand %p523, %p524
      %p526 = pneg %p525
      // Predicated region
      $region69: #{generator_forward.2} parent=5 // pred_check
        _
      $region70: #{generator_forward.2} parent=5 // pred_check_branch
        %528 = sbr.rel (%p525) target = $region72
      $region71: #{generator_forward.2} parent=5 // pred_region
        %s529 = ssub.s32 %s23, 1
        // Predicated region
        $region73: #{generator_forward.2} parent=71 // pred_check
          %p530 = pneg %p63
        $region74: #{generator_forward.2} parent=71 // pred_check_branch
          %532 = sbr.rel (%p530) target = $region76
        $region75: #{generator_forward.2} parent=71 // pred_region
          %534 = dma.done [#allocation6], 16
        $region76: #{generator_forward.2} parent=71 // pred_fallthru
          _
        %535 = sfence
        %p536 = pneg %p63
        %p537 = pneg %p60
        %p538 = scmp.lt.s32.totalorder %s33, 1
        %s539 = scalar_select %p538, %s33, 1
        %p540 = scmp.lt.s32.totalorder %s34, 0
        %s541 = scalar_select %p540, %s34, 0
        %s542 = sadd.s32 %s541, %s539
        %s543 = smul.addr %s542, 4
        %s544 = scalar_lea.vmem %s1, %s543
        %p545 = pneg %p91
        %p546 = pneg %p88
        %p547 = scmp.lt.s32.totalorder %s33, 1
        %s548 = scalar_select %p547, %s33, 1
        %s549 = smul.addr %s548, 4
        %s550 = scalar_lea.vmem %s2, %s549
        %p551 = pneg %p117
        %p552 = pneg %p114
        %p553 = scmp.lt.s32.totalorder %s33, 1
        %s554 = scalar_select %p553, %s33, 1
        %s555 = scalar_lea.vmem %s3, %s554
        %p556 = pneg %p143
        %p557 = pneg %p140
        %p558 = scmp.lt.s32.totalorder %s33, 1
        %s559 = scalar_select %p558, %s33, 1
        %s560 = smul.addr %s559, 8
        %s561 = scalar_lea.vmem %s4, %s560
        %p562 = pneg %p169
        %p563 = pneg %p166
        %p564 = scmp.lt.s32.totalorder %s35, 0
        %s565 = scalar_select %p564, %s35, 0
        %s566 = smul.addr %s565, 4
        %s567 = scalar_lea.vmem %s5, %s566
        %p568 = pneg %p195
        %p569 = pneg %p192
        %p570 = scmp.lt.s32.totalorder %s35, 0
        %s571 = scalar_select %p570, %s35, 0
        %s572 = scalar_lea.vmem %s6, %s571
        %p573 = pneg %p221
        %p574 = pneg %p218
        %p575 = pneg %p242
        %p576 = pneg %p239
        %p577 = pneg %p263
        %p578 = pneg %p260
        %p579 = pneg %p284
        %p580 = pneg %p281
        %p581 = pneg %p305
        %p582 = pneg %p302
        %p583 = pneg %p326
        %p584 = pneg %p323
        %p585 = pneg %p347
        %p586 = pneg %p344
        %p587 = pneg %p377
        %p588 = pneg %p374
        %p589 = scmp.lt.s32.totalorder %s33, 1
        %s590 = scalar_select %p589, %s33, 1
        %p591 = scmp.lt.s32.totalorder %s34, 0
        %s592 = scalar_select %p591, %s34, 0
        %p593 = scmp.lt.s32.totalorder %s35, 0
        %s594 = scalar_select %p593, %s35, 0
        %s595 = sadd.s32 %s594, %s592
        %s596 = sadd.s32 %s595, %s590
        %s597 = smul.addr %s596, 8
        %s598 = scalar_lea.vmem %s13, %s597
        %p599 = pneg %p405
        %p600 = pneg %p402
        %p601 = scmp.lt.s32.totalorder %s33, 1
        %s602 = scalar_select %p601, %s33, 1
        %p603 = scmp.lt.s32.totalorder %s34, 0
        %s604 = scalar_select %p603, %s34, 0
        %s605 = sadd.s32 %s604, %s602
        %s606 = smul.addr %s605, 8
        %s607 = scalar_lea.vmem %s14, %s606
        %p608 = pneg %p433
        %p609 = pneg %p430
        %p610 = scmp.lt.s32.totalorder %s33, 1
        %s611 = scalar_select %p610, %s33, 1
        %p612 = scmp.lt.s32.totalorder %s34, 0
        %s613 = scalar_select %p612, %s34, 0
        %s614 = sadd.s32 %s613, %s611
        %s615 = smul.addr %s614, 8
        %s616 = scalar_lea.vmem %s15, %s615
        %p617 = scmp.lt.s32.totalorder %s33, 1
        %s618 = scalar_select %p617, %s33, 1
        %p619 = scmp.lt.s32.totalorder %s34, 0
        %s620 = scalar_select %p619, %s34, 0
        %s621 = sadd.s32 %s620, %s618
        %s622 = smul.addr %s621, 4
        %s623 = scalar_lea.vmem %s1, %s622
        %p624 = scmp.lt.s32.totalorder %s33, 1
        %s625 = scalar_select %p624, %s33, 1
        %s626 = smul.addr %s625, 4
        %s627 = scalar_lea.vmem %s2, %s626
        %p628 = scmp.lt.s32.totalorder %s33, 1
        %s629 = scalar_select %p628, %s33, 1
        %s630 = scalar_lea.vmem %s3, %s629
        %p631 = scmp.lt.s32.totalorder %s33, 1
        %s632 = scalar_select %p631, %s33, 1
        %s633 = smul.addr %s632, 8
        %s634 = scalar_lea.vmem %s4, %s633
        %p635 = scmp.lt.s32.totalorder %s35, 0
        %s636 = scalar_select %p635, %s35, 0
        %s637 = smul.addr %s636, 4
        %s638 = scalar_lea.vmem %s5, %s637
        %p639 = scmp.lt.s32.totalorder %s35, 0
        %s640 = scalar_select %p639, %s35, 0
        %s641 = scalar_lea.vmem %s6, %s640
        %p642 = scmp.lt.s32.totalorder %s33, 1
        %s643 = scalar_select %p642, %s33, 1
        %p644 = scmp.lt.s32.totalorder %s34, 0
        %s645 = scalar_select %p644, %s34, 0
        %p646 = scmp.lt.s32.totalorder %s35, 0
        %s647 = scalar_select %p646, %s35, 0
        %s648 = sadd.s32 %s647, %s645
        %s649 = sadd.s32 %s648, %s643
        %s650 = smul.addr %s649, 8
        %s651 = scalar_lea.vmem %s13, %s650
        %p652 = scmp.lt.s32.totalorder %s33, 1
        %s653 = scalar_select %p652, %s33, 1
        %p654 = scmp.lt.s32.totalorder %s34, 0
        %s655 = scalar_select %p654, %s34, 0
        %s656 = sadd.s32 %s655, %s653
        %s657 = smul.addr %s656, 8
        %s658 = scalar_lea.vmem %s14, %s657
        %p659 = scmp.lt.s32.totalorder %s33, 1
        %s660 = scalar_select %p659, %s33, 1
        %p661 = scmp.lt.s32.totalorder %s34, 0
        %s662 = scalar_select %p661, %s34, 0
        %s663 = sadd.s32 %s662, %s660
        %s664 = smul.addr %s663, 8
        %s665 = scalar_lea.vmem %s15, %s664
        %v667 = vld [vmem:[%s623] sm:$0xf]
        %p668 = scmp.eq.s32.totalorder %s35, 0
        // Predicated region
        $region77: #{generator_forward.2} parent=71 // pred_check
          %p669 = pneg %p668
        $region78: #{generator_forward.2} parent=71 // pred_check_branch
          %671 = sbr.rel (%p669) target = $region80
        $region79: #{generator_forward.2} parent=71 // pred_region
          %s672 = sld [smem:[#allocation5]]
          %s673 = sld [smem:[#allocation5 + $0x1]]
          %v674 = vunpack.c.l.bf16 %v667
          %v675 = vld [vmem:[%s627] sm:$0xf]
          %v676 = vunpack.c.l.bf16 %v675
          %v677 = vld [vmem:[%s7] sm:$0x1]
          %v679 = vperm.slane %v677, 0
          %v681 = vmul.f32 %v674, %v679
          %vm682 = vcmask 261120
          %v683 = vsel %vm682, %v681, 0.0
          %684 = vadd.xlane.f32.xlu0 %v683
          %v685 = vpop.xlane.xlu0 %684
          %v686 = vld [vmem:[%s8] sm:$0x1]
          %v688 = vsel %vm682, %v686, 0
          %v691 = vsel %vm682, %v676, 0
          %693 = vmatpush.xpose.msra.mxu0 0.0
          %694 = vmatpush.xpose.msra.mxu0 0.0
          %695 = vmatpush.xpose.msra.mxu0 0.0
          %696 = vmatpush.xpose.msra.mxu0 0.0
          %697 = vmatpush.xpose.msra.mxu0 0.0
          %698 = vmatpush.xpose.msra.mxu0 0.0
          %699 = vmatpush.xpose.msra.mxu0 0.0
          %700 = vmatpush.xpose.msra.mxu0 0.0
          %701 = vmatpush.xpose.msra.mxu0 0.0
          %702 = vmatpush.xpose.msra.mxu0 0.0
          %703 = vmatpush.xpose.msra.mxu0 0.0
          %704 = vmatpush.xpose.msra.mxu0 0.0
          %705 = vmatpush.xpose.msra.mxu0 0.0
          %706 = vmatpush.xpose.msra.mxu0 0.0
          %707 = vmatpush.xpose.msra.mxu0 0.0
          %708 = vmatpush.xpose.msra.mxu0 %v691
          %709 = vmatmul.f32.gmra.mxu0 %v688
          %v710 = vpop.f32.mrf.mxu0
          %v711 = vadd.f32 0.0, %v710
          %712 = vdwg.mxu0
          %v713 = vperm.slane %v711, 0
          %v714 = vadd.f32 %v685, %v713
          %v715 = vstv %s672
          %v716 = vadd.f32 %v714, %v715
          %v717 = vld [vmem:[%s630] sm:$0x1]
          %vm718 = vcmp.eq.s32.totalorder %v717, 0
          %v719 = vsel %vm718, 1, 0
          %v720 = vperm.slane %v719, 0
          %vm721 = vcmp.eq.s32.totalorder %v720, 1
          %v722 = vsel %vm721, -1e-08, %v716
          %v723 = vpack.c.bf16 %v722, %v722
          %vm724 = vcmask 60416
          %725 = vst.msk [vmem:[#allocation2] sm:$0xf] %vm724, %v723
          %vm726 = vcmask 64512
          %v728 = vsel %vm726, %v723, 0
          %vm730 = vcmask 1043456
          %v732 = vsel %vm730, %v675, 0
          %734 = vmatpush.bf16.msra.mxu0 0
          %735 = vmatpush.bf16.msra.mxu0 0
          %736 = vmatpush.bf16.msra.mxu0 0
          %737 = vmatpush.bf16.msra.mxu0 0
          %738 = vmatpush.bf16.msra.mxu0 0
          %739 = vmatpush.bf16.msra.mxu0 0
          %740 = vmatpush.bf16.msra.mxu0 0
          %741 = vmatpush.bf16.msra.mxu0 %v732
          %742 = vmatmul.bf16.gmra.mxu0 %v728
          %v743 = vpop.f32.mrf.mxu0
          %v744 = vadd.f32 0.0, %v743
          %v745 = vpop.f32.mrf.mxu0
          %746 = vdwg.mxu0
          %v747 = vld [vmem:[%s9] sm:$0xf]
          %v748 = vld [vmem:[%s9 + $0x4] sm:$0xf]
          %v749 = vld [vmem:[%s9 + $0x8] sm:$0xf]
          %v750 = vld [vmem:[%s9 + $0xc] sm:$0xf]
          %v751 = vpack.c.bf16 %v744, %v744
          %v752 = vld [vmem:[%s10] sm:$0xf]
          %v753 = vld [vmem:[%s10 + $0x4] sm:$0xf]
          %v754 = vld [vmem:[%s10 + $0x8] sm:$0xf]
          %v755 = vld [vmem:[%s10 + $0xc] sm:$0xf]
          %v760 = vunpack.c.l.b16 %v752
          %v761 = vunpack.c.l.b16 %v753
          %v762 = vunpack.c.l.b16 %v754
          %v763 = vunpack.c.l.b16 %v755
          %v764 = vpack.c.b16 %v761, %v760
          %v765 = vpack.c.b16 %v763, %v762
          %v769 = vsel %vm682, %v751, 0
          %771 = vmatpush.bf16.msra.mxu0 0
          %772 = vmatpush.bf16.msra.mxu0 0
          %773 = vmatpush.bf16.msra.mxu0 0
          %774 = vmatpush.bf16.msra.mxu0 0
          %775 = vmatpush.bf16.msra.mxu0 0
          %776 = vmatpush.bf16.msra.mxu0 0
          %777 = vmatpush.bf16.msra.mxu0 %v765
          %778 = vmatpush.bf16.msra.mxu0 %v764
          %779 = vmatmul.bf16.gmra.mxu0 %v769
          %v780 = vpop.f32.mrf.mxu0
          %v781 = vadd.f32 0.0, %v780
          %v782 = vpop.f32.mrf.mxu0
          %783 = vdwg.mxu0
          %v788 = vunpack.c.l.b16 %v747
          %v789 = vunpack.c.l.b16 %v748
          %v790 = vunpack.c.l.b16 %v749
          %v791 = vunpack.c.l.b16 %v750
          %v792 = vpack.c.b16 %v789, %v788
          %v793 = vpack.c.b16 %v791, %v790
          %v797 = vsel %vm682, %v667, 0
          %799 = vmatpush.bf16.msra.mxu0 0
          %800 = vmatpush.bf16.msra.mxu0 0
          %801 = vmatpush.bf16.msra.mxu0 0
          %802 = vmatpush.bf16.msra.mxu0 0
          %803 = vmatpush.bf16.msra.mxu0 0
          %804 = vmatpush.bf16.msra.mxu0 0
          %805 = vmatpush.bf16.msra.mxu0 %v793
          %806 = vmatpush.bf16.msra.mxu0 %v792
          %807 = vmatmul.bf16.gmra.mxu0 %v797
          %v808 = vpop.f32.mrf.mxu0
          %v809 = vadd.f32 %v781, %v808
          %v810 = vpop.f32.mrf.mxu0
          %811 = vdwg.mxu0
          %v812 = vld [vmem:[%s11] sm:$0x1]
          %v814 = vperm.slane %v812, 0
          %v816 = vadd.f32 %v809, %v814
          %v817 = vld [vmem:[%s12] sm:$0x1]
          %v819 = vperm.slane %v817, 0
          %v821 = vmul.f32 %v816, %v819
          %v822 = vsel %vm682, %v821, 0.0
          %823 = vadd.xlane.f32.xlu0 %v822
          %v824 = vpop.xlane.xlu0 %823
          %v825 = vstv %s673
          %v826 = vadd.f32 %v824, %v825
          %v827 = vxor.u32 %v826, 2147483648
          %v828 = vmul.f32 %v827, 1.442695
          %v829 = vpow.pop %v828
          %v830 = vadd.f32 %v829, 1.0
          %v831 = vrcp.pop %v830
          %v832 = vmul.f32 %v830, %v831
          %v833 = vsub.f32 1.0, %v832
          %v834 = vmul.f32 %v831, %v833
          %v835 = vadd.f32 %v831, %v834
          %vm836 = vweird.f32 %v830
          %vm837 = vweird.f32 %v831
          %vm838 = vmor %vm836, %vm837
          %v839 = vsel %vm838, %v831, %v835
          %v840 = vand.u32 2147483647, %v830
          %vm841 = vcmp.eq.f32.partialorder %v840, 8.507059e+37
          %v842 = vand.u32 %v830, 2147483648
          %v843 = vor.u32 1.1754944e-38, %v842
          %v844 = vsel %vm841, %v843, %v839
          %v845 = vmul.f32 1.0, %v844
          %vm846 = vcmask 7168
          %847 = vst.msk [vmem:[%s665] sm:$0xff] %vm846, %v845
          %848 = vst.msk [vmem:[#allocation3] sm:$0xff] %vm846, -inf
          %849 = vst.msk [vmem:[#allocation4] sm:$0xff] %vm846, 0.0
        $region80: #{generator_forward.2} parent=71 // pred_fallthru
          _
        %v850 = vld [vmem:[%s638] sm:$0xf]
        %v851 = vld [vmem:[%s638 + $0x4] sm:$0xf]
        %v852 = vld [vmem:[%s638 + $0x8] sm:$0xf]
        %v853 = vld [vmem:[%s638 + $0xc] sm:$0xf]
        %v854 = vld [vmem:[%s641] sm:$0x1]
        %v856 = vperm.slane %v854, 0
        %v862 = vunpack.c.l.b16 %v850
        %v863 = vunpack.c.l.b16 %v851
        %v864 = vunpack.c.l.b16 %v852
        %v865 = vunpack.c.l.b16 %v853
        %v866 = vpack.c.b16 %v863, %v862
        %v867 = vpack.c.b16 %v865, %v864
        %vm870 = vcmask 261120
        %v872 = vsel %vm870, %v667, 0
        %874 = vmatpush.bf16.msra.mxu0 0
        %875 = vmatpush.bf16.msra.mxu0 0
        %876 = vmatpush.bf16.msra.mxu0 0
        %877 = vmatpush.bf16.msra.mxu0 0
        %878 = vmatpush.bf16.msra.mxu0 0
        %879 = vmatpush.bf16.msra.mxu0 0
        %880 = vmatpush.bf16.msra.mxu0 %v867
        %881 = vmatpush.bf16.msra.mxu0 %v866
        %882 = vmatmul.bf16.gmra.mxu0 %v872
        %v883 = vpop.f32.mrf.mxu0
        %v884 = vadd.f32 %v856, %v883
        %v885 = vpop.f32.mrf.mxu0
        %886 = vdwg.mxu0
        %v887 = vlaneseq
        %v888 = vand.u32 %v887, 127
        %s889 = smul.u32 %s35, 128
        %v890 = vstv %s889
        %v891 = vadd.s32 %v888, %v890
        %v892 = vld [vmem:[%s634] sm:$0xff]
        %893 = vset.pattern.permute.xlu0 0
        %894 = vperm.xlu0 %893, %v892
        %v895 = vpop.permute.xlu0 %894
        %vm896 = vcmp.eq.s32.totalorder %v891, %v895
        %v897 = vsel %vm896, 1, 0
        %v898 = vcvt.s32.f32 %v897
        %v899 = vpack.c.bf16 %v898, %v898
        %v900 = vld [vmem:[#allocation2] sm:$0xf]
        %vm901 = vcmask 64512
        %v903 = vsel %vm901, %v900, 0
        %vm905 = vcmask 1043456
        %v907 = vsel %vm905, %v899, 0
        %909 = vmatpush.bf16.msra.mxu0 0
        %910 = vmatpush.bf16.msra.mxu0 0
        %911 = vmatpush.bf16.msra.mxu0 0
        %912 = vmatpush.bf16.msra.mxu0 0
        %913 = vmatpush.bf16.msra.mxu0 0
        %914 = vmatpush.bf16.msra.mxu0 0
        %915 = vmatpush.bf16.msra.mxu0 0
        %916 = vmatpush.bf16.msra.mxu0 %v907
        %917 = vmatmul.bf16.gmra.mxu0 %v903
        %v918 = vpop.f32.mrf.mxu0
        %v919 = vadd.f32 0.0, %v918
        %v920 = vpop.f32.mrf.mxu0
        %921 = vdwg.mxu0
        %v922 = vld [vmem:[%s665] sm:$0xff]
        %v923 = vsub.f32 %v919, %v884
        %925 = vset.pattern.permute.xlu0 0
        %926 = vperm.xlu0 %925, %v922
        %v927 = vpop.permute.xlu0 %926
        %v929 = vmul.f32 %v927, %v923
        %v930 = vadd.f32 %v884, %v929
        %v931 = vld [vmem:[#allocation3] sm:$0xff]
        %932 = vmax.xlane.f32.xlu0 %v930
        %v933 = vpop.xlane.xlu0 %932
        %v934 = vmax.f32 %v931, %v933
        %v935 = vld [vmem:[#allocation4] sm:$0xff]
        %v936 = vsub.f32 %v931, %v934
        %v937 = vmul.f32 %v936, 1.442695
        %v938 = vpow.pop %v937
        %v939 = vmul.f32 %v935, %v938
        %941 = vset.pattern.permute.xlu0 0
        %942 = vperm.xlu0 %941, %v934
        %v943 = vpop.permute.xlu0 %942
        %v945 = vsub.f32 %v930, %v943
        %v946 = vmul.f32 %v945, 1.442695
        %v947 = vpow.pop %v946
        %948 = vadd.xlane.f32.xlu0 %v947
        %v949 = vpop.xlane.xlu0 %948
        %v950 = vadd.f32 %v939, %v949
        %vm951 = vcmask 7168
        %952 = vst.msk [vmem:[#allocation4] sm:$0xff] %vm951, %v950
        %953 = vst.msk [vmem:[#allocation3] sm:$0xff] %vm951, %v934
        %954 = vst [vmem:[%s651] sm:$0xff] %v930
        // Predicated region
        $region81: #{generator_forward.2} parent=71 // pred_check
          %p955 = pneg %p668
        $region82: #{generator_forward.2} parent=71 // pred_check_branch
          %957 = sbr.rel (%p955) target = $region84
        $region83: #{generator_forward.2} parent=71 // pred_region
          %v958 = vld [vmem:[#allocation3] sm:$0xff]
          %v959 = vld [vmem:[#allocation4] sm:$0xff]
          %v960 = vlog2.pop %v959
          %v961 = vmul.f32 %v960, 0.6931472
          %v962 = vadd.f32 %v958, %v961
          %963 = vst.msk [vmem:[%s658] sm:$0xff] %vm951, %v962
        $region84: #{generator_forward.2} parent=71 // pred_fallthru
          _
        %p964 = scmp.lt.s32.totalorder %s33, 1
        %s965 = scalar_select %p964, %s33, 1
        %p966 = scmp.lt.s32.totalorder %s34, 0
        %s967 = scalar_select %p966, %s34, 0
        %p968 = scmp.lt.s32.totalorder %s35, 0
        %s969 = scalar_select %p968, %s35, 0
        %s970 = sadd.s32 %s969, %s967
        %s971 = sadd.s32 %s970, %s965
        %s972 = smul.addr %s971, 8
        %s973 = scalar_lea.vmem %s13, %s972
        %p974 = scmp.lt.s32.totalorder %s33, 1
        %s975 = scalar_select %p974, %s33, 1
        %p976 = scmp.lt.s32.totalorder %s34, 0
        %s977 = scalar_select %p976, %s34, 0
        %s978 = sadd.s32 %s977, %s975
        %s979 = smul.addr %s978, 8
        %s980 = scalar_lea.vmem %s14, %s979
        %p981 = scmp.lt.s32.totalorder %s33, 1
        %s982 = scalar_select %p981, %s33, 1
        %p983 = scmp.lt.s32.totalorder %s34, 0
        %s984 = scalar_select %p983, %s34, 0
        %s985 = sadd.s32 %s984, %s982
        %s986 = smul.addr %s985, 8
        %s987 = scalar_lea.vmem %s15, %s986
        // Predicated region
        $region85: #{generator_forward.2} parent=71 // pred_check
          %p988 = pneg %p374
        $region86: #{generator_forward.2} parent=71 // pred_check_branch
          %990 = sbr.rel (%p988) target = $region88
        $region87: #{generator_forward.2} parent=71 // pred_region
          _
        $region88: #{generator_forward.2} parent=71 // pred_fallthru
          _
        // Predicated region
        $region89: #{generator_forward.2} parent=71 // pred_check
          %p991 = pneg %p402
        $region90: #{generator_forward.2} parent=71 // pred_check_branch
          %993 = sbr.rel (%p991) target = $region92
        $region91: #{generator_forward.2} parent=71 // pred_region
          _
        $region92: #{generator_forward.2} parent=71 // pred_fallthru
          _
        // Predicated region
        $region93: #{generator_forward.2} parent=71 // pred_check
          %p994 = pneg %p430
        $region94: #{generator_forward.2} parent=71 // pred_check_branch
          %996 = sbr.rel (%p994) target = $region96
        $region95: #{generator_forward.2} parent=71 // pred_region
          _
        $region96: #{generator_forward.2} parent=71 // pred_fallthru
          _
      $region72: #{generator_forward.2} parent=5 // pred_fallthru
        _
      %p997 = scmp.le.s32.totalorder 2, %s23
      // Predicated region
      $region97: #{generator_forward.2} parent=5 // pred_check
        %p998 = pneg %p997
      $region98: #{generator_forward.2} parent=5 // pred_check_branch
        %1000 = sbr.rel (%p998) target = $region100
      $region99: #{generator_forward.2} parent=5 // pred_region
        %s1001 = ssub.s32 %s23, 2
        // Predicated region
        $region101: #{generator_forward.2} parent=99 // pred_check
          %p1002 = pneg %p380
        $region102: #{generator_forward.2} parent=99 // pred_check_branch
          %1004 = sbr.rel (%p1002) target = $region104
        $region103: #{generator_forward.2} parent=99 // pred_region
          %p1005 = scmp.lt.s32.totalorder %s36, 1
          %s1006 = scalar_select %p1005, %s36, 1
          %p1007 = scmp.lt.s32.totalorder %s37, 0
          %s1008 = scalar_select %p1007, %s37, 0
          %p1009 = scmp.lt.s32.totalorder %s38, 0
          %s1010 = scalar_select %p1009, %s38, 0
          %s1011 = sadd.s32 %s1010, %s1008
          %s1012 = sadd.s32 %s1011, %s1006
          %s1013 = smul.addr %s1012, 8
          %s1014 = scalar_lea.vmem %s13, %s1013
        $region104: #{generator_forward.2} parent=99 // pred_fallthru
          _
        // Predicated region
        $region105: #{generator_forward.2} parent=99 // pred_check
          %p1015 = pneg %p408
        $region106: #{generator_forward.2} parent=99 // pred_check_branch
          %1017 = sbr.rel (%p1015) target = $region108
        $region107: #{generator_forward.2} parent=99 // pred_region
          %p1018 = scmp.lt.s32.totalorder %s36, 1
          %s1019 = scalar_select %p1018, %s36, 1
          %p1020 = scmp.lt.s32.totalorder %s37, 0
          %s1021 = scalar_select %p1020, %s37, 0
          %s1022 = sadd.s32 %s1021, %s1019
          %s1023 = smul.addr %s1022, 8
          %s1024 = scalar_lea.vmem %s14, %s1023
        $region108: #{generator_forward.2} parent=99 // pred_fallthru
          _
        // Predicated region
        $region109: #{generator_forward.2} parent=99 // pred_check
          %p1025 = pneg %p436
        $region110: #{generator_forward.2} parent=99 // pred_check_branch
          %1027 = sbr.rel (%p1025) target = $region112
        $region111: #{generator_forward.2} parent=99 // pred_region
          %p1028 = scmp.lt.s32.totalorder %s36, 1
          %s1029 = scalar_select %p1028, %s36, 1
          %p1030 = scmp.lt.s32.totalorder %s37, 0
          %s1031 = scalar_select %p1030, %s37, 0
          %s1032 = sadd.s32 %s1031, %s1029
          %s1033 = smul.addr %s1032, 8
          %s1034 = scalar_lea.vmem %s15, %s1033
        $region112: #{generator_forward.2} parent=99 // pred_fallthru
          _
      $region100: #{generator_forward.2} parent=5 // pred_fallthru
        _
    $region6: #{generator_forward.2} parent=1 // loop_footer
      %s27 = sadd.s32 1, %s23
    $region7: #{generator_forward.2} parent=1 // loop_footer_branch
      %22 = sbr.rel target = $region3
    $region8: #{generator_forward.2} parent=1 // loop_exit
      _
    %1035 = vsyncpa [#allocation6], 1
    %s1036 = scalar_lea.sflag [#allocation6], 1
    %1037 = vsyncpa %s1036, 1

</llo_original>
